<compile_context>
chip_gen: v7x
topology: tpu7x:2x2x1
jax: 0.10.0
libtpu: 0.0.40
codegen_flags: <defaults>
</compile_context>

<pallas_src>
import numpy as np

import jax
import jax.numpy as jnp
from jax.experimental import pallas as pl
from jax.experimental.pallas import tpu as pltpu  # noqa: F401  (TPU backend)

MXU_DTYPE = jnp.bfloat16      # matmul operand / inter-layer activation dtype
BN_EPS = 1e-5


# ----------------------------------------------------------------------------
# Pallas kernels (single invocation per layer, everything VMEM-resident).
# ----------------------------------------------------------------------------
def _convt_bn_relu_kernel(w_ref, p_ref, g_ref, b_ref, o_ref):
    """Fused: (4*Cout, 9*Cin) @ (9*Cin, M) -> BN(train stats) -> ReLU -> bf16.

    BN statistics are per channel co over (4 parities x M spatial positions);
    the (4*Cout, M) -> (4, Cout, M) reshape only splits the leading dim
    (Cout is a multiple of the 8-row sublane tile), so it is layout-cheap.
    """
    r = w_ref.shape[0]
    cout = r // 4
    m = p_ref.shape[1]

    y = jnp.dot(w_ref[...], p_ref[...], preferred_element_type=jnp.float32)
    yr = y.reshape(4, cout, m)

    cnt = 4.0 * m
    s = jnp.sum(jnp.sum(yr, axis=2, keepdims=True), axis=0, keepdims=True)
    mean = s / cnt                                           # (1, cout, 1)
    d = yr - mean
    v = jnp.sum(jnp.sum(d * d, axis=2, keepdims=True), axis=0, keepdims=True)
    var = v / cnt                                            # biased, as torch BN (train)

    scale = g_ref[...] * jax.lax.rsqrt(var + BN_EPS)         # (1, cout, 1)
    shift = b_ref[...] - mean * scale
    z = jnp.maximum(yr * scale + shift, 0.0)
    o_ref[...] = z.reshape(r, m).astype(o_ref.dtype)


def _convt_tanh_kernel(w_ref, p_ref, o_ref):
    """Final layer: matmul + fused Tanh epilogue, f32 output."""
    y = jnp.dot(w_ref[...], p_ref[...], preferred_element_type=jnp.float32)
    o_ref[...] = jnp.tanh(y)


def convt_bn_relu_call(wall, patches, gamma, beta):
    r, k = wall.shape
    _, m = patches.shape
    cost = pl.CostEstimate(
        flops=2 * r * k * m + 8 * r * m,
        transcendentals=r // 4,
        bytes_accessed=2 * (r * k + k * m + r * m) + 8 * (r // 4),
    )
    return pl.pallas_call(
        _convt_bn_relu_kernel,
        out_shape=jax.ShapeDtypeStruct((r, m), jnp.bfloat16),
        cost_estimate=cost,
    )(wall, patches, gamma, beta)


def convt_tanh_call(wall, patches):
    r, k = wall.shape
    _, m = patches.shape
    cost = pl.CostEstimate(
        flops=2 * r * k * m,
        transcendentals=r * m,
        bytes_accessed=2 * (r * k + k * m) + 4 * r * m,
    )
    return pl.pallas_call(
        _convt_tanh_kernel,
        out_shape=jax.ShapeDtypeStruct((r, m), jnp.float32),
        cost_estimate=cost,
    )(wall, patches)


# ----------------------------------------------------------------------------
# One-time parameter preparation (outside jit, numpy): ConvTranspose weights
# -> parity/tap matrices W_all (4*Cout, 9*Cin), bf16.
# ----------------------------------------------------------------------------
def _wall_from_torch(w_t):
    """PyTorch ConvTranspose2d weight (Cin, Cout, 4, 4) -> (4*Cout, 9*Cin).

    Row p*Cout+co with parity p = 2*(oh%2)+(ow%2); column tap*Cin+ci with
    tap = dh*3+dw multiplies the zero-padded input shifted by (dh, dw).
    Only 4 of 9 taps are populated per parity; the rest stay zero.
    """
    w = np.asarray(w_t, dtype=np.float32)
    cin, cout, kh_, kw_ = w.shape
    assert kh_ == 4 and kw_ == 4
    wall = np.zeros((4 * cout, 9 * cin), np.float32)
    for ph in range(2):
        for pw in range(2):
            p = 2 * ph + pw
            for dh in range(2):
                for dw in range(2):
                    tap = (ph + dh) * 3 + (pw + dw)
                    kh = 3 - ph - 2 * dh
                    kw = 3 - pw - 2 * dw
                    wall[p * cout:(p + 1) * cout,
                         tap * cin:(tap + 1) * cin] = w[:, :, kh, kw].T
    return jnp.asarray(wall)


def prepare_params(params):
    """Hoist all weight reshaping / bf16 casting out of the jitted forward."""
    nz, c1 = params["w1"].shape[0], params["w1"].shape[1]
    prep = {
        "w1m": params["w1"].reshape(nz, c1 * 36),            # layer-1 matmul (XLA)
        "g1": params["g1"],
        "b1": params["b1"],
    }
    for i in (2, 3, 4, 5):
        prep[f"wall{i}"] = _wall_from_torch(params[f"w{i}"]).astype(MXU_DTYPE)
    for i in (2, 3, 4):
        prep[f"g{i}"] = params[f"g{i}"].reshape(-1, 1)        # (Cout, 1) f32
        prep[f"b{i}"] = params[f"b{i}"].reshape(-1, 1)
    return prep


# ----------------------------------------------------------------------------
# XLA-side shuffles between kernels (tiny, fused by XLA).
# ----------------------------------------------------------------------------
def _patches_cm(h_cf):
    """Channel-first activation (C, N, H, W) -> shared patch matrix (9C, N*H*W)."""
    c, n, h, w = h_cf.shape
    hp = jnp.pad(h_cf, ((0, 0), (0, 0), (1, 1), (1, 1)))
    taps = [hp[:, :, dh:dh + h, dw:dw + w]
            for dh in range(3) for dw in range(3)]
    return jnp.stack(taps, axis=0).reshape(9 * c, n * h * w)


def _interleave_cf(y, cout, n, h, w):
    """Parity rows (4*Cout, N*H*W) -> channel-first (Cout, N, 2H, 2W)."""
    yr = y.reshape(2, 2, cout, n, h, w)
    return jnp.transpose(yr, (2, 3, 4, 0, 5, 1)).reshape(cout, n, 2 * h, 2 * w)


def _interleave_nchw(y, cout, n, h, w):
    """Final layer: parity rows (4*Cout, N*H*W) -> NCHW (N, Cout, 2H, 2W)."""
    yr = y.reshape(2, 2, cout, n, h, w)
    return jnp.transpose(yr, (3, 2, 4, 0, 5, 1)).reshape(n, cout, 2 * h, 2 * w)


# ----------------------------------------------------------------------------
# Generator_I forward
# ----------------------------------------------------------------------------
def generator_i_forward(x_nchw, prep):
    n, nz = x_nchw.shape[0], x_nchw.shape[1]
    w1m = prep["w1m"]
    c1 = w1m.shape[1] // 36

    # Layer 1 (XLA): ConvT(nz, c1, 6, 1, 0) on a 1x1 input == plain matmul,
    # fused by XLA with its BatchNorm + ReLU.
    # TODO(synk): BatchNorm running-statistics buffer updates (module state in
    # train mode) are not emulated; forward uses batch stats as a fresh module.
    y1 = jnp.dot(x_nchw.reshape(n, nz), w1m).reshape(n, c1, 6, 6)
    mean = jnp.mean(y1, axis=(0, 2, 3), keepdims=True)
    var = jnp.var(y1, axis=(0, 2, 3), keepdims=True)
    g1 = prep["g1"].reshape(1, c1, 1, 1)
    b1 = prep["b1"].reshape(1, c1, 1, 1)
    h = jnp.maximum((y1 - mean) * jax.lax.rsqrt(var + BN_EPS) * g1 + b1, 0.0)
    h_cf = jnp.transpose(h, (1, 0, 2, 3)).astype(MXU_DTYPE)   # (c1, N, 6, 6)

    # Layers 2-4: fused ConvT(4,2,1) + BatchNorm + ReLU (one Pallas call each).
    for key_w, key_g, key_b in (("wall2", "g2", "b2"),
                                ("wall3", "g3", "b3"),
                                ("wall4", "g4", "b4")):
        wall = prep[key_w]
        cout = wall.shape[0] // 4
        _, nb, hh, ww = h_cf.shape
        patches = _patches_cm(h_cf)                            # bf16 (9*Cin, M)
        y = convt_bn_relu_call(wall, patches, prep[key_g], prep[key_b])
        h_cf = _interleave_cf(y, cout, nb, hh, ww)             # bf16 channel-first

    # Layer 5: fused ConvT(4,2,1) + Tanh.
    wall5 = prep["wall5"]
    nc_out = wall5.shape[0] // 4
    _, nb, hh, ww = h_cf.shape
    patches = _patches_cm(h_cf)
    y = convt_tanh_call(wall5, patches)                        # f32 (4*nc, M)
    return _interleave_nchw(y, nc_out, nb, hh, ww)             # NCHW f32


# ----------------------------------------------------------------------------
# Pure-JAX f32 reference (dilate + pad + flipped-kernel correlation) used as
# an in-script numerical self-check of the parity-decomposition lowering.
# ----------------------------------------------------------------------------
def _ref_conv_transpose(x, w_t, k, s, p):
    n, ci, h, w = x.shape
    co = w_t.shape[1]
    hd, wd = (h - 1) * s + 1, (w - 1) * s + 1
    xd = jnp.zeros((n, ci, hd, wd), x.dtype).at[:, :, ::s, ::s].set(x)
    xp = jnp.pad(xd, ((0, 0), (0, 0), (k - 1 - p,) * 2, (k - 1 - p,) * 2))
    wf = w_t[:, :, ::-1, ::-1]
    ho = hd + 2 * (k - 1 - p) - k + 1
    wo = wd + 2 * (k - 1 - p) - k + 1
    out = jnp.zeros((n, co, ho, wo), jnp.float32)
    for kh in range(k):
        for kw in range(k):
            out = out + jnp.einsum("ncij,cd->ndij",
                                   xp[:, :, kh:kh + ho, kw:kw + wo],
                                   wf[:, :, kh, kw])
    return out


def _ref_bn_relu(x, gamma, beta):
    mean = jnp.mean(x, axis=(0, 2, 3), keepdims=True)
    var = jnp.var(x, axis=(0, 2, 3), keepdims=True)
    y = (x - mean) * jax.lax.rsqrt(var + BN_EPS)
    y = y * gamma[None, :, None, None] + beta[None, :, None, None]
    return jnp.maximum(y, 0.0)


def reference_forward(x, params):
    h = _ref_bn_relu(_ref_conv_transpose(x, params["w1"], 6, 1, 0),
                     params["g1"], params["b1"])
    h = _ref_bn_relu(_ref_conv_transpose(h, params["w2"], 4, 2, 1),
                     params["g2"], params["b2"])
    h = _ref_bn_relu(_ref_conv_transpose(h, params["w3"], 4, 2, 1),
                     params["g3"], params["b3"])
    h = _ref_bn_relu(_ref_conv_transpose(h, params["w4"], 4, 2, 1),
                     params["g4"], params["b4"])
    return jnp.tanh(_ref_conv_transpose(h, params["w5"], 4, 2, 1))


# ----------------------------------------------------------------------------
# Parameter init (mirrors the PyTorch module structure with small sizes)
# ----------------------------------------------------------------------------
def init_params(key, nc=3, ngf=8, nz=16):
    ks = jax.random.split(key, 5)

    def w(k, shape):
        return 0.02 * jax.random.normal(k, shape, jnp.float32)

    def bn(c):
        return jnp.ones((c,), jnp.float32), jnp.zeros((c,), jnp.float32)

    g1, b1 = bn(ngf * 8)
    g2, b2 = bn(ngf * 4)
    g3, b3 = bn(ngf * 2)
    g4, b4 = bn(ngf)
    return {
        "w1": w(ks[0], (nz, ngf * 8, 6, 6)),
        "w2": w(ks[1], (ngf * 8, ngf * 4, 4, 4)),
        "w3": w(ks[2], (ngf * 4, ngf * 2, 4, 4)),
        "w4": w(ks[3], (ngf * 2, ngf, 4, 4)),
        "w5": w(ks[4], (ngf, nc, 4, 4)),
        "g1": g1, "b1": b1, "g2": g2, "b2": b2,
        "g3": g3, "b3": b3, "g4": g4, "b4": b4,
    }


if __name__ == "__main__":
    key = jax.random.PRNGKey(0)
    kp, kx = jax.random.split(key)

    # small config consistent with the module: nc=3, ngf=8, nz=16, batch=2
    nc, ngf, nz, batch = 3, 8, 16, 2
    params = init_params(kp, nc=nc, ngf=ngf, nz=nz)
    prep = prepare_params(params)                  # one-time weight prep (outside jit)
    x = jax.random.normal(kx, (batch, nz, 1, 1), jnp.float32)   # NCHW latent

    fwd = jax.jit(generator_i_forward)
    out = jax.block_until_ready(fwd(x, prep))
    assert out.shape == (batch, nc, 96, 96), out.shape
    assert bool(jnp.all(jnp.isfinite(out)))

    # numerical self-check vs. pure-JAX f32 reference (bf16 MXU operands /
    # inter-layer activations with f32 accumulation give only small deviations).
    ref = jax.block_until_ready(jax.jit(reference_forward)(x, params))
    max_err = float(jnp.max(jnp.abs(out - ref)))
    assert max_err < 0.1, f"mismatch vs reference: max_err={max_err}"

    print("KERNEL_OK")
</pallas_src>

<mosaic_0001>
module attributes {stable_mosaic.version = 11 : i64} {
  func.func @_convt_bn_relu_kernel(%arg0: memref<128x576xbf16, #tpu.memory_space<vmem>>, %arg1: memref<576x72xbf16, #tpu.memory_space<vmem>>, %arg2: memref<32x1xf32, #tpu.memory_space<vmem>>, %arg3: memref<32x1xf32, #tpu.memory_space<vmem>>, %arg4: memref<128x72xbf16, #tpu.memory_space<vmem>>) attributes {dimension_semantics = [], scalar_prefetch = 0 : i64, scratch_operands = 0 : i64, tpu.core_type = #tpu.core_type<tc>} {
    %c0 = arith.constant 0 : index
    %c0_0 = arith.constant 0 : index
    %0 = vector.load %arg0[%c0, %c0_0] : memref<128x576xbf16, #tpu.memory_space<vmem>>, vector<128x576xbf16>
    %c0_1 = arith.constant 0 : index
    %c0_2 = arith.constant 0 : index
    %1 = vector.load %arg1[%c0_1, %c0_2] : memref<576x72xbf16, #tpu.memory_space<vmem>>, vector<576x72xbf16>
    %cst = arith.constant dense<0.000000e+00> : vector<128x72xf32>
    %2 = tpu.matmul %0, %1, %cst {dimension_numbers = #tpu.dot_dimension_numbers<[1], [0], [0], [1], [0, 0, 1, 1], [], []>} : vector<128x576xbf16>, vector<576x72xbf16>, vector<128x72xf32> -> vector<128x72xf32>
    %3 = vector.shape_cast %2 : vector<128x72xf32> to vector<4x32x72xf32>
    %cst_3 = arith.constant dense<0.000000e+00> : vector<4x32xf32>
    %4 = vector.multi_reduction <add>, %3, %cst_3 [2] : vector<4x32x72xf32> to vector<4x32xf32>
    %5 = vector.shape_cast %4 : vector<4x32xf32> to vector<4x32x1xf32>
    %cst_4 = arith.constant dense<0.000000e+00> : vector<32x1xf32>
    %6 = vector.multi_reduction <add>, %5, %cst_4 [0] : vector<4x32x1xf32> to vector<32x1xf32>
    %7 = vector.shape_cast %6 : vector<32x1xf32> to vector<1x32x1xf32>
    %cst_5 = arith.constant 2.880000e+02 : f32
    %8 = vector.broadcast %cst_5 : f32 to vector<1x32x1xf32>
    %9 = arith.divf %7, %8 : vector<1x32x1xf32>
    %10 = vector.broadcast %9 : vector<1x32x1xf32> to vector<4x32x72xf32>
    %11 = arith.subf %3, %10 : vector<4x32x72xf32>
    %12 = arith.mulf %11, %11 : vector<4x32x72xf32>
    %cst_6 = arith.constant dense<0.000000e+00> : vector<4x32xf32>
    %13 = vector.multi_reduction <add>, %12, %cst_6 [2] : vector<4x32x72xf32> to vector<4x32xf32>
    %14 = vector.shape_cast %13 : vector<4x32xf32> to vector<4x32x1xf32>
    %cst_7 = arith.constant dense<0.000000e+00> : vector<32x1xf32>
    %15 = vector.multi_reduction <add>, %14, %cst_7 [0] : vector<4x32x1xf32> to vector<32x1xf32>
    %16 = vector.shape_cast %15 : vector<32x1xf32> to vector<1x32x1xf32>
    %cst_8 = arith.constant 2.880000e+02 : f32
    %17 = vector.broadcast %cst_8 : f32 to vector<1x32x1xf32>
    %18 = arith.divf %16, %17 : vector<1x32x1xf32>
    %c0_9 = arith.constant 0 : index
    %c0_10 = arith.constant 0 : index
    %19 = vector.load %arg2[%c0_9, %c0_10] : memref<32x1xf32, #tpu.memory_space<vmem>>, vector<32x1xf32>
    %cst_11 = arith.constant 9.99999974E-6 : f32
    %20 = vector.broadcast %cst_11 : f32 to vector<1x32x1xf32>
    %21 = arith.addf %18, %20 : vector<1x32x1xf32>
    %22 = math.rsqrt %21 : vector<1x32x1xf32>
    %23 = vector.shape_cast %19 : vector<32x1xf32> to vector<1x32x1xf32>
    %24 = arith.mulf %23, %22 : vector<1x32x1xf32>
    %c0_12 = arith.constant 0 : index
    %c0_13 = arith.constant 0 : index
    %25 = vector.load %arg3[%c0_12, %c0_13] : memref<32x1xf32, #tpu.memory_space<vmem>>, vector<32x1xf32>
    %26 = arith.mulf %9, %24 : vector<1x32x1xf32>
    %27 = vector.shape_cast %25 : vector<32x1xf32> to vector<1x32x1xf32>
    %28 = arith.subf %27, %26 : vector<1x32x1xf32>
    %29 = vector.broadcast %24 : vector<1x32x1xf32> to vector<4x32x72xf32>
    %30 = arith.mulf %3, %29 : vector<4x32x72xf32>
    %31 = vector.broadcast %28 : vector<1x32x1xf32> to vector<4x32x72xf32>
    %32 = arith.addf %30, %31 : vector<4x32x72xf32>
    %cst_14 = arith.constant 0.000000e+00 : f32
    %33 = vector.broadcast %cst_14 : f32 to vector<4x32x72xf32>
    %34 = arith.maximumf %32, %33 : vector<4x32x72xf32>
    %35 = vector.shape_cast %34 : vector<4x32x72xf32> to vector<128x72xf32>
    %36 = arith.truncf %35 : vector<128x72xf32> to vector<128x72xbf16>
    %c0_15 = arith.constant 0 : index
    %c0_16 = arith.constant 0 : index
    %37 = vector.load %arg4[%c0_15, %c0_16] : memref<128x72xbf16, #tpu.memory_space<vmem>>, vector<128x72xbf16>
    tpu.vector_store %arg4[%c0_15, %c0_16], %36 {strides = array<i32>} : memref<128x72xbf16, #tpu.memory_space<vmem>>, vector<128x72xbf16>,
    return
  }
}

module attributes {stable_mosaic.version = 11 : i64} {
  func.func @_convt_bn_relu_kernel(%arg0: memref<64x288xbf16, #tpu.memory_space<vmem>>, %arg1: memref<288x288xbf16, #tpu.memory_space<vmem>>, %arg2: memref<16x1xf32, #tpu.memory_space<vmem>>, %arg3: memref<16x1xf32, #tpu.memory_space<vmem>>, %arg4: memref<64x288xbf16, #tpu.memory_space<vmem>>) attributes {dimension_semantics = [], scalar_prefetch = 0 : i64, scratch_operands = 0 : i64, tpu.core_type = #tpu.core_type<tc>} {
    %c0 = arith.constant 0 : index
    %c0_0 = arith.constant 0 : index
    %0 = vector.load %arg0[%c0, %c0_0] : memref<64x288xbf16, #tpu.memory_space<vmem>>, vector<64x288xbf16>
    %c0_1 = arith.constant 0 : index
    %c0_2 = arith.constant 0 : index
    %1 = vector.load %arg1[%c0_1, %c0_2] : memref<288x288xbf16, #tpu.memory_space<vmem>>, vector<288x288xbf16>
    %cst = arith.constant dense<0.000000e+00> : vector<64x288xf32>
    %2 = tpu.matmul %0, %1, %cst {dimension_numbers = #tpu.dot_dimension_numbers<[1], [0], [0], [1], [0, 0, 1, 1], [], []>} : vector<64x288xbf16>, vector<288x288xbf16>, vector<64x288xf32> -> vector<64x288xf32>
    %3 = vector.shape_cast %2 : vector<64x288xf32> to vector<4x16x288xf32>
    %cst_3 = arith.constant dense<0.000000e+00> : vector<4x16xf32>
    %4 = vector.multi_reduction <add>, %3, %cst_3 [2] : vector<4x16x288xf32> to vector<4x16xf32>
    %5 = vector.shape_cast %4 : vector<4x16xf32> to vector<4x16x1xf32>
    %cst_4 = arith.constant dense<0.000000e+00> : vector<16x1xf32>
    %6 = vector.multi_reduction <add>, %5, %cst_4 [0] : vector<4x16x1xf32> to vector<16x1xf32>
    %7 = vector.shape_cast %6 : vector<16x1xf32> to vector<1x16x1xf32>
    %cst_5 = arith.constant 1.152000e+03 : f32
    %8 = vector.broadcast %cst_5 : f32 to vector<1x16x1xf32>
    %9 = arith.divf %7, %8 : vector<1x16x1xf32>
    %10 = vector.broadcast %9 : vector<1x16x1xf32> to vector<4x16x288xf32>
    %11 = arith.subf %3, %10 : vector<4x16x288xf32>
    %12 = arith.mulf %11, %11 : vector<4x16x288xf32>
    %cst_6 = arith.constant dense<0.000000e+00> : vector<4x16xf32>
    %13 = vector.multi_reduction <add>, %12, %cst_6 [2] : vector<4x16x288xf32> to vector<4x16xf32>
    %14 = vector.shape_cast %13 : vector<4x16xf32> to vector<4x16x1xf32>
    %cst_7 = arith.constant dense<0.000000e+00> : vector<16x1xf32>
    %15 = vector.multi_reduction <add>, %14, %cst_7 [0] : vector<4x16x1xf32> to vector<16x1xf32>
    %16 = vector.shape_cast %15 : vector<16x1xf32> to vector<1x16x1xf32>
    %cst_8 = arith.constant 1.152000e+03 : f32
    %17 = vector.broadcast %cst_8 : f32 to vector<1x16x1xf32>
    %18 = arith.divf %16, %17 : vector<1x16x1xf32>
    %c0_9 = arith.constant 0 : index
    %c0_10 = arith.constant 0 : index
    %19 = vector.load %arg2[%c0_9, %c0_10] : memref<16x1xf32, #tpu.memory_space<vmem>>, vector<16x1xf32>
    %cst_11 = arith.constant 9.99999974E-6 : f32
    %20 = vector.broadcast %cst_11 : f32 to vector<1x16x1xf32>
    %21 = arith.addf %18, %20 : vector<1x16x1xf32>
    %22 = math.rsqrt %21 : vector<1x16x1xf32>
    %23 = vector.shape_cast %19 : vector<16x1xf32> to vector<1x16x1xf32>
    %24 = arith.mulf %23, %22 : vector<1x16x1xf32>
    %c0_12 = arith.constant 0 : index
    %c0_13 = arith.constant 0 : index
    %25 = vector.load %arg3[%c0_12, %c0_13] : memref<16x1xf32, #tpu.memory_space<vmem>>, vector<16x1xf32>
    %26 = arith.mulf %9, %24 : vector<1x16x1xf32>
    %27 = vector.shape_cast %25 : vector<16x1xf32> to vector<1x16x1xf32>
    %28 = arith.subf %27, %26 : vector<1x16x1xf32>
    %29 = vector.broadcast %24 : vector<1x16x1xf32> to vector<4x16x288xf32>
    %30 = arith.mulf %3, %29 : vector<4x16x288xf32>
    %31 = vector.broadcast %28 : vector<1x16x1xf32> to vector<4x16x288xf32>
    %32 = arith.addf %30, %31 : vector<4x16x288xf32>
    %cst_14 = arith.constant 0.000000e+00 : f32
    %33 = vector.broadcast %cst_14 : f32 to vector<4x16x288xf32>
    %34 = arith.maximumf %32, %33 : vector<4x16x288xf32>
    %35 = vector.shape_cast %34 : vector<4x16x288xf32> to vector<64x288xf32>
    %36 = arith.truncf %35 : vector<64x288xf32> to vector<64x288xbf16>
    %c0_15 = arith.constant 0 : index
    %c0_16 = arith.constant 0 : index
    %37 = vector.load %arg4[%c0_15, %c0_16] : memref<64x288xbf16, #tpu.memory_space<vmem>>, vector<64x288xbf16>
    tpu.vector_store %arg4[%c0_15, %c0_16], %36 {strides = array<i32>} : memref<64x288xbf16, #tpu.memory_space<vmem>>, vector<64x288xbf16>,
    return
  }
}

module attributes {stable_mosaic.version = 11 : i64} {
  func.func @_convt_bn_relu_kernel(%arg0: memref<32x144xbf16, #tpu.memory_space<vmem>>, %arg1: memref<144x1152xbf16, #tpu.memory_space<vmem>>, %arg2: memref<8x1xf32, #tpu.memory_space<vmem>>, %arg3: memref<8x1xf32, #tpu.memory_space<vmem>>, %arg4: memref<32x1152xbf16, #tpu.memory_space<vmem>>) attributes {dimension_semantics = [], scalar_prefetch = 0 : i64, scratch_operands = 0 : i64, tpu.core_type = #tpu.core_type<tc>} {
    %c0 = arith.constant 0 : index
    %c0_0 = arith.constant 0 : index
    %0 = vector.load %arg0[%c0, %c0_0] : memref<32x144xbf16, #tpu.memory_space<vmem>>, vector<32x144xbf16>
    %c0_1 = arith.constant 0 : index
    %c0_2 = arith.constant 0 : index
    %1 = vector.load %arg1[%c0_1, %c0_2] : memref<144x1152xbf16, #tpu.memory_space<vmem>>, vector<144x1152xbf16>
    %cst = arith.constant dense<0.000000e+00> : vector<32x1152xf32>
    %2 = tpu.matmul %0, %1, %cst {dimension_numbers = #tpu.dot_dimension_numbers<[1], [0], [0], [1], [0, 0, 1, 1], [], []>} : vector<32x144xbf16>, vector<144x1152xbf16>, vector<32x1152xf32> -> vector<32x1152xf32>
    %3 = vector.shape_cast %2 : vector<32x1152xf32> to vector<4x8x1152xf32>
    %cst_3 = arith.constant dense<0.000000e+00> : vector<4x8xf32>
    %4 = vector.multi_reduction <add>, %3, %cst_3 [2] : vector<4x8x1152xf32> to vector<4x8xf32>
    %5 = vector.shape_cast %4 : vector<4x8xf32> to vector<4x8x1xf32>
    %cst_4 = arith.constant dense<0.000000e+00> : vector<8x1xf32>
    %6 = vector.multi_reduction <add>, %5, %cst_4 [0] : vector<4x8x1xf32> to vector<8x1xf32>
    %7 = vector.shape_cast %6 : vector<8x1xf32> to vector<1x8x1xf32>
    %cst_5 = arith.constant 4.608000e+03 : f32
    %8 = vector.broadcast %cst_5 : f32 to vector<1x8x1xf32>
    %9 = arith.divf %7, %8 : vector<1x8x1xf32>
    %10 = vector.broadcast %9 : vector<1x8x1xf32> to vector<4x8x1152xf32>
    %11 = arith.subf %3, %10 : vector<4x8x1152xf32>
    %12 = arith.mulf %11, %11 : vector<4x8x1152xf32>
    %cst_6 = arith.constant dense<0.000000e+00> : vector<4x8xf32>
    %13 = vector.multi_reduction <add>, %12, %cst_6 [2] : vector<4x8x1152xf32> to vector<4x8xf32>
    %14 = vector.shape_cast %13 : vector<4x8xf32> to vector<4x8x1xf32>
    %cst_7 = arith.constant dense<0.000000e+00> : vector<8x1xf32>
    %15 = vector.multi_reduction <add>, %14, %cst_7 [0] : vector<4x8x1xf32> to vector<8x1xf32>
    %16 = vector.shape_cast %15 : vector<8x1xf32> to vector<1x8x1xf32>
    %cst_8 = arith.constant 4.608000e+03 : f32
    %17 = vector.broadcast %cst_8 : f32 to vector<1x8x1xf32>
    %18 = arith.divf %16, %17 : vector<1x8x1xf32>
    %c0_9 = arith.constant 0 : index
    %c0_10 = arith.constant 0 : index
    %19 = vector.load %arg2[%c0_9, %c0_10] : memref<8x1xf32, #tpu.memory_space<vmem>>, vector<8x1xf32>
    %cst_11 = arith.constant 9.99999974E-6 : f32
    %20 = vector.broadcast %cst_11 : f32 to vector<1x8x1xf32>
    %21 = arith.addf %18, %20 : vector<1x8x1xf32>
    %22 = math.rsqrt %21 : vector<1x8x1xf32>
    %23 = vector.shape_cast %19 : vector<8x1xf32> to vector<1x8x1xf32>
    %24 = arith.mulf %23, %22 : vector<1x8x1xf32>
    %c0_12 = arith.constant 0 : index
    %c0_13 = arith.constant 0 : index
    %25 = vector.load %arg3[%c0_12, %c0_13] : memref<8x1xf32, #tpu.memory_space<vmem>>, vector<8x1xf32>
    %26 = arith.mulf %9, %24 : vector<1x8x1xf32>
    %27 = vector.shape_cast %25 : vector<8x1xf32> to vector<1x8x1xf32>
    %28 = arith.subf %27, %26 : vector<1x8x1xf32>
    %29 = vector.broadcast %24 : vector<1x8x1xf32> to vector<4x8x1152xf32>
    %30 = arith.mulf %3, %29 : vector<4x8x1152xf32>
    %31 = vector.broadcast %28 : vector<1x8x1xf32> to vector<4x8x1152xf32>
    %32 = arith.addf %30, %31 : vector<4x8x1152xf32>
    %cst_14 = arith.constant 0.000000e+00 : f32
    %33 = vector.broadcast %cst_14 : f32 to vector<4x8x1152xf32>
    %34 = arith.maximumf %32, %33 : vector<4x8x1152xf32>
    %35 = vector.shape_cast %34 : vector<4x8x1152xf32> to vector<32x1152xf32>
    %36 = arith.truncf %35 : vector<32x1152xf32> to vector<32x1152xbf16>
    %c0_15 = arith.constant 0 : index
    %c0_16 = arith.constant 0 : index
    %37 = vector.load %arg4[%c0_15, %c0_16] : memref<32x1152xbf16, #tpu.memory_space<vmem>>, vector<32x1152xbf16>
    tpu.vector_store %arg4[%c0_15, %c0_16], %36 {strides = array<i32>} : memref<32x1152xbf16, #tpu.memory_space<vmem>>, vector<32x1152xbf16>,
    return
  }
}

module attributes {stable_mosaic.version = 11 : i64} {
  func.func @_convt_tanh_kernel(%arg0: memref<12x72xbf16, #tpu.memory_space<vmem>>, %arg1: memref<72x4608xbf16, #tpu.memory_space<vmem>>, %arg2: memref<12x4608xf32, #tpu.memory_space<vmem>>) attributes {dimension_semantics = [], scalar_prefetch = 0 : i64, scratch_operands = 0 : i64, tpu.core_type = #tpu.core_type<tc>} {
    %c0 = arith.constant 0 : index
    %c0_0 = arith.constant 0 : index
    %0 = vector.load %arg0[%c0, %c0_0] : memref<12x72xbf16, #tpu.memory_space<vmem>>, vector<12x72xbf16>
    %c0_1 = arith.constant 0 : index
    %c0_2 = arith.constant 0 : index
    %1 = vector.load %arg1[%c0_1, %c0_2] : memref<72x4608xbf16, #tpu.memory_space<vmem>>, vector<72x4608xbf16>
    %cst = arith.constant dense<0.000000e+00> : vector<12x4608xf32>
    %2 = tpu.matmul %0, %1, %cst {dimension_numbers = #tpu.dot_dimension_numbers<[1], [0], [0], [1], [0, 0, 1, 1], [], []>} : vector<12x72xbf16>, vector<72x4608xbf16>, vector<12x4608xf32> -> vector<12x4608xf32>
    %3 = math.tanh %2 : vector<12x4608xf32>
    %c0_3 = arith.constant 0 : index
    %c0_4 = arith.constant 0 : index
    %4 = vector.load %arg2[%c0_3, %c0_4] : memref<12x4608xf32, #tpu.memory_space<vmem>>, vector<12x4608xf32>
    tpu.vector_store %arg2[%c0_3, %c0_4], %3 {strides = array<i32>} : memref<12x4608xf32, #tpu.memory_space<vmem>>, vector<12x4608xf32>,
    return
  }
}

</mosaic_0001>

<llo_original>
// kernel: generator_i_forward.4
$region0: #{generator_i_forward.4}
  #allocation0 [shape = 'u32[]', space=smem, size = 0x4, offset = 0x4, fixed_abs, tag = 'smem constant byte address 0x4 - core index']
  #allocation1 [shape = 'u32[144,128]{1,0:T(1,128)}', space=vmem, size = 0x12000, scoped, tag = 'internal scratch']
  %s0 = inlined_call_operand.vmem [shape: bf16[128,576], index: 0, kind: input, shape index: {}]
  %s1 = inlined_call_operand.vmem [shape: bf16[576,72], index: 1, kind: input, shape index: {}]
  %s2 = inlined_call_operand.vmem [shape: f32[32,1], index: 2, kind: input, shape index: {}]
  %s3 = inlined_call_operand.vmem [shape: f32[32,1], index: 3, kind: input, shape index: {}]
  %s4 = inlined_call_operand.vmem [shape: bf16[128,72], index: 4, kind: output, shape index: {}]
  %s5 = sld [smem:[#allocation0]]
  $region26: #{generator_i_forward.4} parent=0
    _
  %s7 = ssub.s32 1, %s5
  %s8 = scalar_select 0, %s7, %s5
  // Predicated region
  $region2: #{generator_i_forward.4} parent=0 // pred_check
    _
  $region3: #{generator_i_forward.4} parent=0 // pred_check_branch
    %10 = sbr.rel (0) target = $region5
  $region4: #{generator_i_forward.4} parent=0 // pred_region
    _
  $region5: #{generator_i_forward.4} parent=0 // pred_fallthru
    _
  // Predicated region
  $region6: #{generator_i_forward.4} parent=0 // pred_check
    _
  $region7: #{generator_i_forward.4} parent=0 // pred_check_branch
    %12 = sbr.rel (0) target = $region9
  $region8: #{generator_i_forward.4} parent=0 // pred_region
    _
  $region9: #{generator_i_forward.4} parent=0 // pred_fallthru
    _
  // Predicated region
  $region10: #{generator_i_forward.4} parent=0 // pred_check
    _
  $region11: #{generator_i_forward.4} parent=0 // pred_check_branch
    %14 = sbr.rel (0) target = $region13
  $region12: #{generator_i_forward.4} parent=0 // pred_region
    _
  $region13: #{generator_i_forward.4} parent=0 // pred_fallthru
    _
  // Predicated region
  $region14: #{generator_i_forward.4} parent=0 // pred_check
    _
  $region15: #{generator_i_forward.4} parent=0 // pred_check_branch
    %16 = sbr.rel (0) target = $region17
  $region16: #{generator_i_forward.4} parent=0 // pred_region
    _
  $region17: #{generator_i_forward.4} parent=0 // pred_fallthru
    _
  %v18 = vld [vmem:[%s0] sm:$0xff]
  %v19 = vld [vmem:[%s0 + $0x8] sm:$0xff]
  %v20 = vld [vmem:[%s0 + $0x10] sm:$0xf]
  %v21 = vld [vmem:[%s0 + $0x14] sm:$0xff]
  %v22 = vld [vmem:[%s0 + $0x1c] sm:$0xff]
  %v23 = vld [vmem:[%s0 + $0x24] sm:$0xf]
  %v24 = vld [vmem:[%s0 + $0x28] sm:$0xff]
  %v25 = vld [vmem:[%s0 + $0x30] sm:$0xff]
  %v26 = vld [vmem:[%s0 + $0x38] sm:$0xf]
  %v27 = vld [vmem:[%s0 + $0x3c] sm:$0xff]
  %v28 = vld [vmem:[%s0 + $0x44] sm:$0xff]
  %v29 = vld [vmem:[%s0 + $0x4c] sm:$0xf]
  %v30 = vld [vmem:[%s0 + $0x50] sm:$0xff]
  %v31 = vld [vmem:[%s0 + $0x58] sm:$0xff]
  %v32 = vld [vmem:[%s0 + $0x60] sm:$0xf]
  %v33 = vld [vmem:[%s0 + $0x64] sm:$0xff]
  %v34 = vld [vmem:[%s0 + $0x6c] sm:$0xff]
  %v35 = vld [vmem:[%s0 + $0x74] sm:$0xf]
  %v36 = vld [vmem:[%s0 + $0x78] sm:$0xff]
  %v37 = vld [vmem:[%s0 + $0x80] sm:$0xff]
  %v38 = vld [vmem:[%s0 + $0x88] sm:$0xf]
  %v39 = vld [vmem:[%s0 + $0x8c] sm:$0xff]
  %v40 = vld [vmem:[%s0 + $0x94] sm:$0xff]
  %v41 = vld [vmem:[%s0 + $0x9c] sm:$0xf]
  %v42 = vld [vmem:[%s0 + $0xa0] sm:$0xff]
  %v43 = vld [vmem:[%s0 + $0xa8] sm:$0xff]
  %v44 = vld [vmem:[%s0 + $0xb0] sm:$0xf]
  %v45 = vld [vmem:[%s0 + $0xb4] sm:$0xff]
  %v46 = vld [vmem:[%s0 + $0xbc] sm:$0xff]
  %v47 = vld [vmem:[%s0 + $0xc4] sm:$0xf]
  %v48 = vld [vmem:[%s0 + $0xc8] sm:$0xff]
  %v49 = vld [vmem:[%s0 + $0xd0] sm:$0xff]
  %v50 = vld [vmem:[%s0 + $0xd8] sm:$0xf]
  %v51 = vld [vmem:[%s0 + $0xdc] sm:$0xff]
  %v52 = vld [vmem:[%s0 + $0xe4] sm:$0xff]
  %v53 = vld [vmem:[%s0 + $0xec] sm:$0xf]
  %v54 = vld [vmem:[%s0 + $0xf0] sm:$0xff]
  %v55 = vld [vmem:[%s0 + $0xf8] sm:$0xff]
  %v56 = vld [vmem:[%s0 + $0x100] sm:$0xf]
  %v57 = vld [vmem:[%s0 + $0x104] sm:$0xff]
  %v58 = vld [vmem:[%s0 + $0x10c] sm:$0xff]
  %v59 = vld [vmem:[%s0 + $0x114] sm:$0xf]
  %v60 = vld [vmem:[%s0 + $0x118] sm:$0xff]
  %v61 = vld [vmem:[%s0 + $0x120] sm:$0xff]
  %v62 = vld [vmem:[%s0 + $0x128] sm:$0xf]
  %v63 = vld [vmem:[%s0 + $0x12c] sm:$0xff]
  %v64 = vld [vmem:[%s0 + $0x134] sm:$0xff]
  %v65 = vld [vmem:[%s0 + $0x13c] sm:$0xf]
  %v66 = vld [vmem:[%s1] sm:$0xf]
  %v67 = vld [vmem:[%s1 + $0x4] sm:$0xf]
  %v68 = vld [vmem:[%s1 + $0x8] sm:$0xf]
  %v69 = vld [vmem:[%s1 + $0xc] sm:$0xf]
  %v70 = vld [vmem:[%s1 + $0x10] sm:$0xf]
  %v71 = vld [vmem:[%s1 + $0x14] sm:$0xf]
  %v72 = vld [vmem:[%s1 + $0x18] sm:$0xf]
  %v73 = vld [vmem:[%s1 + $0x1c] sm:$0xf]
  %v74 = vld [vmem:[%s1 + $0x20] sm:$0xf]
  %v75 = vld [vmem:[%s1 + $0x24] sm:$0xf]
  %v76 = vld [vmem:[%s1 + $0x28] sm:$0xf]
  %v77 = vld [vmem:[%s1 + $0x2c] sm:$0xf]
  %v78 = vld [vmem:[%s1 + $0x30] sm:$0xf]
  %v79 = vld [vmem:[%s1 + $0x34] sm:$0xf]
  %v80 = vld [vmem:[%s1 + $0x38] sm:$0xf]
  %v81 = vld [vmem:[%s1 + $0x3c] sm:$0xf]
  %v82 = vld [vmem:[%s1 + $0x40] sm:$0xf]
  %v83 = vld [vmem:[%s1 + $0x44] sm:$0xf]
  %v84 = vld [vmem:[%s1 + $0x48] sm:$0xf]
  %v85 = vld [vmem:[%s1 + $0x4c] sm:$0xf]
  %v86 = vld [vmem:[%s1 + $0x50] sm:$0xf]
  %v87 = vld [vmem:[%s1 + $0x54] sm:$0xf]
  %v88 = vld [vmem:[%s1 + $0x58] sm:$0xf]
  %v89 = vld [vmem:[%s1 + $0x5c] sm:$0xf]
  %v90 = vld [vmem:[%s1 + $0x60] sm:$0xf]
  %v91 = vld [vmem:[%s1 + $0x64] sm:$0xf]
  %v92 = vld [vmem:[%s1 + $0x68] sm:$0xf]
  %v93 = vld [vmem:[%s1 + $0x6c] sm:$0xf]
  %v94 = vld [vmem:[%s1 + $0x70] sm:$0xf]
  %v95 = vld [vmem:[%s1 + $0x74] sm:$0xf]
  %v96 = vld [vmem:[%s1 + $0x78] sm:$0xf]
  %v97 = vld [vmem:[%s1 + $0x7c] sm:$0xf]
  %v98 = vld [vmem:[%s1 + $0x80] sm:$0xf]
  %v99 = vld [vmem:[%s1 + $0x84] sm:$0xf]
  %v100 = vld [vmem:[%s1 + $0x88] sm:$0xf]
  %v101 = vld [vmem:[%s1 + $0x8c] sm:$0xf]
  %v102 = vld [vmem:[%s1 + $0x90] sm:$0xf]
  %v103 = vld [vmem:[%s1 + $0x94] sm:$0xf]
  %v104 = vld [vmem:[%s1 + $0x98] sm:$0xf]
  %v105 = vld [vmem:[%s1 + $0x9c] sm:$0xf]
  %v106 = vld [vmem:[%s1 + $0xa0] sm:$0xf]
  %v107 = vld [vmem:[%s1 + $0xa4] sm:$0xf]
  %v108 = vld [vmem:[%s1 + $0xa8] sm:$0xf]
  %v109 = vld [vmem:[%s1 + $0xac] sm:$0xf]
  %v110 = vld [vmem:[%s1 + $0xb0] sm:$0xf]
  %v111 = vld [vmem:[%s1 + $0xb4] sm:$0xf]
  %v112 = vld [vmem:[%s1 + $0xb8] sm:$0xf]
  %v113 = vld [vmem:[%s1 + $0xbc] sm:$0xf]
  %v114 = vld [vmem:[%s1 + $0xc0] sm:$0xf]
  %v115 = vld [vmem:[%s1 + $0xc4] sm:$0xf]
  %v116 = vld [vmem:[%s1 + $0xc8] sm:$0xf]
  %v117 = vld [vmem:[%s1 + $0xcc] sm:$0xf]
  %v118 = vld [vmem:[%s1 + $0xd0] sm:$0xf]
  %v119 = vld [vmem:[%s1 + $0xd4] sm:$0xf]
  %v120 = vld [vmem:[%s1 + $0xd8] sm:$0xf]
  %v121 = vld [vmem:[%s1 + $0xdc] sm:$0xf]
  %v122 = vld [vmem:[%s1 + $0xe0] sm:$0xf]
  %v123 = vld [vmem:[%s1 + $0xe4] sm:$0xf]
  %v124 = vld [vmem:[%s1 + $0xe8] sm:$0xf]
  %v125 = vld [vmem:[%s1 + $0xec] sm:$0xf]
  %v126 = vld [vmem:[%s1 + $0xf0] sm:$0xf]
  %v127 = vld [vmem:[%s1 + $0xf4] sm:$0xf]
  %v128 = vld [vmem:[%s1 + $0xf8] sm:$0xf]
  %v129 = vld [vmem:[%s1 + $0xfc] sm:$0xf]
  %v130 = vld [vmem:[%s1 + $0x100] sm:$0xf]
  %v131 = vld [vmem:[%s1 + $0x104] sm:$0xf]
  %v132 = vld [vmem:[%s1 + $0x108] sm:$0xf]
  %v133 = vld [vmem:[%s1 + $0x10c] sm:$0xf]
  %v134 = vld [vmem:[%s1 + $0x110] sm:$0xf]
  %v135 = vld [vmem:[%s1 + $0x114] sm:$0xf]
  %v136 = vld [vmem:[%s1 + $0x118] sm:$0xf]
  %v137 = vld [vmem:[%s1 + $0x11c] sm:$0xf]
  %v186 = vunpack.c.l.b16 %v18
  %v187 = vunpack.c.h.b16 %v18
  %v188 = vunpack.c.l.b16 %v19
  %v189 = vunpack.c.h.b16 %v19
  %v190 = vunpack.c.l.b16 %v20
  %v191 = vunpack.c.l.b16 %v21
  %v192 = vunpack.c.h.b16 %v21
  %v193 = vunpack.c.l.b16 %v22
  %v194 = vunpack.c.h.b16 %v22
  %v195 = vunpack.c.l.b16 %v23
  %v196 = vunpack.c.l.b16 %v24
  %v197 = vunpack.c.h.b16 %v24
  %v198 = vunpack.c.l.b16 %v25
  %v199 = vunpack.c.h.b16 %v25
  %v200 = vunpack.c.l.b16 %v26
  %v201 = vunpack.c.l.b16 %v27
  %v202 = vunpack.c.h.b16 %v27
  %v203 = vunpack.c.l.b16 %v28
  %v204 = vunpack.c.h.b16 %v28
  %v205 = vunpack.c.l.b16 %v29
  %v206 = vunpack.c.l.b16 %v30
  %v207 = vunpack.c.h.b16 %v30
  %v208 = vunpack.c.l.b16 %v31
  %v209 = vunpack.c.h.b16 %v31
  %v210 = vunpack.c.l.b16 %v32
  %v211 = vunpack.c.l.b16 %v33
  %v212 = vunpack.c.h.b16 %v33
  %v213 = vunpack.c.l.b16 %v34
  %v214 = vunpack.c.h.b16 %v34
  %v215 = vunpack.c.l.b16 %v35
  %v216 = vunpack.c.l.b16 %v36
  %v217 = vunpack.c.h.b16 %v36
  %v218 = vunpack.c.l.b16 %v37
  %v219 = vunpack.c.h.b16 %v37
  %v220 = vunpack.c.l.b16 %v38
  %v221 = vunpack.c.l.b16 %v39
  %v222 = vunpack.c.h.b16 %v39
  %v223 = vunpack.c.l.b16 %v40
  %v224 = vunpack.c.h.b16 %v40
  %v225 = vunpack.c.l.b16 %v41
  %v226 = vunpack.c.l.b16 %v42
  %v227 = vunpack.c.h.b16 %v42
  %v228 = vunpack.c.l.b16 %v43
  %v229 = vunpack.c.h.b16 %v43
  %v230 = vunpack.c.l.b16 %v44
  %v231 = vunpack.c.l.b16 %v45
  %v232 = vunpack.c.h.b16 %v45
  %v233 = vunpack.c.l.b16 %v46
  %v234 = vunpack.c.h.b16 %v46
  %v235 = vunpack.c.l.b16 %v47
  %v236 = vunpack.c.l.b16 %v48
  %v237 = vunpack.c.h.b16 %v48
  %v238 = vunpack.c.l.b16 %v49
  %v239 = vunpack.c.h.b16 %v49
  %v240 = vunpack.c.l.b16 %v50
  %v241 = vunpack.c.l.b16 %v51
  %v242 = vunpack.c.h.b16 %v51
  %v243 = vunpack.c.l.b16 %v52
  %v244 = vunpack.c.h.b16 %v52
  %v245 = vunpack.c.l.b16 %v53
  %v246 = vunpack.c.l.b16 %v54
  %v247 = vunpack.c.h.b16 %v54
  %v248 = vunpack.c.l.b16 %v55
  %v249 = vunpack.c.h.b16 %v55
  %v250 = vunpack.c.l.b16 %v56
  %v251 = vunpack.c.l.b16 %v57
  %v252 = vunpack.c.h.b16 %v57
  %v253 = vunpack.c.l.b16 %v58
  %v254 = vunpack.c.h.b16 %v58
  %v255 = vunpack.c.l.b16 %v59
  %v256 = vunpack.c.l.b16 %v60
  %v257 = vunpack.c.h.b16 %v60
  %v258 = vunpack.c.l.b16 %v61
  %v259 = vunpack.c.h.b16 %v61
  %v260 = vunpack.c.l.b16 %v62
  %v261 = vunpack.c.l.b16 %v63
  %v262 = vunpack.c.h.b16 %v63
  %v263 = vunpack.c.l.b16 %v64
  %v264 = vunpack.c.h.b16 %v64
  %v265 = vunpack.c.l.b16 %v65
  %v266 = vpack.c.b16 %v191, %v186
  %v267 = vpack.c.b16 %v192, %v187
  %v268 = vpack.c.b16 %v193, %v188
  %v269 = vpack.c.b16 %v194, %v189
  %v270 = vpack.c.b16 %v195, %v190
  %v271 = vpack.c.b16 %v201, %v196
  %v272 = vpack.c.b16 %v202, %v197
  %v273 = vpack.c.b16 %v203, %v198
  %v274 = vpack.c.b16 %v204, %v199
  %v275 = vpack.c.b16 %v205, %v200
  %v276 = vpack.c.b16 %v211, %v206
  %v277 = vpack.c.b16 %v212, %v207
  %v278 = vpack.c.b16 %v213, %v208
  %v279 = vpack.c.b16 %v214, %v209
  %v280 = vpack.c.b16 %v215, %v210
  %v281 = vpack.c.b16 %v221, %v216
  %v282 = vpack.c.b16 %v222, %v217
  %v283 = vpack.c.b16 %v223, %v218
  %v284 = vpack.c.b16 %v224, %v219
  %v285 = vpack.c.b16 %v225, %v220
  %v286 = vpack.c.b16 %v231, %v226
  %v287 = vpack.c.b16 %v232, %v227
  %v288 = vpack.c.b16 %v233, %v228
  %v289 = vpack.c.b16 %v234, %v229
  %v290 = vpack.c.b16 %v235, %v230
  %v291 = vpack.c.b16 %v241, %v236
  %v292 = vpack.c.b16 %v242, %v237
  %v293 = vpack.c.b16 %v243, %v238
  %v294 = vpack.c.b16 %v244, %v239
  %v295 = vpack.c.b16 %v245, %v240
  %v296 = vpack.c.b16 %v251, %v246
  %v297 = vpack.c.b16 %v252, %v247
  %v298 = vpack.c.b16 %v253, %v248
  %v299 = vpack.c.b16 %v254, %v249
  %v300 = vpack.c.b16 %v255, %v250
  %v301 = vpack.c.b16 %v261, %v256
  %v302 = vpack.c.b16 %v262, %v257
  %v303 = vpack.c.b16 %v263, %v258
  %v304 = vpack.c.b16 %v264, %v259
  %v305 = vpack.c.b16 %v265, %v260
  %v410 = vunpack.c.l.b16 %v66
  %v411 = vunpack.c.l.b16 %v67
  %v412 = vunpack.c.l.b16 %v68
  %v413 = vunpack.c.l.b16 %v69
  %v414 = vunpack.c.l.b16 %v70
  %v415 = vunpack.c.l.b16 %v71
  %v416 = vunpack.c.l.b16 %v72
  %v417 = vunpack.c.l.b16 %v73
  %v418 = vunpack.c.l.b16 %v74
  %v419 = vunpack.c.l.b16 %v75
  %v420 = vunpack.c.l.b16 %v76
  %v421 = vunpack.c.l.b16 %v77
  %v422 = vunpack.c.l.b16 %v78
  %v423 = vunpack.c.l.b16 %v79
  %v424 = vunpack.c.l.b16 %v80
  %v425 = vunpack.c.l.b16 %v81
  %v426 = vunpack.c.l.b16 %v82
  %v427 = vunpack.c.l.b16 %v83
  %v428 = vunpack.c.l.b16 %v84
  %v429 = vunpack.c.l.b16 %v85
  %v430 = vunpack.c.l.b16 %v86
  %v431 = vunpack.c.l.b16 %v87
  %v432 = vunpack.c.l.b16 %v88
  %v433 = vunpack.c.l.b16 %v89
  %v434 = vunpack.c.l.b16 %v90
  %v435 = vunpack.c.l.b16 %v91
  %v436 = vunpack.c.l.b16 %v92
  %v437 = vunpack.c.l.b16 %v93
  %v438 = vunpack.c.l.b16 %v94
  %v439 = vunpack.c.l.b16 %v95
  %v440 = vunpack.c.l.b16 %v96
  %v441 = vunpack.c.l.b16 %v97
  %v442 = vunpack.c.l.b16 %v98
  %v443 = vunpack.c.l.b16 %v99
  %v444 = vunpack.c.l.b16 %v100
  %v445 = vunpack.c.l.b16 %v101
  %v446 = vunpack.c.l.b16 %v102
  %v447 = vunpack.c.l.b16 %v103
  %v448 = vunpack.c.l.b16 %v104
  %v449 = vunpack.c.l.b16 %v105
  %v450 = vunpack.c.l.b16 %v106
  %v451 = vunpack.c.l.b16 %v107
  %v452 = vunpack.c.l.b16 %v108
  %v453 = vunpack.c.l.b16 %v109
  %v454 = vunpack.c.l.b16 %v110
  %v455 = vunpack.c.l.b16 %v111
  %v456 = vunpack.c.l.b16 %v112
  %v457 = vunpack.c.l.b16 %v113
  %v458 = vunpack.c.l.b16 %v114
  %v459 = vunpack.c.l.b16 %v115
  %v460 = vunpack.c.l.b16 %v116
  %v461 = vunpack.c.l.b16 %v117
  %v462 = vunpack.c.l.b16 %v118
  %v463 = vunpack.c.l.b16 %v119
  %v464 = vunpack.c.l.b16 %v120
  %v465 = vunpack.c.l.b16 %v121
  %v466 = vunpack.c.l.b16 %v122
  %v467 = vunpack.c.l.b16 %v123
  %v468 = vunpack.c.l.b16 %v124
  %v469 = vunpack.c.l.b16 %v125
  %v470 = vunpack.c.l.b16 %v126
  %v471 = vunpack.c.l.b16 %v127
  %v472 = vunpack.c.l.b16 %v128
  %v473 = vunpack.c.l.b16 %v129
  %v474 = vunpack.c.l.b16 %v130
  %v475 = vunpack.c.l.b16 %v131
  %v476 = vunpack.c.l.b16 %v132
  %v477 = vunpack.c.l.b16 %v133
  %v478 = vunpack.c.l.b16 %v134
  %v479 = vunpack.c.l.b16 %v135
  %v480 = vunpack.c.l.b16 %v136
  %v481 = vunpack.c.l.b16 %v137
  %v482 = vpack.c.b16 %v411, %v410
  %v483 = vpack.c.b16 %v413, %v412
  %v484 = vpack.c.b16 %v415, %v414
  %v485 = vpack.c.b16 %v417, %v416
  %v486 = vpack.c.b16 %v419, %v418
  %v487 = vpack.c.b16 %v421, %v420
  %v488 = vpack.c.b16 %v423, %v422
  %v489 = vpack.c.b16 %v425, %v424
  %v490 = vpack.c.b16 %v427, %v426
  %v491 = vpack.c.b16 %v429, %v428
  %v492 = vpack.c.b16 %v431, %v430
  %v493 = vpack.c.b16 %v433, %v432
  %v494 = vpack.c.b16 %v435, %v434
  %v495 = vpack.c.b16 %v437, %v436
  %v496 = vpack.c.b16 %v439, %v438
  %v497 = vpack.c.b16 %v441, %v440
  %v498 = vpack.c.b16 %v443, %v442
  %v499 = vpack.c.b16 %v445, %v444
  %v500 = vpack.c.b16 %v447, %v446
  %v501 = vpack.c.b16 %v449, %v448
  %v502 = vpack.c.b16 %v451, %v450
  %v503 = vpack.c.b16 %v453, %v452
  %v504 = vpack.c.b16 %v455, %v454
  %v505 = vpack.c.b16 %v457, %v456
  %v506 = vpack.c.b16 %v459, %v458
  %v507 = vpack.c.b16 %v461, %v460
  %v508 = vpack.c.b16 %v463, %v462
  %v509 = vpack.c.b16 %v465, %v464
  %v510 = vpack.c.b16 %v467, %v466
  %v511 = vpack.c.b16 %v469, %v468
  %v512 = vpack.c.b16 %v471, %v470
  %v513 = vpack.c.b16 %v473, %v472
  %v514 = vpack.c.b16 %v475, %v474
  %v515 = vpack.c.b16 %v477, %v476
  %v516 = vpack.c.b16 %v479, %v478
  %v517 = vpack.c.b16 %v481, %v480
  %vm554 = vcmask 523264
  %v556 = vsel %vm554, %v270, 0
  %v559 = vsel %vm554, %v275, 0
  %v562 = vsel %vm554, %v280, 0
  %v565 = vsel %vm554, %v285, 0
  %v568 = vsel %vm554, %v290, 0
  %v571 = vsel %vm554, %v295, 0
  %v574 = vsel %vm554, %v300, 0
  %v577 = vsel %vm554, %v305, 0
  %579 = vmatprep.subr.bf16.mxu0 0
  %580 = vmatpush1.bf16.msra.mxu0 %v482
  %581 = vmatprep.subr.bf16.mxu0 0
  %582 = vmatpush1.bf16.msra.mxu0 %v483
  %583 = vmatprep.subr.bf16.mxu0 0
  %584 = vmatpush1.bf16.msra.mxu0 %v484
  %585 = vmatprep.subr.bf16.mxu0 0
  %586 = vmatpush1.bf16.msra.mxu0 %v485
  %587 = vmatprep.subr.bf16.mxu0 0
  %588 = vmatpush1.bf16.msra.mxu0 %v486
  %589 = vmatprep.subr.bf16.mxu0 0
  %590 = vmatpush1.bf16.msra.mxu0 %v487
  %591 = vmatprep.subr.bf16.mxu0 0
  %592 = vmatpush1.bf16.msra.mxu0 %v488
  %593 = vmatprep.subr.bf16.mxu0 0
  %594 = vmatpush1.bf16.msra.mxu0 %v489
  %595 = vmatprep.subr.bf16.mxu0 0
  %596 = vmatpush1.bf16.msra.mxu0 %v490
  %597 = vmatprep.subr.bf16.mxu0 0
  %598 = vmatpush1.bf16.msra.mxu0 %v491
  %599 = vmatprep.subr.bf16.mxu0 0
  %600 = vmatpush1.bf16.msra.mxu0 %v492
  %601 = vmatprep.subr.bf16.mxu0 0
  %602 = vmatpush1.bf16.msra.mxu0 %v493
  %603 = vmatprep.subr.bf16.mxu0 0
  %604 = vmatpush1.bf16.msra.mxu0 %v494
  %605 = vmatprep.subr.bf16.mxu0 0
  %606 = vmatpush1.bf16.msra.mxu0 %v495
  %607 = vmatprep.subr.bf16.mxu0 0
  %608 = vmatpush1.bf16.msra.mxu0 %v496
  %609 = vmatprep.subr.bf16.mxu0 0
  %610 = vmatpush1.bf16.msra.mxu0 %v497
  %611 = vmatprep.mubr.bf16.mxu0 %v267
  %612 = vmatmul.mubr.bf16.gmra.mrb[0].mxu0 %v266
  %v613 = vpop.f32.mrb[0].mxu0
  %v614 = vadd.f32 0.0, %v613
  %v615 = vpop.f32.mrb[0].mxu0
  %v616 = vpop.f32.mrb[0].mxu0
  %v617 = vadd.f32 0.0, %v616
  %v618 = vpop.f32.mrb[0].mxu0
  %619 = vmatprep.mubr.bf16.mxu0 %v272
  %620 = vmatmul.mubr.bf16.gmra.mrb[0].mxu0 %v271
  %v621 = vpop.f32.mrb[0].mxu0
  %v622 = vadd.f32 0.0, %v621
  %v623 = vpop.f32.mrb[0].mxu0
  %v624 = vpop.f32.mrb[0].mxu0
  %v625 = vadd.f32 0.0, %v624
  %v626 = vpop.f32.mrb[0].mxu0
  %627 = vmatprep.mubr.bf16.mxu0 %v277
  %628 = vmatmul.mubr.bf16.gmra.mrb[0].mxu0 %v276
  %v629 = vpop.f32.mrb[0].mxu0
  %v630 = vadd.f32 0.0, %v629
  %v631 = vpop.f32.mrb[0].mxu0
  %v632 = vpop.f32.mrb[0].mxu0
  %v633 = vadd.f32 0.0, %v632
  %v634 = vpop.f32.mrb[0].mxu0
  %635 = vmatprep.mubr.bf16.mxu0 %v282
  %636 = vmatmul.mubr.bf16.gmra.mrb[0].mxu0 %v281
  %v637 = vpop.f32.mrb[0].mxu0
  %v638 = vadd.f32 0.0, %v637
  %v639 = vpop.f32.mrb[0].mxu0
  %v640 = vpop.f32.mrb[0].mxu0
  %v641 = vadd.f32 0.0, %v640
  %v642 = vpop.f32.mrb[0].mxu0
  %643 = vmatprep.mubr.bf16.mxu0 %v287
  %644 = vmatmul.mubr.bf16.gmra.mrb[0].mxu0 %v286
  %v645 = vpop.f32.mrb[0].mxu0
  %v646 = vadd.f32 0.0, %v645
  %v647 = vpop.f32.mrb[0].mxu0
  %v648 = vpop.f32.mrb[0].mxu0
  %v649 = vadd.f32 0.0, %v648
  %v650 = vpop.f32.mrb[0].mxu0
  %651 = vmatprep.mubr.bf16.mxu0 %v292
  %652 = vmatmul.mubr.bf16.gmra.mrb[0].mxu0 %v291
  %v653 = vpop.f32.mrb[0].mxu0
  %v654 = vadd.f32 0.0, %v653
  %v655 = vpop.f32.mrb[0].mxu0
  %v656 = vpop.f32.mrb[0].mxu0
  %v657 = vadd.f32 0.0, %v656
  %v658 = vpop.f32.mrb[0].mxu0
  %659 = vmatprep.mubr.bf16.mxu0 %v297
  %660 = vmatmul.mubr.bf16.gmra.mrb[0].mxu0 %v296
  %v661 = vpop.f32.mrb[0].mxu0
  %v662 = vadd.f32 0.0, %v661
  %v663 = vpop.f32.mrb[0].mxu0
  %v664 = vpop.f32.mrb[0].mxu0
  %v665 = vadd.f32 0.0, %v664
  %v666 = vpop.f32.mrb[0].mxu0
  %667 = vmatprep.mubr.bf16.mxu0 %v302
  %668 = vmatmul.mubr.bf16.gmra.mrb[0].mxu0 %v301
  %v669 = vpop.f32.mrb[0].mxu0
  %v670 = vadd.f32 0.0, %v669
  %v671 = vpop.f32.mrb[0].mxu0
  %v672 = vpop.f32.mrb[0].mxu0
  %v673 = vadd.f32 0.0, %v672
  %v674 = vpop.f32.mrb[0].mxu0
  %675 = vdwg.mxu0
  %676 = vmatprep.subr.bf16.mxu0 0
  %677 = vmatpush1.bf16.msra.mxu0 %v498
  %678 = vmatprep.subr.bf16.mxu0 0
  %679 = vmatpush1.bf16.msra.mxu0 %v499
  %680 = vmatprep.subr.bf16.mxu0 0
  %681 = vmatpush1.bf16.msra.mxu0 %v500
  %682 = vmatprep.subr.bf16.mxu0 0
  %683 = vmatpush1.bf16.msra.mxu0 %v501
  %684 = vmatprep.subr.bf16.mxu0 0
  %685 = vmatpush1.bf16.msra.mxu0 %v502
  %686 = vmatprep.subr.bf16.mxu0 0
  %687 = vmatpush1.bf16.msra.mxu0 %v503
  %688 = vmatprep.subr.bf16.mxu0 0
  %689 = vmatpush1.bf16.msra.mxu0 %v504
  %690 = vmatprep.subr.bf16.mxu0 0
  %691 = vmatpush1.bf16.msra.mxu0 %v505
  %692 = vmatprep.subr.bf16.mxu0 0
  %693 = vmatpush1.bf16.msra.mxu0 %v506
  %694 = vmatprep.subr.bf16.mxu0 0
  %695 = vmatpush1.bf16.msra.mxu0 %v507
  %696 = vmatprep.subr.bf16.mxu0 0
  %697 = vmatpush1.bf16.msra.mxu0 %v508
  %698 = vmatprep.subr.bf16.mxu0 0
  %699 = vmatpush1.bf16.msra.mxu0 %v509
  %700 = vmatprep.subr.bf16.mxu0 0
  %701 = vmatpush1.bf16.msra.mxu0 %v510
  %702 = vmatprep.subr.bf16.mxu0 0
  %703 = vmatpush1.bf16.msra.mxu0 %v511
  %704 = vmatprep.subr.bf16.mxu0 0
  %705 = vmatpush1.bf16.msra.mxu0 %v512
  %706 = vmatprep.subr.bf16.mxu0 0
  %707 = vmatpush1.bf16.msra.mxu0 %v513
  %708 = vmatprep.mubr.bf16.mxu0 %v269
  %709 = vmatmul.mubr.bf16.gmra.mrb[0].mxu0 %v268
  %v710 = vpop.f32.mrb[0].mxu0
  %v711 = vadd.f32 %v614, %v710
  %v712 = vpop.f32.mrb[0].mxu0
  %v713 = vpop.f32.mrb[0].mxu0
  %v714 = vadd.f32 %v617, %v713
  %v715 = vpop.f32.mrb[0].mxu0
  %716 = vmatprep.mubr.bf16.mxu0 %v274
  %717 = vmatmul.mubr.bf16.gmra.mrb[0].mxu0 %v273
  %v718 = vpop.f32.mrb[0].mxu0
  %v719 = vadd.f32 %v622, %v718
  %v720 = vpop.f32.mrb[0].mxu0
  %v721 = vpop.f32.mrb[0].mxu0
  %v722 = vadd.f32 %v625, %v721
  %v723 = vpop.f32.mrb[0].mxu0
  %724 = vmatprep.mubr.bf16.mxu0 %v279
  %725 = vmatmul.mubr.bf16.gmra.mrb[0].mxu0 %v278
  %v726 = vpop.f32.mrb[0].mxu0
  %v727 = vadd.f32 %v630, %v726
  %v728 = vpop.f32.mrb[0].mxu0
  %v729 = vpop.f32.mrb[0].mxu0
  %v730 = vadd.f32 %v633, %v729
  %v731 = vpop.f32.mrb[0].mxu0
  %732 = vmatprep.mubr.bf16.mxu0 %v284
  %733 = vmatmul.mubr.bf16.gmra.mrb[0].mxu0 %v283
  %v734 = vpop.f32.mrb[0].mxu0
  %v735 = vadd.f32 %v638, %v734
  %v736 = vpop.f32.mrb[0].mxu0
  %v737 = vpop.f32.mrb[0].mxu0
  %v738 = vadd.f32 %v641, %v737
  %v739 = vpop.f32.mrb[0].mxu0
  %740 = vmatprep.mubr.bf16.mxu0 %v289
  %741 = vmatmul.mubr.bf16.gmra.mrb[0].mxu0 %v288
  %v742 = vpop.f32.mrb[0].mxu0
  %v743 = vadd.f32 %v646, %v742
  %v744 = vpop.f32.mrb[0].mxu0
  %v745 = vpop.f32.mrb[0].mxu0
  %v746 = vadd.f32 %v649, %v745
  %v747 = vpop.f32.mrb[0].mxu0
  %748 = vmatprep.mubr.bf16.mxu0 %v294
  %749 = vmatmul.mubr.bf16.gmra.mrb[0].mxu0 %v293
  %v750 = vpop.f32.mrb[0].mxu0
  %v751 = vadd.f32 %v654, %v750
  %v752 = vpop.f32.mrb[0].mxu0
  %v753 = vpop.f32.mrb[0].mxu0
  %v754 = vadd.f32 %v657, %v753
  %v755 = vpop.f32.mrb[0].mxu0
  %756 = vmatprep.mubr.bf16.mxu0 %v299
  %757 = vmatmul.mubr.bf16.gmra.mrb[0].mxu0 %v298
  %v758 = vpop.f32.mrb[0].mxu0
  %v759 = vadd.f32 %v662, %v758
  %v760 = vpop.f32.mrb[0].mxu0
  %v761 = vpop.f32.mrb[0].mxu0
  %v762 = vadd.f32 %v665, %v761
  %v763 = vpop.f32.mrb[0].mxu0
  %764 = vmatprep.mubr.bf16.mxu0 %v304
  %765 = vmatmul.mubr.bf16.gmra.mrb[0].mxu0 %v303
  %v766 = vpop.f32.mrb[0].mxu0
  %v767 = vadd.f32 %v670, %v766
  %v768 = vpop.f32.mrb[0].mxu0
  %v769 = vpop.f32.mrb[0].mxu0
  %v770 = vadd.f32 %v673, %v769
  %v771 = vpop.f32.mrb[0].mxu0
  %772 = vdwg.mxu0
  %773 = vmatprep.subr.bf16.mxu0 0
  %774 = vmatpush1.bf16.msra.mxu0 %v514
  %775 = vmatprep.subr.bf16.mxu0 0
  %776 = vmatpush1.bf16.msra.mxu0 %v515
  %777 = vmatprep.subr.bf16.mxu0 0
  %778 = vmatpush1.bf16.msra.mxu0 %v516
  %779 = vmatprep.subr.bf16.mxu0 0
  %780 = vmatpush1.bf16.msra.mxu0 %v517
  %781 = vmatprep.subr.bf16.mxu0 0
  %782 = vmatpush1.bf16.msra.mxu0 0
  %783 = vmatprep.subr.bf16.mxu0 0
  %784 = vmatpush1.bf16.msra.mxu0 0
  %785 = vmatprep.subr.bf16.mxu0 0
  %786 = vmatpush1.bf16.msra.mxu0 0
  %787 = vmatprep.subr.bf16.mxu0 0
  %788 = vmatpush1.bf16.msra.mxu0 0
  %789 = vmatprep.subr.bf16.mxu0 0
  %790 = vmatpush1.bf16.msra.mxu0 0
  %791 = vmatprep.subr.bf16.mxu0 0
  %792 = vmatpush1.bf16.msra.mxu0 0
  %793 = vmatprep.subr.bf16.mxu0 0
  %794 = vmatpush1.bf16.msra.mxu0 0
  %795 = vmatprep.subr.bf16.mxu0 0
  %796 = vmatpush1.bf16.msra.mxu0 0
  %797 = vmatprep.subr.bf16.mxu0 0
  %798 = vmatpush1.bf16.msra.mxu0 0
  %799 = vmatprep.subr.bf16.mxu0 0
  %800 = vmatpush1.bf16.msra.mxu0 0
  %801 = vmatprep.subr.bf16.mxu0 0
  %802 = vmatpush1.bf16.msra.mxu0 0
  %803 = vmatprep.subr.bf16.mxu0 0
  %804 = vmatpush1.bf16.msra.mxu0 0
  %805 = vmatprep.mubr.bf16.mxu0 0
  %806 = vmatmul.mubr.bf16.gmra.mrb[0].mxu0 %v556
  %v807 = vpop.f32.mrb[0].mxu0
  %v808 = vadd.f32 %v711, %v807
  %v809 = vpop.f32.mrb[0].mxu0
  %v810 = vpop.f32.mrb[0].mxu0
  %v811 = vadd.f32 %v714, %v810
  %v812 = vpop.f32.mrb[0].mxu0
  %813 = vmatprep.mubr.bf16.mxu0 0
  %814 = vmatmul.mubr.bf16.gmra.mrb[0].mxu0 %v559
  %v815 = vpop.f32.mrb[0].mxu0
  %v816 = vadd.f32 %v719, %v815
  %v817 = vpop.f32.mrb[0].mxu0
  %v818 = vpop.f32.mrb[0].mxu0
  %v819 = vadd.f32 %v722, %v818
  %v820 = vpop.f32.mrb[0].mxu0
  %821 = vmatprep.mubr.bf16.mxu0 0
  %822 = vmatmul.mubr.bf16.gmra.mrb[0].mxu0 %v562
  %v823 = vpop.f32.mrb[0].mxu0
  %v824 = vadd.f32 %v727, %v823
  %v825 = vpop.f32.mrb[0].mxu0
  %v826 = vpop.f32.mrb[0].mxu0
  %v827 = vadd.f32 %v730, %v826
  %v828 = vpop.f32.mrb[0].mxu0
  %829 = vmatprep.mubr.bf16.mxu0 0
  %830 = vmatmul.mubr.bf16.gmra.mrb[0].mxu0 %v565
  %v831 = vpop.f32.mrb[0].mxu0
  %v832 = vadd.f32 %v735, %v831
  %v833 = vpop.f32.mrb[0].mxu0
  %v834 = vpop.f32.mrb[0].mxu0
  %v835 = vadd.f32 %v738, %v834
  %v836 = vpop.f32.mrb[0].mxu0
  %837 = vmatprep.mubr.bf16.mxu0 0
  %838 = vmatmul.mubr.bf16.gmra.mrb[0].mxu0 %v568
  %v839 = vpop.f32.mrb[0].mxu0
  %v840 = vadd.f32 %v743, %v839
  %v841 = vpop.f32.mrb[0].mxu0
  %v842 = vpop.f32.mrb[0].mxu0
  %v843 = vadd.f32 %v746, %v842
  %v844 = vpop.f32.mrb[0].mxu0
  %845 = vmatprep.mubr.bf16.mxu0 0
  %846 = vmatmul.mubr.bf16.gmra.mrb[0].mxu0 %v571
  %v847 = vpop.f32.mrb[0].mxu0
  %v848 = vadd.f32 %v751, %v847
  %v849 = vpop.f32.mrb[0].mxu0
  %v850 = vpop.f32.mrb[0].mxu0
  %v851 = vadd.f32 %v754, %v850
  %v852 = vpop.f32.mrb[0].mxu0
  %853 = vmatprep.mubr.bf16.mxu0 0
  %854 = vmatmul.mubr.bf16.gmra.mrb[0].mxu0 %v574
  %v855 = vpop.f32.mrb[0].mxu0
  %v856 = vadd.f32 %v759, %v855
  %v857 = vpop.f32.mrb[0].mxu0
  %v858 = vpop.f32.mrb[0].mxu0
  %v859 = vadd.f32 %v762, %v858
  %v860 = vpop.f32.mrb[0].mxu0
  %861 = vmatprep.mubr.bf16.mxu0 0
  %862 = vmatmul.mubr.bf16.gmra.mrb[0].mxu0 %v577
  %v863 = vpop.f32.mrb[0].mxu0
  %v864 = vadd.f32 %v767, %v863
  %v865 = vpop.f32.mrb[0].mxu0
  %v866 = vpop.f32.mrb[0].mxu0
  %v867 = vadd.f32 %v770, %v866
  %v868 = vpop.f32.mrb[0].mxu0
  %869 = vdwg.mxu0
  %vm870 = vcmask 588800
  %v871 = vsel %vm870, %v808, 0.0
  %872 = vadd.xlane.f32.xlu0 %v871
  %v873 = vpop.xlane.xlu0 %872
  %v874 = vsel %vm870, %v811, 0.0
  %875 = vadd.xlane.f32.xlu0 %v874
  %v876 = vpop.xlane.xlu0 %875
  %v877 = vsel %vm870, %v816, 0.0
  %878 = vadd.xlane.f32.xlu0 %v877
  %v879 = vpop.xlane.xlu0 %878
  %v880 = vsel %vm870, %v819, 0.0
  %881 = vadd.xlane.f32.xlu0 %v880
  %v882 = vpop.xlane.xlu0 %881
  %v883 = vsel %vm870, %v824, 0.0
  %884 = vadd.xlane.f32.xlu0 %v883
  %v885 = vpop.xlane.xlu0 %884
  %v886 = vsel %vm870, %v827, 0.0
  %887 = vadd.xlane.f32.xlu0 %v886
  %v888 = vpop.xlane.xlu0 %887
  %v889 = vsel %vm870, %v832, 0.0
  %890 = vadd.xlane.f32.xlu0 %v889
  %v891 = vpop.xlane.xlu0 %890
  %v892 = vsel %vm870, %v835, 0.0
  %893 = vadd.xlane.f32.xlu0 %v892
  %v894 = vpop.xlane.xlu0 %893
  %v895 = vsel %vm870, %v840, 0.0
  %896 = vadd.xlane.f32.xlu0 %v895
  %v897 = vpop.xlane.xlu0 %896
  %v898 = vsel %vm870, %v843, 0.0
  %899 = vadd.xlane.f32.xlu0 %v898
  %v900 = vpop.xlane.xlu0 %899
  %v901 = vsel %vm870, %v848, 0.0
  %902 = vadd.xlane.f32.xlu0 %v901
  %v903 = vpop.xlane.xlu0 %902
  %v904 = vsel %vm870, %v851, 0.0
  %905 = vadd.xlane.f32.xlu0 %v904
  %v906 = vpop.xlane.xlu0 %905
  %v907 = vsel %vm870, %v856, 0.0
  %908 = vadd.xlane.f32.xlu0 %v907
  %v909 = vpop.xlane.xlu0 %908
  %v910 = vsel %vm870, %v859, 0.0
  %911 = vadd.xlane.f32.xlu0 %v910
  %v912 = vpop.xlane.xlu0 %911
  %v913 = vsel %vm870, %v864, 0.0
  %914 = vadd.xlane.f32.xlu0 %v913
  %v915 = vpop.xlane.xlu0 %914
  %v916 = vsel %vm870, %v867, 0.0
  %917 = vadd.xlane.f32.xlu0 %v916
  %v918 = vpop.xlane.xlu0 %917
  %v919 = vadd.f32 %v873, %v885
  %v920 = vadd.f32 %v919, %v897
  %v921 = vadd.f32 %v920, %v909
  %v922 = vadd.f32 %v876, %v888
  %v923 = vadd.f32 %v922, %v900
  %v924 = vadd.f32 %v923, %v912
  %v925 = vadd.f32 %v879, %v891
  %v926 = vadd.f32 %v925, %v903
  %v927 = vadd.f32 %v926, %v915
  %v928 = vadd.f32 %v882, %v894
  %v929 = vadd.f32 %v928, %v906
  %v930 = vadd.f32 %v929, %v918
  %v931 = vrcp.pop 288.0
  %v932 = vmul.f32 %v921, %v931
  %v933 = vmul.f32 %v924, %v931
  %v934 = vmul.f32 %v927, %v931
  %v935 = vmul.f32 %v930, %v931
  %v936 = vsub.f32 %v808, %v932
  %v937 = vsub.f32 %v811, %v933
  %v938 = vsub.f32 %v816, %v934
  %v939 = vsub.f32 %v819, %v935
  %v940 = vsub.f32 %v824, %v932
  %v941 = vsub.f32 %v827, %v933
  %v942 = vsub.f32 %v832, %v934
  %v943 = vsub.f32 %v835, %v935
  %v944 = vsub.f32 %v840, %v932
  %v945 = vsub.f32 %v843, %v933
  %v946 = vsub.f32 %v848, %v934
  %v947 = vsub.f32 %v851, %v935
  %v948 = vsub.f32 %v856, %v932
  %v949 = vsub.f32 %v859, %v933
  %v950 = vsub.f32 %v864, %v934
  %v951 = vsub.f32 %v867, %v935
  %v952 = vmul.f32 %v936, %v936
  %v953 = vmul.f32 %v937, %v937
  %v954 = vmul.f32 %v938, %v938
  %v955 = vmul.f32 %v939, %v939
  %v956 = vmul.f32 %v940, %v940
  %v957 = vmul.f32 %v941, %v941
  %v958 = vmul.f32 %v942, %v942
  %v959 = vmul.f32 %v943, %v943
  %v960 = vmul.f32 %v944, %v944
  %v961 = vmul.f32 %v945, %v945
  %v962 = vmul.f32 %v946, %v946
  %v963 = vmul.f32 %v947, %v947
  %v964 = vmul.f32 %v948, %v948
  %v965 = vmul.f32 %v949, %v949
  %v966 = vmul.f32 %v950, %v950
  %v967 = vmul.f32 %v951, %v951
  %v968 = vsel %vm870, %v952, 0.0
  %969 = vadd.xlane.f32.xlu0 %v968
  %v970 = vpop.xlane.xlu0 %969
  %v971 = vsel %vm870, %v953, 0.0
  %972 = vadd.xlane.f32.xlu0 %v971
  %v973 = vpop.xlane.xlu0 %972
  %v974 = vsel %vm870, %v954, 0.0
  %975 = vadd.xlane.f32.xlu0 %v974
  %v976 = vpop.xlane.xlu0 %975
  %v977 = vsel %vm870, %v955, 0.0
  %978 = vadd.xlane.f32.xlu0 %v977
  %v979 = vpop.xlane.xlu0 %978
  %v980 = vsel %vm870, %v956, 0.0
  %981 = vadd.xlane.f32.xlu0 %v980
  %v982 = vpop.xlane.xlu0 %981
  %v983 = vsel %vm870, %v957, 0.0
  %984 = vadd.xlane.f32.xlu0 %v983
  %v985 = vpop.xlane.xlu0 %984
  %v986 = vsel %vm870, %v958, 0.0
  %987 = vadd.xlane.f32.xlu0 %v986
  %v988 = vpop.xlane.xlu0 %987
  %v989 = vsel %vm870, %v959, 0.0
  %990 = vadd.xlane.f32.xlu0 %v989
  %v991 = vpop.xlane.xlu0 %990
  %v992 = vsel %vm870, %v960, 0.0
  %993 = vadd.xlane.f32.xlu0 %v992
  %v994 = vpop.xlane.xlu0 %993
  %v995 = vsel %vm870, %v961, 0.0
  %996 = vadd.xlane.f32.xlu0 %v995
  %v997 = vpop.xlane.xlu0 %996
  %v998 = vsel %vm870, %v962, 0.0
  %999 = vadd.xlane.f32.xlu0 %v998
  %v1000 = vpop.xlane.xlu0 %999
  %v1001 = vsel %vm870, %v963, 0.0
  %1002 = vadd.xlane.f32.xlu0 %v1001
  %v1003 = vpop.xlane.xlu0 %1002
  %v1004 = vsel %vm870, %v964, 0.0
  %1005 = vadd.xlane.f32.xlu0 %v1004
  %v1006 = vpop.xlane.xlu0 %1005
  %v1007 = vsel %vm870, %v965, 0.0
  %1008 = vadd.xlane.f32.xlu0 %v1007
  %v1009 = vpop.xlane.xlu0 %1008
  %v1010 = vsel %vm870, %v966, 0.0
  %1011 = vadd.xlane.f32.xlu0 %v1010
  %v1012 = vpop.xlane.xlu0 %1011
  %v1013 = vsel %vm870, %v967, 0.0
  %1014 = vadd.xlane.f32.xlu0 %v1013
  %v1015 = vpop.xlane.xlu0 %1014
  %v1016 = vadd.f32 %v970, %v982
  %v1017 = vadd.f32 %v1016, %v994
  %v1018 = vadd.f32 %v1017, %v1006
  %v1019 = vadd.f32 %v973, %v985
  %v1020 = vadd.f32 %v1019, %v997
  %v1021 = vadd.f32 %v1020, %v1009
  %v1022 = vadd.f32 %v976, %v988
  %v1023 = vadd.f32 %v1022, %v1000
  %v1024 = vadd.f32 %v1023, %v1012
  %v1025 = vadd.f32 %v979, %v991
  %v1026 = vadd.f32 %v1025, %v1003
  %v1027 = vadd.f32 %v1026, %v1015
  %v1028 = vmul.f32 %v1018, %v931
  %v1029 = vmul.f32 %v1021, %v931
  %v1030 = vmul.f32 %v1024, %v931
  %v1031 = vmul.f32 %v1027, %v931
  %v1032 = vld [vmem:[%s2] sm:$0xff]
  %v1033 = vld [vmem:[%s2 + $0x8] sm:$0xff]
  %v1034 = vld [vmem:[%s2 + $0x10] sm:$0xff]
  %v1035 = vld [vmem:[%s2 + $0x18] sm:$0xff]
  %v1036 = vadd.f32 %v1028, 1e-05
  %v1037 = vadd.f32 %v1029, 1e-05
  %v1038 = vadd.f32 %v1030, 1e-05
  %v1039 = vadd.f32 %v1031, 1e-05
  %v1040 = vrsqrt.pop %v1036
  %v1041 = vrsqrt.pop %v1037
  %v1042 = vrsqrt.pop %v1038
  %v1043 = vrsqrt.pop %v1039
  %v1044 = vmul.f32 %v1032, %v1040
  %v1045 = vmul.f32 %v1033, %v1041
  %v1046 = vmul.f32 %v1034, %v1042
  %v1047 = vmul.f32 %v1035, %v1043
  %v1048 = vld [vmem:[%s3] sm:$0xff]
  %v1049 = vld [vmem:[%s3 + $0x8] sm:$0xff]
  %v1050 = vld [vmem:[%s3 + $0x10] sm:$0xff]
  %v1051 = vld [vmem:[%s3 + $0x18] sm:$0xff]
  %v1052 = vmul.f32 %v932, %v1044
  %v1053 = vmul.f32 %v933, %v1045
  %v1054 = vmul.f32 %v934, %v1046
  %v1055 = vmul.f32 %v935, %v1047
  %v1056 = vsub.f32 %v1048, %v1052
  %v1057 = vsub.f32 %v1049, %v1053
  %v1058 = vsub.f32 %v1050, %v1054
  %v1059 = vsub.f32 %v1051, %v1055
  %1061 = vset.pattern.permute.xlu0 0
  %1062 = vperm.xlu0 %1061, %v1044
  %v1063 = vpop.permute.xlu0 %1062
  %1066 = vset.pattern.permute.xlu0 0
  %1067 = vperm.xlu0 %1066, %v1045
  %v1068 = vpop.permute.xlu0 %1067
  %1071 = vset.pattern.permute.xlu0 0
  %1072 = vperm.xlu0 %1071, %v1046
  %v1073 = vpop.permute.xlu0 %1072
  %1076 = vset.pattern.permute.xlu0 0
  %1077 = vperm.xlu0 %1076, %v1047
  %v1078 = vpop.permute.xlu0 %1077
  %v1080 = vmul.f32 %v808, %v1063
  %v1081 = vmul.f32 %v811, %v1068
  %v1082 = vmul.f32 %v816, %v1073
  %v1083 = vmul.f32 %v819, %v1078
  %v1084 = vmul.f32 %v824, %v1063
  %v1085 = vmul.f32 %v827, %v1068
  %v1086 = vmul.f32 %v832, %v1073
  %v1087 = vmul.f32 %v835, %v1078
  %v1088 = vmul.f32 %v840, %v1063
  %v1089 = vmul.f32 %v843, %v1068
  %v1090 = vmul.f32 %v848, %v1073
  %v1091 = vmul.f32 %v851, %v1078
  %v1092 = vmul.f32 %v856, %v1063
  %v1093 = vmul.f32 %v859, %v1068
  %v1094 = vmul.f32 %v864, %v1073
  %v1095 = vmul.f32 %v867, %v1078
  %1097 = vset.pattern.permute.xlu0 0
  %1098 = vperm.xlu0 %1097, %v1056
  %v1099 = vpop.permute.xlu0 %1098
  %1102 = vset.pattern.permute.xlu0 0
  %1103 = vperm.xlu0 %1102, %v1057
  %v1104 = vpop.permute.xlu0 %1103
  %1107 = vset.pattern.permute.xlu0 0
  %1108 = vperm.xlu0 %1107, %v1058
  %v1109 = vpop.permute.xlu0 %1108
  %1112 = vset.pattern.permute.xlu0 0
  %1113 = vperm.xlu0 %1112, %v1059
  %v1114 = vpop.permute.xlu0 %1113
  %v1116 = vadd.f32 %v1080, %v1099
  %v1117 = vadd.f32 %v1081, %v1104
  %v1118 = vadd.f32 %v1082, %v1109
  %v1119 = vadd.f32 %v1083, %v1114
  %v1120 = vadd.f32 %v1084, %v1099
  %v1121 = vadd.f32 %v1085, %v1104
  %v1122 = vadd.f32 %v1086, %v1109
  %v1123 = vadd.f32 %v1087, %v1114
  %v1124 = vadd.f32 %v1088, %v1099
  %v1125 = vadd.f32 %v1089, %v1104
  %v1126 = vadd.f32 %v1090, %v1109
  %v1127 = vadd.f32 %v1091, %v1114
  %v1128 = vadd.f32 %v1092, %v1099
  %v1129 = vadd.f32 %v1093, %v1104
  %v1130 = vadd.f32 %v1094, %v1109
  %v1131 = vadd.f32 %v1095, %v1114
  %v1132 = vmax.f32 %v1116, 0.0
  %v1133 = vmax.f32 %v1117, 0.0
  %v1134 = vmax.f32 %v1118, 0.0
  %v1135 = vmax.f32 %v1119, 0.0
  %v1136 = vmax.f32 %v1120, 0.0
  %v1137 = vmax.f32 %v1121, 0.0
  %v1138 = vmax.f32 %v1122, 0.0
  %v1139 = vmax.f32 %v1123, 0.0
  %v1140 = vmax.f32 %v1124, 0.0
  %v1141 = vmax.f32 %v1125, 0.0
  %v1142 = vmax.f32 %v1126, 0.0
  %v1143 = vmax.f32 %v1127, 0.0
  %v1144 = vmax.f32 %v1128, 0.0
  %v1145 = vmax.f32 %v1129, 0.0
  %v1146 = vmax.f32 %v1130, 0.0
  %v1147 = vmax.f32 %v1131, 0.0
  %v1148 = vpack.c.bf16 %v1133, %v1132
  %v1149 = vpack.c.bf16 %v1135, %v1134
  %v1150 = vpack.c.bf16 %v1137, %v1136
  %v1151 = vpack.c.bf16 %v1139, %v1138
  %v1152 = vpack.c.bf16 %v1141, %v1140
  %v1153 = vpack.c.bf16 %v1143, %v1142
  %v1154 = vpack.c.bf16 %v1145, %v1144
  %v1155 = vpack.c.bf16 %v1147, %v1146
  %v1164 = vunpack.c.l.b16 %v1148
  %v1165 = vunpack.c.h.b16 %v1148
  %v1166 = vunpack.c.l.b16 %v1149
  %v1167 = vunpack.c.h.b16 %v1149
  %v1168 = vunpack.c.l.b16 %v1150
  %v1169 = vunpack.c.h.b16 %v1150
  %v1170 = vunpack.c.l.b16 %v1151
  %v1171 = vunpack.c.h.b16 %v1151
  %v1172 = vunpack.c.l.b16 %v1152
  %v1173 = vunpack.c.h.b16 %v1152
  %v1174 = vunpack.c.l.b16 %v1153
  %v1175 = vunpack.c.h.b16 %v1153
  %v1176 = vunpack.c.l.b16 %v1154
  %v1177 = vunpack.c.h.b16 %v1154
  %v1178 = vunpack.c.l.b16 %v1155
  %v1179 = vunpack.c.h.b16 %v1155
  %v1180 = vpack.c.b16 %v1164, %v1164
  %v1181 = vpack.c.b16 %v1165, %v1165
  %v1182 = vpack.c.b16 %v1166, %v1166
  %v1183 = vpack.c.b16 %v1167, %v1167
  %v1184 = vpack.c.b16 %v1168, %v1168
  %v1185 = vpack.c.b16 %v1169, %v1169
  %v1186 = vpack.c.b16 %v1170, %v1170
  %v1187 = vpack.c.b16 %v1171, %v1171
  %v1188 = vpack.c.b16 %v1172, %v1172
  %v1189 = vpack.c.b16 %v1173, %v1173
  %v1190 = vpack.c.b16 %v1174, %v1174
  %v1191 = vpack.c.b16 %v1175, %v1175
  %v1192 = vpack.c.b16 %v1176, %v1176
  %v1193 = vpack.c.b16 %v1177, %v1177
  %v1194 = vpack.c.b16 %v1178, %v1178
  %v1195 = vpack.c.b16 %v1179, %v1179
  %vm1212 = vcmask 584704
  %1213 = vst.msk [vmem:[%s4] sm:$0xf] %vm1212, %v1180
  %1214 = vst.msk [vmem:[%s4 + $0x4] sm:$0xf] %vm1212, %v1181
  %1215 = vst.msk [vmem:[%s4 + $0x8] sm:$0xf] %vm1212, %v1182
  %1216 = vst.msk [vmem:[%s4 + $0xc] sm:$0xf] %vm1212, %v1183
  %1217 = vst.msk [vmem:[%s4 + $0x10] sm:$0xf] %vm1212, %v1184
  %1218 = vst.msk [vmem:[%s4 + $0x14] sm:$0xf] %vm1212, %v1185
  %1219 = vst.msk [vmem:[%s4 + $0x18] sm:$0xf] %vm1212, %v1186
  %1220 = vst.msk [vmem:[%s4 + $0x1c] sm:$0xf] %vm1212, %v1187
  %1221 = vst.msk [vmem:[%s4 + $0x20] sm:$0xf] %vm1212, %v1188
  %1222 = vst.msk [vmem:[%s4 + $0x24] sm:$0xf] %vm1212, %v1189
  %1223 = vst.msk [vmem:[%s4 + $0x28] sm:$0xf] %vm1212, %v1190
  %1224 = vst.msk [vmem:[%s4 + $0x2c] sm:$0xf] %vm1212, %v1191
  %1225 = vst.msk [vmem:[%s4 + $0x30] sm:$0xf] %vm1212, %v1192
  %1226 = vst.msk [vmem:[%s4 + $0x34] sm:$0xf] %vm1212, %v1193
  %1227 = vst.msk [vmem:[%s4 + $0x38] sm:$0xf] %vm1212, %v1194
  %1228 = vst.msk [vmem:[%s4 + $0x3c] sm:$0xf] %vm1212, %v1195
  // Predicated region
  $region18: #{generator_i_forward.4} parent=0 // pred_check
    _
  $region19: #{generator_i_forward.4} parent=0 // pred_check_branch
    %1230 = sbr.rel (0) target = $region21
  $region20: #{generator_i_forward.4} parent=0 // pred_region
    _
  $region21: #{generator_i_forward.4} parent=0 // pred_fallthru
    _
  // Predicated region
  $region22: #{generator_i_forward.4} parent=0 // pred_check
    _
  $region23: #{generator_i_forward.4} parent=0 // pred_check_branch
    %1232 = sbr.rel (0) target = $region25
  $region24: #{generator_i_forward.4} parent=0 // pred_region
    _
  $region25: #{generator_i_forward.4} parent=0 // pred_fallthru
    _

// kernel: generator_i_forward.5
$region0: #{generator_i_forward.5}
  #allocation0 [shape = 'u32[]', space=smem, size = 0x4, offset = 0x4, fixed_abs, tag = 'smem constant byte address 0x4 - core index']
  #allocation1 [shape = 'u32[144,128]{1,0:T(1,128)}', space=vmem, size = 0x12000, scoped, tag = 'internal scratch']
  %s0 = inlined_call_operand.vmem [shape: bf16[64,288], index: 0, kind: input, shape index: {}]
  %s1 = inlined_call_operand.vmem [shape: bf16[288,288], index: 1, kind: input, shape index: {}]
  %s2 = inlined_call_operand.vmem [shape: f32[16,1], index: 2, kind: input, shape index: {}]
  %s3 = inlined_call_operand.vmem [shape: f32[16,1], index: 3, kind: input, shape index: {}]
  %s4 = inlined_call_operand.vmem [shape: bf16[64,288], index: 4, kind: output, shape index: {}]
  %s5 = sld [smem:[#allocation0]]
  $region26: #{generator_i_forward.5} parent=0
    _
  %s7 = ssub.s32 1, %s5
  %s8 = scalar_select 0, %s7, %s5
  // Predicated region
  $region2: #{generator_i_forward.5} parent=0 // pred_check
    _
  $region3: #{generator_i_forward.5} parent=0 // pred_check_branch
    %10 = sbr.rel (0) target = $region5
  $region4: #{generator_i_forward.5} parent=0 // pred_region
    _
  $region5: #{generator_i_forward.5} parent=0 // pred_fallthru
    _
  // Predicated region
  $region6: #{generator_i_forward.5} parent=0 // pred_check
    _
  $region7: #{generator_i_forward.5} parent=0 // pred_check_branch
    %12 = sbr.rel (0) target = $region9
  $region8: #{generator_i_forward.5} parent=0 // pred_region
    _
  $region9: #{generator_i_forward.5} parent=0 // pred_fallthru
    _
  // Predicated region
  $region10: #{generator_i_forward.5} parent=0 // pred_check
    _
  $region11: #{generator_i_forward.5} parent=0 // pred_check_branch
    %14 = sbr.rel (0) target = $region13
  $region12: #{generator_i_forward.5} parent=0 // pred_region
    _
  $region13: #{generator_i_forward.5} parent=0 // pred_fallthru
    _
  // Predicated region
  $region14: #{generator_i_forward.5} parent=0 // pred_check
    _
  $region15: #{generator_i_forward.5} parent=0 // pred_check_branch
    %16 = sbr.rel (0) target = $region17
  $region16: #{generator_i_forward.5} parent=0 // pred_region
    _
  $region17: #{generator_i_forward.5} parent=0 // pred_fallthru
    _
  %v18 = vld [vmem:[%s0] sm:$0xff]
  %v19 = vld [vmem:[%s0 + $0x8] sm:$0xf]
  %v20 = vld [vmem:[%s0 + $0xc] sm:$0xff]
  %v21 = vld [vmem:[%s0 + $0x14] sm:$0xf]
  %v22 = vld [vmem:[%s0 + $0x18] sm:$0xff]
  %v23 = vld [vmem:[%s0 + $0x20] sm:$0xf]
  %v24 = vld [vmem:[%s0 + $0x24] sm:$0xff]
  %v25 = vld [vmem:[%s0 + $0x2c] sm:$0xf]
  %v26 = vld [vmem:[%s0 + $0x30] sm:$0xff]
  %v27 = vld [vmem:[%s0 + $0x38] sm:$0xf]
  %v28 = vld [vmem:[%s0 + $0x3c] sm:$0xff]
  %v29 = vld [vmem:[%s0 + $0x44] sm:$0xf]
  %v30 = vld [vmem:[%s0 + $0x48] sm:$0xff]
  %v31 = vld [vmem:[%s0 + $0x50] sm:$0xf]
  %v32 = vld [vmem:[%s0 + $0x54] sm:$0xff]
  %v33 = vld [vmem:[%s0 + $0x5c] sm:$0xf]
  %v34 = vld [vmem:[%s1] sm:$0xff]
  %v35 = vld [vmem:[%s1 + $0x8] sm:$0xf]
  %v36 = vld [vmem:[%s1 + $0xc] sm:$0xff]
  %v37 = vld [vmem:[%s1 + $0x14] sm:$0xf]
  %v38 = vld [vmem:[%s1 + $0x18] sm:$0xff]
  %v39 = vld [vmem:[%s1 + $0x20] sm:$0xf]
  %v40 = vld [vmem:[%s1 + $0x24] sm:$0xff]
  %v41 = vld [vmem:[%s1 + $0x2c] sm:$0xf]
  %v42 = vld [vmem:[%s1 + $0x30] sm:$0xff]
  %v43 = vld [vmem:[%s1 + $0x38] sm:$0xf]
  %v44 = vld [vmem:[%s1 + $0x3c] sm:$0xff]
  %v45 = vld [vmem:[%s1 + $0x44] sm:$0xf]
  %v46 = vld [vmem:[%s1 + $0x48] sm:$0xff]
  %v47 = vld [vmem:[%s1 + $0x50] sm:$0xf]
  %v48 = vld [vmem:[%s1 + $0x54] sm:$0xff]
  %v49 = vld [vmem:[%s1 + $0x5c] sm:$0xf]
  %v50 = vld [vmem:[%s1 + $0x60] sm:$0xff]
  %v51 = vld [vmem:[%s1 + $0x68] sm:$0xf]
  %v52 = vld [vmem:[%s1 + $0x6c] sm:$0xff]
  %v53 = vld [vmem:[%s1 + $0x74] sm:$0xf]
  %v54 = vld [vmem:[%s1 + $0x78] sm:$0xff]
  %v55 = vld [vmem:[%s1 + $0x80] sm:$0xf]
  %v56 = vld [vmem:[%s1 + $0x84] sm:$0xff]
  %v57 = vld [vmem:[%s1 + $0x8c] sm:$0xf]
  %v58 = vld [vmem:[%s1 + $0x90] sm:$0xff]
  %v59 = vld [vmem:[%s1 + $0x98] sm:$0xf]
  %v60 = vld [vmem:[%s1 + $0x9c] sm:$0xff]
  %v61 = vld [vmem:[%s1 + $0xa4] sm:$0xf]
  %v62 = vld [vmem:[%s1 + $0xa8] sm:$0xff]
  %v63 = vld [vmem:[%s1 + $0xb0] sm:$0xf]
  %v64 = vld [vmem:[%s1 + $0xb4] sm:$0xff]
  %v65 = vld [vmem:[%s1 + $0xbc] sm:$0xf]
  %v66 = vld [vmem:[%s1 + $0xc0] sm:$0xff]
  %v67 = vld [vmem:[%s1 + $0xc8] sm:$0xf]
  %v68 = vld [vmem:[%s1 + $0xcc] sm:$0xff]
  %v69 = vld [vmem:[%s1 + $0xd4] sm:$0xf]
  %v70 = vld [vmem:[%s1 + $0xd8] sm:$0xff]
  %v71 = vld [vmem:[%s1 + $0xe0] sm:$0xf]
  %v72 = vld [vmem:[%s1 + $0xe4] sm:$0xff]
  %v73 = vld [vmem:[%s1 + $0xec] sm:$0xf]
  %v74 = vld [vmem:[%s1 + $0xf0] sm:$0xff]
  %v75 = vld [vmem:[%s1 + $0xf8] sm:$0xf]
  %v76 = vld [vmem:[%s1 + $0xfc] sm:$0xff]
  %v77 = vld [vmem:[%s1 + $0x104] sm:$0xf]
  %v78 = vld [vmem:[%s1 + $0x108] sm:$0xff]
  %v79 = vld [vmem:[%s1 + $0x110] sm:$0xf]
  %v80 = vld [vmem:[%s1 + $0x114] sm:$0xff]
  %v81 = vld [vmem:[%s1 + $0x11c] sm:$0xf]
  %v82 = vld [vmem:[%s1 + $0x120] sm:$0xff]
  %v83 = vld [vmem:[%s1 + $0x128] sm:$0xf]
  %v84 = vld [vmem:[%s1 + $0x12c] sm:$0xff]
  %v85 = vld [vmem:[%s1 + $0x134] sm:$0xf]
  %v86 = vld [vmem:[%s1 + $0x138] sm:$0xff]
  %v87 = vld [vmem:[%s1 + $0x140] sm:$0xf]
  %v88 = vld [vmem:[%s1 + $0x144] sm:$0xff]
  %v89 = vld [vmem:[%s1 + $0x14c] sm:$0xf]
  %v90 = vld [vmem:[%s1 + $0x150] sm:$0xff]
  %v91 = vld [vmem:[%s1 + $0x158] sm:$0xf]
  %v92 = vld [vmem:[%s1 + $0x15c] sm:$0xff]
  %v93 = vld [vmem:[%s1 + $0x164] sm:$0xf]
  %v94 = vld [vmem:[%s1 + $0x168] sm:$0xff]
  %v95 = vld [vmem:[%s1 + $0x170] sm:$0xf]
  %v96 = vld [vmem:[%s1 + $0x174] sm:$0xff]
  %v97 = vld [vmem:[%s1 + $0x17c] sm:$0xf]
  %v98 = vld [vmem:[%s1 + $0x180] sm:$0xff]
  %v99 = vld [vmem:[%s1 + $0x188] sm:$0xf]
  %v100 = vld [vmem:[%s1 + $0x18c] sm:$0xff]
  %v101 = vld [vmem:[%s1 + $0x194] sm:$0xf]
  %v102 = vld [vmem:[%s1 + $0x198] sm:$0xff]
  %v103 = vld [vmem:[%s1 + $0x1a0] sm:$0xf]
  %v104 = vld [vmem:[%s1 + $0x1a4] sm:$0xff]
  %v105 = vld [vmem:[%s1 + $0x1ac] sm:$0xf]
  %v122 = vunpack.c.l.b16 %v18
  %v123 = vunpack.c.h.b16 %v18
  %v124 = vunpack.c.l.b16 %v19
  %v125 = vunpack.c.l.b16 %v20
  %v126 = vunpack.c.h.b16 %v20
  %v127 = vunpack.c.l.b16 %v21
  %v128 = vunpack.c.l.b16 %v22
  %v129 = vunpack.c.h.b16 %v22
  %v130 = vunpack.c.l.b16 %v23
  %v131 = vunpack.c.l.b16 %v24
  %v132 = vunpack.c.h.b16 %v24
  %v133 = vunpack.c.l.b16 %v25
  %v134 = vunpack.c.l.b16 %v26
  %v135 = vunpack.c.h.b16 %v26
  %v136 = vunpack.c.l.b16 %v27
  %v137 = vunpack.c.l.b16 %v28
  %v138 = vunpack.c.h.b16 %v28
  %v139 = vunpack.c.l.b16 %v29
  %v140 = vunpack.c.l.b16 %v30
  %v141 = vunpack.c.h.b16 %v30
  %v142 = vunpack.c.l.b16 %v31
  %v143 = vunpack.c.l.b16 %v32
  %v144 = vunpack.c.h.b16 %v32
  %v145 = vunpack.c.l.b16 %v33
  %v146 = vpack.c.b16 %v125, %v122
  %v147 = vpack.c.b16 %v126, %v123
  %v148 = vpack.c.b16 %v127, %v124
  %v149 = vpack.c.b16 %v131, %v128
  %v150 = vpack.c.b16 %v132, %v129
  %v151 = vpack.c.b16 %v133, %v130
  %v152 = vpack.c.b16 %v137, %v134
  %v153 = vpack.c.b16 %v138, %v135
  %v154 = vpack.c.b16 %v139, %v136
  %v155 = vpack.c.b16 %v143, %v140
  %v156 = vpack.c.b16 %v144, %v141
  %v157 = vpack.c.b16 %v145, %v142
  %v238 = vunpack.c.l.b16 %v34
  %v239 = vunpack.c.h.b16 %v34
  %v240 = vunpack.c.l.b16 %v35
  %v241 = vunpack.c.l.b16 %v36
  %v242 = vunpack.c.h.b16 %v36
  %v243 = vunpack.c.l.b16 %v37
  %v244 = vunpack.c.l.b16 %v38
  %v245 = vunpack.c.h.b16 %v38
  %v246 = vunpack.c.l.b16 %v39
  %v247 = vunpack.c.l.b16 %v40
  %v248 = vunpack.c.h.b16 %v40
  %v249 = vunpack.c.l.b16 %v41
  %v250 = vunpack.c.l.b16 %v42
  %v251 = vunpack.c.h.b16 %v42
  %v252 = vunpack.c.l.b16 %v43
  %v253 = vunpack.c.l.b16 %v44
  %v254 = vunpack.c.h.b16 %v44
  %v255 = vunpack.c.l.b16 %v45
  %v256 = vunpack.c.l.b16 %v46
  %v257 = vunpack.c.h.b16 %v46
  %v258 = vunpack.c.l.b16 %v47
  %v259 = vunpack.c.l.b16 %v48
  %v260 = vunpack.c.h.b16 %v48
  %v261 = vunpack.c.l.b16 %v49
  %v262 = vunpack.c.l.b16 %v50
  %v263 = vunpack.c.h.b16 %v50
  %v264 = vunpack.c.l.b16 %v51
  %v265 = vunpack.c.l.b16 %v52
  %v266 = vunpack.c.h.b16 %v52
  %v267 = vunpack.c.l.b16 %v53
  %v268 = vunpack.c.l.b16 %v54
  %v269 = vunpack.c.h.b16 %v54
  %v270 = vunpack.c.l.b16 %v55
  %v271 = vunpack.c.l.b16 %v56
  %v272 = vunpack.c.h.b16 %v56
  %v273 = vunpack.c.l.b16 %v57
  %v274 = vunpack.c.l.b16 %v58
  %v275 = vunpack.c.h.b16 %v58
  %v276 = vunpack.c.l.b16 %v59
  %v277 = vunpack.c.l.b16 %v60
  %v278 = vunpack.c.h.b16 %v60
  %v279 = vunpack.c.l.b16 %v61
  %v280 = vunpack.c.l.b16 %v62
  %v281 = vunpack.c.h.b16 %v62
  %v282 = vunpack.c.l.b16 %v63
  %v283 = vunpack.c.l.b16 %v64
  %v284 = vunpack.c.h.b16 %v64
  %v285 = vunpack.c.l.b16 %v65
  %v286 = vunpack.c.l.b16 %v66
  %v287 = vunpack.c.h.b16 %v66
  %v288 = vunpack.c.l.b16 %v67
  %v289 = vunpack.c.l.b16 %v68
  %v290 = vunpack.c.h.b16 %v68
  %v291 = vunpack.c.l.b16 %v69
  %v292 = vunpack.c.l.b16 %v70
  %v293 = vunpack.c.h.b16 %v70
  %v294 = vunpack.c.l.b16 %v71
  %v295 = vunpack.c.l.b16 %v72
  %v296 = vunpack.c.h.b16 %v72
  %v297 = vunpack.c.l.b16 %v73
  %v298 = vunpack.c.l.b16 %v74
  %v299 = vunpack.c.h.b16 %v74
  %v300 = vunpack.c.l.b16 %v75
  %v301 = vunpack.c.l.b16 %v76
  %v302 = vunpack.c.h.b16 %v76
  %v303 = vunpack.c.l.b16 %v77
  %v304 = vunpack.c.l.b16 %v78
  %v305 = vunpack.c.h.b16 %v78
  %v306 = vunpack.c.l.b16 %v79
  %v307 = vunpack.c.l.b16 %v80
  %v308 = vunpack.c.h.b16 %v80
  %v309 = vunpack.c.l.b16 %v81
  %v310 = vunpack.c.l.b16 %v82
  %v311 = vunpack.c.h.b16 %v82
  %v312 = vunpack.c.l.b16 %v83
  %v313 = vunpack.c.l.b16 %v84
  %v314 = vunpack.c.h.b16 %v84
  %v315 = vunpack.c.l.b16 %v85
  %v316 = vunpack.c.l.b16 %v86
  %v317 = vunpack.c.h.b16 %v86
  %v318 = vunpack.c.l.b16 %v87
  %v319 = vunpack.c.l.b16 %v88
  %v320 = vunpack.c.h.b16 %v88
  %v321 = vunpack.c.l.b16 %v89
  %v322 = vunpack.c.l.b16 %v90
  %v323 = vunpack.c.h.b16 %v90
  %v324 = vunpack.c.l.b16 %v91
  %v325 = vunpack.c.l.b16 %v92
  %v326 = vunpack.c.h.b16 %v92
  %v327 = vunpack.c.l.b16 %v93
  %v328 = vunpack.c.l.b16 %v94
  %v329 = vunpack.c.h.b16 %v94
  %v330 = vunpack.c.l.b16 %v95
  %v331 = vunpack.c.l.b16 %v96
  %v332 = vunpack.c.h.b16 %v96
  %v333 = vunpack.c.l.b16 %v97
  %v334 = vunpack.c.l.b16 %v98
  %v335 = vunpack.c.h.b16 %v98
  %v336 = vunpack.c.l.b16 %v99
  %v337 = vunpack.c.l.b16 %v100
  %v338 = vunpack.c.h.b16 %v100
  %v339 = vunpack.c.l.b16 %v101
  %v340 = vunpack.c.l.b16 %v102
  %v341 = vunpack.c.h.b16 %v102
  %v342 = vunpack.c.l.b16 %v103
  %v343 = vunpack.c.l.b16 %v104
  %v344 = vunpack.c.h.b16 %v104
  %v345 = vunpack.c.l.b16 %v105
  %v346 = vpack.c.b16 %v241, %v238
  %v347 = vpack.c.b16 %v242, %v239
  %v348 = vpack.c.b16 %v243, %v240
  %v349 = vpack.c.b16 %v247, %v244
  %v350 = vpack.c.b16 %v248, %v245
  %v351 = vpack.c.b16 %v249, %v246
  %v352 = vpack.c.b16 %v253, %v250
  %v353 = vpack.c.b16 %v254, %v251
  %v354 = vpack.c.b16 %v255, %v252
  %v355 = vpack.c.b16 %v259, %v256
  %v356 = vpack.c.b16 %v260, %v257
  %v357 = vpack.c.b16 %v261, %v258
  %v358 = vpack.c.b16 %v265, %v262
  %v359 = vpack.c.b16 %v266, %v263
  %v360 = vpack.c.b16 %v267, %v264
  %v361 = vpack.c.b16 %v271, %v268
  %v362 = vpack.c.b16 %v272, %v269
  %v363 = vpack.c.b16 %v273, %v270
  %v364 = vpack.c.b16 %v277, %v274
  %v365 = vpack.c.b16 %v278, %v275
  %v366 = vpack.c.b16 %v279, %v276
  %v367 = vpack.c.b16 %v283, %v280
  %v368 = vpack.c.b16 %v284, %v281
  %v369 = vpack.c.b16 %v285, %v282
  %v370 = vpack.c.b16 %v289, %v286
  %v371 = vpack.c.b16 %v290, %v287
  %v372 = vpack.c.b16 %v291, %v288
  %v373 = vpack.c.b16 %v295, %v292
  %v374 = vpack.c.b16 %v296, %v293
  %v375 = vpack.c.b16 %v297, %v294
  %v376 = vpack.c.b16 %v301, %v298
  %v377 = vpack.c.b16 %v302, %v299
  %v378 = vpack.c.b16 %v303, %v300
  %v379 = vpack.c.b16 %v307, %v304
  %v380 = vpack.c.b16 %v308, %v305
  %v381 = vpack.c.b16 %v309, %v306
  %v382 = vpack.c.b16 %v313, %v310
  %v383 = vpack.c.b16 %v314, %v311
  %v384 = vpack.c.b16 %v315, %v312
  %v385 = vpack.c.b16 %v319, %v316
  %v386 = vpack.c.b16 %v320, %v317
  %v387 = vpack.c.b16 %v321, %v318
  %v388 = vpack.c.b16 %v325, %v322
  %v389 = vpack.c.b16 %v326, %v323
  %v390 = vpack.c.b16 %v327, %v324
  %v391 = vpack.c.b16 %v331, %v328
  %v392 = vpack.c.b16 %v332, %v329
  %v393 = vpack.c.b16 %v333, %v330
  %v394 = vpack.c.b16 %v337, %v334
  %v395 = vpack.c.b16 %v338, %v335
  %v396 = vpack.c.b16 %v339, %v336
  %v397 = vpack.c.b16 %v343, %v340
  %v398 = vpack.c.b16 %v344, %v341
  %v399 = vpack.c.b16 %v345, %v342
  %vm454 = vcmask 261120
  %v456 = vsel %vm454, %v148, 0
  %v459 = vsel %vm454, %v151, 0
  %v462 = vsel %vm454, %v154, 0
  %v465 = vsel %vm454, %v157, 0
  %467 = vmatprep.subr.bf16.mxu0 %v347
  %468 = vmatpush1.bf16.msra.mxu0 %v346
  %469 = vmatprep.subr.bf16.mxu0 %v350
  %470 = vmatpush1.bf16.msra.mxu0 %v349
  %471 = vmatprep.subr.bf16.mxu0 %v353
  %472 = vmatpush1.bf16.msra.mxu0 %v352
  %473 = vmatprep.subr.bf16.mxu0 %v356
  %474 = vmatpush1.bf16.msra.mxu0 %v355
  %475 = vmatprep.subr.bf16.mxu0 %v359
  %476 = vmatpush1.bf16.msra.mxu0 %v358
  %477 = vmatprep.subr.bf16.mxu0 %v362
  %478 = vmatpush1.bf16.msra.mxu0 %v361
  %479 = vmatprep.subr.bf16.mxu0 %v365
  %480 = vmatpush1.bf16.msra.mxu0 %v364
  %481 = vmatprep.subr.bf16.mxu0 %v368
  %482 = vmatpush1.bf16.msra.mxu0 %v367
  %483 = vmatprep.subr.bf16.mxu0 %v371
  %484 = vmatpush1.bf16.msra.mxu0 %v370
  %485 = vmatprep.subr.bf16.mxu0 %v374
  %486 = vmatpush1.bf16.msra.mxu0 %v373
  %487 = vmatprep.subr.bf16.mxu0 %v377
  %488 = vmatpush1.bf16.msra.mxu0 %v376
  %489 = vmatprep.subr.bf16.mxu0 %v380
  %490 = vmatpush1.bf16.msra.mxu0 %v379
  %491 = vmatprep.subr.bf16.mxu0 %v383
  %492 = vmatpush1.bf16.msra.mxu0 %v382
  %493 = vmatprep.subr.bf16.mxu0 %v386
  %494 = vmatpush1.bf16.msra.mxu0 %v385
  %495 = vmatprep.subr.bf16.mxu0 %v389
  %496 = vmatpush1.bf16.msra.mxu0 %v388
  %497 = vmatprep.subr.bf16.mxu0 %v392
  %498 = vmatpush1.bf16.msra.mxu0 %v391
  %499 = vmatprep.mubr.bf16.mxu0 %v147
  %500 = vmatmul.mubr.bf16.gmra.mrb[0].mxu0 %v146
  %v501 = vpop.f32.mrb[0].mxu0
  %v502 = vadd.f32 0.0, %v501
  %v503 = vpop.f32.mrb[0].mxu0
  %v504 = vadd.f32 0.0, %v503
  %v505 = vpop.f32.mrb[0].mxu0
  %v506 = vadd.f32 0.0, %v505
  %v507 = vpop.f32.mrb[0].mxu0
  %v508 = vadd.f32 0.0, %v507
  %509 = vmatprep.mubr.bf16.mxu0 %v150
  %510 = vmatmul.mubr.bf16.gmra.mrb[0].mxu0 %v149
  %v511 = vpop.f32.mrb[0].mxu0
  %v512 = vadd.f32 0.0, %v511
  %v513 = vpop.f32.mrb[0].mxu0
  %v514 = vadd.f32 0.0, %v513
  %v515 = vpop.f32.mrb[0].mxu0
  %v516 = vadd.f32 0.0, %v515
  %v517 = vpop.f32.mrb[0].mxu0
  %v518 = vadd.f32 0.0, %v517
  %519 = vmatprep.mubr.bf16.mxu0 %v153
  %520 = vmatmul.mubr.bf16.gmra.mrb[0].mxu0 %v152
  %v521 = vpop.f32.mrb[0].mxu0
  %v522 = vadd.f32 0.0, %v521
  %v523 = vpop.f32.mrb[0].mxu0
  %v524 = vadd.f32 0.0, %v523
  %v525 = vpop.f32.mrb[0].mxu0
  %v526 = vadd.f32 0.0, %v525
  %v527 = vpop.f32.mrb[0].mxu0
  %v528 = vadd.f32 0.0, %v527
  %529 = vmatprep.mubr.bf16.mxu0 %v156
  %530 = vmatmul.mubr.bf16.gmra.mrb[0].mxu0 %v155
  %v531 = vpop.f32.mrb[0].mxu0
  %v532 = vadd.f32 0.0, %v531
  %v533 = vpop.f32.mrb[0].mxu0
  %v534 = vadd.f32 0.0, %v533
  %v535 = vpop.f32.mrb[0].mxu0
  %v536 = vadd.f32 0.0, %v535
  %v537 = vpop.f32.mrb[0].mxu0
  %v538 = vadd.f32 0.0, %v537
  %539 = vdwg.mxu0
  %540 = vmatprep.subr.bf16.mxu0 %v395
  %541 = vmatpush1.bf16.msra.mxu0 %v394
  %542 = vmatprep.subr.bf16.mxu0 %v398
  %543 = vmatpush1.bf16.msra.mxu0 %v397
  %544 = vmatprep.subr.bf16.mxu0 0
  %545 = vmatpush1.bf16.msra.mxu0 0
  %546 = vmatprep.subr.bf16.mxu0 0
  %547 = vmatpush1.bf16.msra.mxu0 0
  %548 = vmatprep.subr.bf16.mxu0 0
  %549 = vmatpush1.bf16.msra.mxu0 0
  %550 = vmatprep.subr.bf16.mxu0 0
  %551 = vmatpush1.bf16.msra.mxu0 0
  %552 = vmatprep.subr.bf16.mxu0 0
  %553 = vmatpush1.bf16.msra.mxu0 0
  %554 = vmatprep.subr.bf16.mxu0 0
  %555 = vmatpush1.bf16.msra.mxu0 0
  %556 = vmatprep.subr.bf16.mxu0 0
  %557 = vmatpush1.bf16.msra.mxu0 0
  %558 = vmatprep.subr.bf16.mxu0 0
  %559 = vmatpush1.bf16.msra.mxu0 0
  %560 = vmatprep.subr.bf16.mxu0 0
  %561 = vmatpush1.bf16.msra.mxu0 0
  %562 = vmatprep.subr.bf16.mxu0 0
  %563 = vmatpush1.bf16.msra.mxu0 0
  %564 = vmatprep.subr.bf16.mxu0 0
  %565 = vmatpush1.bf16.msra.mxu0 0
  %566 = vmatprep.subr.bf16.mxu0 0
  %567 = vmatpush1.bf16.msra.mxu0 0
  %568 = vmatprep.subr.bf16.mxu0 0
  %569 = vmatpush1.bf16.msra.mxu0 0
  %570 = vmatprep.subr.bf16.mxu0 0
  %571 = vmatpush1.bf16.msra.mxu0 0
  %572 = vmatprep.mubr.bf16.mxu0 0
  %573 = vmatmul.mubr.bf16.gmra.mrb[0].mxu0 %v456
  %v574 = vpop.f32.mrb[0].mxu0
  %v575 = vadd.f32 %v502, %v574
  %v576 = vpop.f32.mrb[0].mxu0
  %v577 = vadd.f32 %v504, %v576
  %v578 = vpop.f32.mrb[0].mxu0
  %v579 = vadd.f32 %v506, %v578
  %v580 = vpop.f32.mrb[0].mxu0
  %v581 = vadd.f32 %v508, %v580
  %582 = vmatprep.mubr.bf16.mxu0 0
  %583 = vmatmul.mubr.bf16.gmra.mrb[0].mxu0 %v459
  %v584 = vpop.f32.mrb[0].mxu0
  %v585 = vadd.f32 %v512, %v584
  %v586 = vpop.f32.mrb[0].mxu0
  %v587 = vadd.f32 %v514, %v586
  %v588 = vpop.f32.mrb[0].mxu0
  %v589 = vadd.f32 %v516, %v588
  %v590 = vpop.f32.mrb[0].mxu0
  %v591 = vadd.f32 %v518, %v590
  %592 = vmatprep.mubr.bf16.mxu0 0
  %593 = vmatmul.mubr.bf16.gmra.mrb[0].mxu0 %v462
  %v594 = vpop.f32.mrb[0].mxu0
  %v595 = vadd.f32 %v522, %v594
  %v596 = vpop.f32.mrb[0].mxu0
  %v597 = vadd.f32 %v524, %v596
  %v598 = vpop.f32.mrb[0].mxu0
  %v599 = vadd.f32 %v526, %v598
  %v600 = vpop.f32.mrb[0].mxu0
  %v601 = vadd.f32 %v528, %v600
  %602 = vmatprep.mubr.bf16.mxu0 0
  %603 = vmatmul.mubr.bf16.gmra.mrb[0].mxu0 %v465
  %v604 = vpop.f32.mrb[0].mxu0
  %v605 = vadd.f32 %v532, %v604
  %v606 = vpop.f32.mrb[0].mxu0
  %v607 = vadd.f32 %v534, %v606
  %v608 = vpop.f32.mrb[0].mxu0
  %v609 = vadd.f32 %v536, %v608
  %v610 = vpop.f32.mrb[0].mxu0
  %v611 = vadd.f32 %v538, %v610
  %612 = vdwg.mxu0
  %613 = vmatprep.subr.bf16.mxu0 0
  %614 = vmatpush1.bf16.msra.mxu0 %v348
  %615 = vmatprep.subr.bf16.mxu0 0
  %616 = vmatpush1.bf16.msra.mxu0 %v351
  %617 = vmatprep.subr.bf16.mxu0 0
  %618 = vmatpush1.bf16.msra.mxu0 %v354
  %619 = vmatprep.subr.bf16.mxu0 0
  %620 = vmatpush1.bf16.msra.mxu0 %v357
  %621 = vmatprep.subr.bf16.mxu0 0
  %622 = vmatpush1.bf16.msra.mxu0 %v360
  %623 = vmatprep.subr.bf16.mxu0 0
  %624 = vmatpush1.bf16.msra.mxu0 %v363
  %625 = vmatprep.subr.bf16.mxu0 0
  %626 = vmatpush1.bf16.msra.mxu0 %v366
  %627 = vmatprep.subr.bf16.mxu0 0
  %628 = vmatpush1.bf16.msra.mxu0 %v369
  %629 = vmatprep.subr.bf16.mxu0 0
  %630 = vmatpush1.bf16.msra.mxu0 %v372
  %631 = vmatprep.subr.bf16.mxu0 0
  %632 = vmatpush1.bf16.msra.mxu0 %v375
  %633 = vmatprep.subr.bf16.mxu0 0
  %634 = vmatpush1.bf16.msra.mxu0 %v378
  %635 = vmatprep.subr.bf16.mxu0 0
  %636 = vmatpush1.bf16.msra.mxu0 %v381
  %637 = vmatprep.subr.bf16.mxu0 0
  %638 = vmatpush1.bf16.msra.mxu0 %v384
  %639 = vmatprep.subr.bf16.mxu0 0
  %640 = vmatpush1.bf16.msra.mxu0 %v387
  %641 = vmatprep.subr.bf16.mxu0 0
  %642 = vmatpush1.bf16.msra.mxu0 %v390
  %643 = vmatprep.subr.bf16.mxu0 0
  %644 = vmatpush1.bf16.msra.mxu0 %v393
  %645 = vmatprep.mubr.bf16.mxu0 %v147
  %646 = vmatmul.mubr.bf16.gmra.mrb[0].mxu0 %v146
  %v647 = vpop.f32.mrb[0].mxu0
  %v648 = vadd.f32 0.0, %v647
  %v649 = vpop.f32.mrb[0].mxu0
  %v650 = vpop.f32.mrb[0].mxu0
  %v651 = vadd.f32 0.0, %v650
  %v652 = vpop.f32.mrb[0].mxu0
  %653 = vmatprep.mubr.bf16.mxu0 %v150
  %654 = vmatmul.mubr.bf16.gmra.mrb[0].mxu0 %v149
  %v655 = vpop.f32.mrb[0].mxu0
  %v656 = vadd.f32 0.0, %v655
  %v657 = vpop.f32.mrb[0].mxu0
  %v658 = vpop.f32.mrb[0].mxu0
  %v659 = vadd.f32 0.0, %v658
  %v660 = vpop.f32.mrb[0].mxu0
  %661 = vmatprep.mubr.bf16.mxu0 %v153
  %662 = vmatmul.mubr.bf16.gmra.mrb[0].mxu0 %v152
  %v663 = vpop.f32.mrb[0].mxu0
  %v664 = vadd.f32 0.0, %v663
  %v665 = vpop.f32.mrb[0].mxu0
  %v666 = vpop.f32.mrb[0].mxu0
  %v667 = vadd.f32 0.0, %v666
  %v668 = vpop.f32.mrb[0].mxu0
  %669 = vmatprep.mubr.bf16.mxu0 %v156
  %670 = vmatmul.mubr.bf16.gmra.mrb[0].mxu0 %v155
  %v671 = vpop.f32.mrb[0].mxu0
  %v672 = vadd.f32 0.0, %v671
  %v673 = vpop.f32.mrb[0].mxu0
  %v674 = vpop.f32.mrb[0].mxu0
  %v675 = vadd.f32 0.0, %v674
  %v676 = vpop.f32.mrb[0].mxu0
  %677 = vdwg.mxu0
  %678 = vmatprep.subr.bf16.mxu0 0
  %679 = vmatpush1.bf16.msra.mxu0 %v396
  %680 = vmatprep.subr.bf16.mxu0 0
  %681 = vmatpush1.bf16.msra.mxu0 %v399
  %682 = vmatprep.subr.bf16.mxu0 0
  %683 = vmatpush1.bf16.msra.mxu0 0
  %684 = vmatprep.subr.bf16.mxu0 0
  %685 = vmatpush1.bf16.msra.mxu0 0
  %686 = vmatprep.subr.bf16.mxu0 0
  %687 = vmatpush1.bf16.msra.mxu0 0
  %688 = vmatprep.subr.bf16.mxu0 0
  %689 = vmatpush1.bf16.msra.mxu0 0
  %690 = vmatprep.subr.bf16.mxu0 0
  %691 = vmatpush1.bf16.msra.mxu0 0
  %692 = vmatprep.subr.bf16.mxu0 0
  %693 = vmatpush1.bf16.msra.mxu0 0
  %694 = vmatprep.subr.bf16.mxu0 0
  %695 = vmatpush1.bf16.msra.mxu0 0
  %696 = vmatprep.subr.bf16.mxu0 0
  %697 = vmatpush1.bf16.msra.mxu0 0
  %698 = vmatprep.subr.bf16.mxu0 0
  %699 = vmatpush1.bf16.msra.mxu0 0
  %700 = vmatprep.subr.bf16.mxu0 0
  %701 = vmatpush1.bf16.msra.mxu0 0
  %702 = vmatprep.subr.bf16.mxu0 0
  %703 = vmatpush1.bf16.msra.mxu0 0
  %704 = vmatprep.subr.bf16.mxu0 0
  %705 = vmatpush1.bf16.msra.mxu0 0
  %706 = vmatprep.subr.bf16.mxu0 0
  %707 = vmatpush1.bf16.msra.mxu0 0
  %708 = vmatprep.subr.bf16.mxu0 0
  %709 = vmatpush1.bf16.msra.mxu0 0
  %710 = vmatprep.mubr.bf16.mxu0 0
  %711 = vmatmul.mubr.bf16.gmra.mrb[0].mxu0 %v456
  %v712 = vpop.f32.mrb[0].mxu0
  %v713 = vadd.f32 %v648, %v712
  %v714 = vpop.f32.mrb[0].mxu0
  %v715 = vpop.f32.mrb[0].mxu0
  %v716 = vadd.f32 %v651, %v715
  %v717 = vpop.f32.mrb[0].mxu0
  %718 = vmatprep.mubr.bf16.mxu0 0
  %719 = vmatmul.mubr.bf16.gmra.mrb[0].mxu0 %v459
  %v720 = vpop.f32.mrb[0].mxu0
  %v721 = vadd.f32 %v656, %v720
  %v722 = vpop.f32.mrb[0].mxu0
  %v723 = vpop.f32.mrb[0].mxu0
  %v724 = vadd.f32 %v659, %v723
  %v725 = vpop.f32.mrb[0].mxu0
  %726 = vmatprep.mubr.bf16.mxu0 0
  %727 = vmatmul.mubr.bf16.gmra.mrb[0].mxu0 %v462
  %v728 = vpop.f32.mrb[0].mxu0
  %v729 = vadd.f32 %v664, %v728
  %v730 = vpop.f32.mrb[0].mxu0
  %v731 = vpop.f32.mrb[0].mxu0
  %v732 = vadd.f32 %v667, %v731
  %v733 = vpop.f32.mrb[0].mxu0
  %734 = vmatprep.mubr.bf16.mxu0 0
  %735 = vmatmul.mubr.bf16.gmra.mrb[0].mxu0 %v465
  %v736 = vpop.f32.mrb[0].mxu0
  %v737 = vadd.f32 %v672, %v736
  %v738 = vpop.f32.mrb[0].mxu0
  %v739 = vpop.f32.mrb[0].mxu0
  %v740 = vadd.f32 %v675, %v739
  %v741 = vpop.f32.mrb[0].mxu0
  %742 = vdwg.mxu0
  %v743 = vadd.f32 %v575, %v577
  %v744 = vsel %vm454, %v713, 0.0
  %v745 = vadd.f32 %v743, %v744
  %746 = vadd.xlane.f32.xlu0 %v745
  %v747 = vpop.xlane.xlu0 %746
  %v748 = vadd.f32 %v579, %v581
  %v749 = vsel %vm454, %v716, 0.0
  %v750 = vadd.f32 %v748, %v749
  %751 = vadd.xlane.f32.xlu0 %v750
  %v752 = vpop.xlane.xlu0 %751
  %v753 = vadd.f32 %v585, %v587
  %v754 = vsel %vm454, %v721, 0.0
  %v755 = vadd.f32 %v753, %v754
  %756 = vadd.xlane.f32.xlu0 %v755
  %v757 = vpop.xlane.xlu0 %756
  %v758 = vadd.f32 %v589, %v591
  %v759 = vsel %vm454, %v724, 0.0
  %v760 = vadd.f32 %v758, %v759
  %761 = vadd.xlane.f32.xlu0 %v760
  %v762 = vpop.xlane.xlu0 %761
  %v763 = vadd.f32 %v595, %v597
  %v764 = vsel %vm454, %v729, 0.0
  %v765 = vadd.f32 %v763, %v764
  %766 = vadd.xlane.f32.xlu0 %v765
  %v767 = vpop.xlane.xlu0 %766
  %v768 = vadd.f32 %v599, %v601
  %v769 = vsel %vm454, %v732, 0.0
  %v770 = vadd.f32 %v768, %v769
  %771 = vadd.xlane.f32.xlu0 %v770
  %v772 = vpop.xlane.xlu0 %771
  %v773 = vadd.f32 %v605, %v607
  %v774 = vsel %vm454, %v737, 0.0
  %v775 = vadd.f32 %v773, %v774
  %776 = vadd.xlane.f32.xlu0 %v775
  %v777 = vpop.xlane.xlu0 %776
  %v778 = vadd.f32 %v609, %v611
  %v779 = vsel %vm454, %v740, 0.0
  %v780 = vadd.f32 %v778, %v779
  %781 = vadd.xlane.f32.xlu0 %v780
  %v782 = vpop.xlane.xlu0 %781
  %v783 = vadd.f32 %v747, %v757
  %v784 = vadd.f32 %v783, %v767
  %v785 = vadd.f32 %v784, %v777
  %v786 = vadd.f32 %v752, %v762
  %v787 = vadd.f32 %v786, %v772
  %v788 = vadd.f32 %v787, %v782
  %v789 = vrcp.pop 1152.0
  %v790 = vmul.f32 %v785, %v789
  %v791 = vmul.f32 %v788, %v789
  %v792 = vsub.f32 %v575, %v790
  %v793 = vsub.f32 %v577, %v790
  %v794 = vsub.f32 %v713, %v790
  %v795 = vsub.f32 %v579, %v791
  %v796 = vsub.f32 %v581, %v791
  %v797 = vsub.f32 %v716, %v791
  %v798 = vsub.f32 %v585, %v790
  %v799 = vsub.f32 %v587, %v790
  %v800 = vsub.f32 %v721, %v790
  %v801 = vsub.f32 %v589, %v791
  %v802 = vsub.f32 %v591, %v791
  %v803 = vsub.f32 %v724, %v791
  %v804 = vsub.f32 %v595, %v790
  %v805 = vsub.f32 %v597, %v790
  %v806 = vsub.f32 %v729, %v790
  %v807 = vsub.f32 %v599, %v791
  %v808 = vsub.f32 %v601, %v791
  %v809 = vsub.f32 %v732, %v791
  %v810 = vsub.f32 %v605, %v790
  %v811 = vsub.f32 %v607, %v790
  %v812 = vsub.f32 %v737, %v790
  %v813 = vsub.f32 %v609, %v791
  %v814 = vsub.f32 %v611, %v791
  %v815 = vsub.f32 %v740, %v791
  %v816 = vmul.f32 %v792, %v792
  %v817 = vmul.f32 %v793, %v793
  %v818 = vmul.f32 %v794, %v794
  %v819 = vmul.f32 %v795, %v795
  %v820 = vmul.f32 %v796, %v796
  %v821 = vmul.f32 %v797, %v797
  %v822 = vmul.f32 %v798, %v798
  %v823 = vmul.f32 %v799, %v799
  %v824 = vmul.f32 %v800, %v800
  %v825 = vmul.f32 %v801, %v801
  %v826 = vmul.f32 %v802, %v802
  %v827 = vmul.f32 %v803, %v803
  %v828 = vmul.f32 %v804, %v804
  %v829 = vmul.f32 %v805, %v805
  %v830 = vmul.f32 %v806, %v806
  %v831 = vmul.f32 %v807, %v807
  %v832 = vmul.f32 %v808, %v808
  %v833 = vmul.f32 %v809, %v809
  %v834 = vmul.f32 %v810, %v810
  %v835 = vmul.f32 %v811, %v811
  %v836 = vmul.f32 %v812, %v812
  %v837 = vmul.f32 %v813, %v813
  %v838 = vmul.f32 %v814, %v814
  %v839 = vmul.f32 %v815, %v815
  %v840 = vadd.f32 %v816, %v817
  %v841 = vsel %vm454, %v818, 0.0
  %v842 = vadd.f32 %v840, %v841
  %843 = vadd.xlane.f32.xlu0 %v842
  %v844 = vpop.xlane.xlu0 %843
  %v845 = vadd.f32 %v819, %v820
  %v846 = vsel %vm454, %v821, 0.0
  %v847 = vadd.f32 %v845, %v846
  %848 = vadd.xlane.f32.xlu0 %v847
  %v849 = vpop.xlane.xlu0 %848
  %v850 = vadd.f32 %v822, %v823
  %v851 = vsel %vm454, %v824, 0.0
  %v852 = vadd.f32 %v850, %v851
  %853 = vadd.xlane.f32.xlu0 %v852
  %v854 = vpop.xlane.xlu0 %853
  %v855 = vadd.f32 %v825, %v826
  %v856 = vsel %vm454, %v827, 0.0
  %v857 = vadd.f32 %v855, %v856
  %858 = vadd.xlane.f32.xlu0 %v857
  %v859 = vpop.xlane.xlu0 %858
  %v860 = vadd.f32 %v828, %v829
  %v861 = vsel %vm454, %v830, 0.0
  %v862 = vadd.f32 %v860, %v861
  %863 = vadd.xlane.f32.xlu0 %v862
  %v864 = vpop.xlane.xlu0 %863
  %v865 = vadd.f32 %v831, %v832
  %v866 = vsel %vm454, %v833, 0.0
  %v867 = vadd.f32 %v865, %v866
  %868 = vadd.xlane.f32.xlu0 %v867
  %v869 = vpop.xlane.xlu0 %868
  %v870 = vadd.f32 %v834, %v835
  %v871 = vsel %vm454, %v836, 0.0
  %v872 = vadd.f32 %v870, %v871
  %873 = vadd.xlane.f32.xlu0 %v872
  %v874 = vpop.xlane.xlu0 %873
  %v875 = vadd.f32 %v837, %v838
  %v876 = vsel %vm454, %v839, 0.0
  %v877 = vadd.f32 %v875, %v876
  %878 = vadd.xlane.f32.xlu0 %v877
  %v879 = vpop.xlane.xlu0 %878
  %v880 = vadd.f32 %v844, %v854
  %v881 = vadd.f32 %v880, %v864
  %v882 = vadd.f32 %v881, %v874
  %v883 = vadd.f32 %v849, %v859
  %v884 = vadd.f32 %v883, %v869
  %v885 = vadd.f32 %v884, %v879
  %v886 = vmul.f32 %v882, %v789
  %v887 = vmul.f32 %v885, %v789
  %v888 = vld [vmem:[%s2] sm:$0xff]
  %v889 = vld [vmem:[%s2 + $0x8] sm:$0xff]
  %v890 = vadd.f32 %v886, 1e-05
  %v891 = vadd.f32 %v887, 1e-05
  %v892 = vrsqrt.pop %v890
  %v893 = vrsqrt.pop %v891
  %v894 = vmul.f32 %v888, %v892
  %v895 = vmul.f32 %v889, %v893
  %v896 = vld [vmem:[%s3] sm:$0xff]
  %v897 = vld [vmem:[%s3 + $0x8] sm:$0xff]
  %v898 = vmul.f32 %v790, %v894
  %v899 = vmul.f32 %v791, %v895
  %v900 = vsub.f32 %v896, %v898
  %v901 = vsub.f32 %v897, %v899
  %903 = vset.pattern.permute.xlu0 0
  %904 = vperm.xlu0 %903, %v894
  %v905 = vpop.permute.xlu0 %904
  %908 = vset.pattern.permute.xlu0 0
  %909 = vperm.xlu0 %908, %v895
  %v910 = vpop.permute.xlu0 %909
  %v912 = vmul.f32 %v575, %v905
  %v913 = vmul.f32 %v577, %v905
  %v914 = vmul.f32 %v713, %v905
  %v915 = vmul.f32 %v579, %v910
  %v916 = vmul.f32 %v581, %v910
  %v917 = vmul.f32 %v716, %v910
  %v918 = vmul.f32 %v585, %v905
  %v919 = vmul.f32 %v587, %v905
  %v920 = vmul.f32 %v721, %v905
  %v921 = vmul.f32 %v589, %v910
  %v922 = vmul.f32 %v591, %v910
  %v923 = vmul.f32 %v724, %v910
  %v924 = vmul.f32 %v595, %v905
  %v925 = vmul.f32 %v597, %v905
  %v926 = vmul.f32 %v729, %v905
  %v927 = vmul.f32 %v599, %v910
  %v928 = vmul.f32 %v601, %v910
  %v929 = vmul.f32 %v732, %v910
  %v930 = vmul.f32 %v605, %v905
  %v931 = vmul.f32 %v607, %v905
  %v932 = vmul.f32 %v737, %v905
  %v933 = vmul.f32 %v609, %v910
  %v934 = vmul.f32 %v611, %v910
  %v935 = vmul.f32 %v740, %v910
  %937 = vset.pattern.permute.xlu0 0
  %938 = vperm.xlu0 %937, %v900
  %v939 = vpop.permute.xlu0 %938
  %942 = vset.pattern.permute.xlu0 0
  %943 = vperm.xlu0 %942, %v901
  %v944 = vpop.permute.xlu0 %943
  %v946 = vadd.f32 %v912, %v939
  %v947 = vadd.f32 %v913, %v939
  %v948 = vadd.f32 %v914, %v939
  %v949 = vadd.f32 %v915, %v944
  %v950 = vadd.f32 %v916, %v944
  %v951 = vadd.f32 %v917, %v944
  %v952 = vadd.f32 %v918, %v939
  %v953 = vadd.f32 %v919, %v939
  %v954 = vadd.f32 %v920, %v939
  %v955 = vadd.f32 %v921, %v944
  %v956 = vadd.f32 %v922, %v944
  %v957 = vadd.f32 %v923, %v944
  %v958 = vadd.f32 %v924, %v939
  %v959 = vadd.f32 %v925, %v939
  %v960 = vadd.f32 %v926, %v939
  %v961 = vadd.f32 %v927, %v944
  %v962 = vadd.f32 %v928, %v944
  %v963 = vadd.f32 %v929, %v944
  %v964 = vadd.f32 %v930, %v939
  %v965 = vadd.f32 %v931, %v939
  %v966 = vadd.f32 %v932, %v939
  %v967 = vadd.f32 %v933, %v944
  %v968 = vadd.f32 %v934, %v944
  %v969 = vadd.f32 %v935, %v944
  %v970 = vmax.f32 %v946, 0.0
  %v971 = vmax.f32 %v947, 0.0
  %v972 = vmax.f32 %v948, 0.0
  %v973 = vmax.f32 %v949, 0.0
  %v974 = vmax.f32 %v950, 0.0
  %v975 = vmax.f32 %v951, 0.0
  %v976 = vmax.f32 %v952, 0.0
  %v977 = vmax.f32 %v953, 0.0
  %v978 = vmax.f32 %v954, 0.0
  %v979 = vmax.f32 %v955, 0.0
  %v980 = vmax.f32 %v956, 0.0
  %v981 = vmax.f32 %v957, 0.0
  %v982 = vmax.f32 %v958, 0.0
  %v983 = vmax.f32 %v959, 0.0
  %v984 = vmax.f32 %v960, 0.0
  %v985 = vmax.f32 %v961, 0.0
  %v986 = vmax.f32 %v962, 0.0
  %v987 = vmax.f32 %v963, 0.0
  %v988 = vmax.f32 %v964, 0.0
  %v989 = vmax.f32 %v965, 0.0
  %v990 = vmax.f32 %v966, 0.0
  %v991 = vmax.f32 %v967, 0.0
  %v992 = vmax.f32 %v968, 0.0
  %v993 = vmax.f32 %v969, 0.0
  %v994 = vpack.c.bf16 %v973, %v970
  %v995 = vpack.c.bf16 %v974, %v971
  %v996 = vpack.c.bf16 %v975, %v972
  %v997 = vpack.c.bf16 %v979, %v976
  %v998 = vpack.c.bf16 %v980, %v977
  %v999 = vpack.c.bf16 %v981, %v978
  %v1000 = vpack.c.bf16 %v985, %v982
  %v1001 = vpack.c.bf16 %v986, %v983
  %v1002 = vpack.c.bf16 %v987, %v984
  %v1003 = vpack.c.bf16 %v991, %v988
  %v1004 = vpack.c.bf16 %v992, %v989
  %v1005 = vpack.c.bf16 %v993, %v990
  %v1018 = vunpack.c.l.b16 %v994
  %v1019 = vunpack.c.l.b16 %v995
  %v1020 = vunpack.c.l.b16 %v996
  %v1021 = vunpack.c.h.b16 %v994
  %v1022 = vunpack.c.h.b16 %v995
  %v1023 = vunpack.c.h.b16 %v996
  %v1024 = vunpack.c.l.b16 %v997
  %v1025 = vunpack.c.l.b16 %v998
  %v1026 = vunpack.c.l.b16 %v999
  %v1027 = vunpack.c.h.b16 %v997
  %v1028 = vunpack.c.h.b16 %v998
  %v1029 = vunpack.c.h.b16 %v999
  %v1030 = vunpack.c.l.b16 %v1000
  %v1031 = vunpack.c.l.b16 %v1001
  %v1032 = vunpack.c.l.b16 %v1002
  %v1033 = vunpack.c.h.b16 %v1000
  %v1034 = vunpack.c.h.b16 %v1001
  %v1035 = vunpack.c.h.b16 %v1002
  %v1036 = vunpack.c.l.b16 %v1003
  %v1037 = vunpack.c.l.b16 %v1004
  %v1038 = vunpack.c.l.b16 %v1005
  %v1039 = vunpack.c.h.b16 %v1003
  %v1040 = vunpack.c.h.b16 %v1004
  %v1041 = vunpack.c.h.b16 %v1005
  %v1042 = vpack.c.b16 %v1019, %v1018
  %v1043 = vpack.c.b16 %v1020, %v1020
  %v1044 = vpack.c.b16 %v1022, %v1021
  %v1045 = vpack.c.b16 %v1023, %v1023
  %v1046 = vpack.c.b16 %v1025, %v1024
  %v1047 = vpack.c.b16 %v1026, %v1026
  %v1048 = vpack.c.b16 %v1028, %v1027
  %v1049 = vpack.c.b16 %v1029, %v1029
  %v1050 = vpack.c.b16 %v1031, %v1030
  %v1051 = vpack.c.b16 %v1032, %v1032
  %v1052 = vpack.c.b16 %v1034, %v1033
  %v1053 = vpack.c.b16 %v1035, %v1035
  %v1054 = vpack.c.b16 %v1037, %v1036
  %v1055 = vpack.c.b16 %v1038, %v1038
  %v1056 = vpack.c.b16 %v1040, %v1039
  %v1057 = vpack.c.b16 %v1041, %v1041
  %1074 = vst [vmem:[%s4] sm:$0xff] %v1042
  %vm1075 = vcmask 257024
  %1076 = vst.msk [vmem:[%s4 + $0x8] sm:$0xf] %vm1075, %v1043
  %1077 = vst [vmem:[%s4 + $0xc] sm:$0xff] %v1044
  %1078 = vst.msk [vmem:[%s4 + $0x14] sm:$0xf] %vm1075, %v1045
  %1079 = vst [vmem:[%s4 + $0x18] sm:$0xff] %v1046
  %1080 = vst.msk [vmem:[%s4 + $0x20] sm:$0xf] %vm1075, %v1047
  %1081 = vst [vmem:[%s4 + $0x24] sm:$0xff] %v1048
  %1082 = vst.msk [vmem:[%s4 + $0x2c] sm:$0xf] %vm1075, %v1049
  %1083 = vst [vmem:[%s4 + $0x30] sm:$0xff] %v1050
  %1084 = vst.msk [vmem:[%s4 + $0x38] sm:$0xf] %vm1075, %v1051
  %1085 = vst [vmem:[%s4 + $0x3c] sm:$0xff] %v1052
  %1086 = vst.msk [vmem:[%s4 + $0x44] sm:$0xf] %vm1075, %v1053
  %1087 = vst [vmem:[%s4 + $0x48] sm:$0xff] %v1054
  %1088 = vst.msk [vmem:[%s4 + $0x50] sm:$0xf] %vm1075, %v1055
  %1089 = vst [vmem:[%s4 + $0x54] sm:$0xff] %v1056
  %1090 = vst.msk [vmem:[%s4 + $0x5c] sm:$0xf] %vm1075, %v1057
  // Predicated region
  $region18: #{generator_i_forward.5} parent=0 // pred_check
    _
  $region19: #{generator_i_forward.5} parent=0 // pred_check_branch
    %1092 = sbr.rel (0) target = $region21
  $region20: #{generator_i_forward.5} parent=0 // pred_region
    _
  $region21: #{generator_i_forward.5} parent=0 // pred_fallthru
    _
  // Predicated region
  $region22: #{generator_i_forward.5} parent=0 // pred_check
    _
  $region23: #{generator_i_forward.5} parent=0 // pred_check_branch
    %1094 = sbr.rel (0) target = $region25
  $region24: #{generator_i_forward.5} parent=0 // pred_region
    _
  $region25: #{generator_i_forward.5} parent=0 // pred_fallthru
    _

// kernel: generator_i_forward.6
$region0: #{generator_i_forward.6}
  #allocation0 [shape = 'u32[]', space=smem, size = 0x4, offset = 0x4, fixed_abs, tag = 'smem constant byte address 0x4 - core index']
  #allocation1 [shape = 'u32[144,128]{1,0:T(1,128)}', space=vmem, size = 0x12000, scoped, tag = 'internal scratch']
  %s0 = inlined_call_operand.vmem [shape: bf16[32,144], index: 0, kind: input, shape index: {}]
  %s1 = inlined_call_operand.vmem [shape: bf16[144,1152], index: 1, kind: input, shape index: {}]
  %s2 = inlined_call_operand.vmem [shape: f32[8,1], index: 2, kind: input, shape index: {}]
  %s3 = inlined_call_operand.vmem [shape: f32[8,1], index: 3, kind: input, shape index: {}]
  %s4 = inlined_call_operand.vmem [shape: bf16[32,1152], index: 4, kind: output, shape index: {}]
  %s5 = sld [smem:[#allocation0]]
  $region26: #{generator_i_forward.6} parent=0
    _
  %s7 = ssub.s32 1, %s5
  %s8 = scalar_select 0, %s7, %s5
  // Predicated region
  $region2: #{generator_i_forward.6} parent=0 // pred_check
    _
  $region3: #{generator_i_forward.6} parent=0 // pred_check_branch
    %10 = sbr.rel (0) target = $region5
  $region4: #{generator_i_forward.6} parent=0 // pred_region
    _
  $region5: #{generator_i_forward.6} parent=0 // pred_fallthru
    _
  // Predicated region
  $region6: #{generator_i_forward.6} parent=0 // pred_check
    _
  $region7: #{generator_i_forward.6} parent=0 // pred_check_branch
    %12 = sbr.rel (0) target = $region9
  $region8: #{generator_i_forward.6} parent=0 // pred_region
    _
  $region9: #{generator_i_forward.6} parent=0 // pred_fallthru
    _
  // Predicated region
  $region10: #{generator_i_forward.6} parent=0 // pred_check
    _
  $region11: #{generator_i_forward.6} parent=0 // pred_check_branch
    %14 = sbr.rel (0) target = $region13
  $region12: #{generator_i_forward.6} parent=0 // pred_region
    _
  $region13: #{generator_i_forward.6} parent=0 // pred_fallthru
    _
  // Predicated region
  $region14: #{generator_i_forward.6} parent=0 // pred_check
    _
  $region15: #{generator_i_forward.6} parent=0 // pred_check_branch
    %16 = sbr.rel (0) target = $region17
  $region16: #{generator_i_forward.6} parent=0 // pred_region
    _
  $region17: #{generator_i_forward.6} parent=0 // pred_fallthru
    _
  %v18 = vld [vmem:[%s0] sm:$0xff]
  %v19 = vld [vmem:[%s0 + $0x8] sm:$0xff]
  %v20 = vld [vmem:[%s0 + $0x10] sm:$0xff]
  %v21 = vld [vmem:[%s0 + $0x18] sm:$0xff]
  %v22 = vld [vmem:[%s1] sm:$0xff]
  %v23 = vld [vmem:[%s1 + $0x8] sm:$0xff]
  %v24 = vld [vmem:[%s1 + $0x10] sm:$0xff]
  %v25 = vld [vmem:[%s1 + $0x18] sm:$0xff]
  %v26 = vld [vmem:[%s1 + $0x20] sm:$0xf]
  %v27 = vld [vmem:[%s1 + $0x24] sm:$0xff]
  %v28 = vld [vmem:[%s1 + $0x2c] sm:$0xff]
  %v29 = vld [vmem:[%s1 + $0x34] sm:$0xff]
  %v30 = vld [vmem:[%s1 + $0x3c] sm:$0xff]
  %v31 = vld [vmem:[%s1 + $0x44] sm:$0xf]
  %v32 = vld [vmem:[%s1 + $0x48] sm:$0xff]
  %v33 = vld [vmem:[%s1 + $0x50] sm:$0xff]
  %v34 = vld [vmem:[%s1 + $0x58] sm:$0xff]
  %v35 = vld [vmem:[%s1 + $0x60] sm:$0xff]
  %v36 = vld [vmem:[%s1 + $0x68] sm:$0xf]
  %v37 = vld [vmem:[%s1 + $0x6c] sm:$0xff]
  %v38 = vld [vmem:[%s1 + $0x74] sm:$0xff]
  %v39 = vld [vmem:[%s1 + $0x7c] sm:$0xff]
  %v40 = vld [vmem:[%s1 + $0x84] sm:$0xff]
  %v41 = vld [vmem:[%s1 + $0x8c] sm:$0xf]
  %v42 = vld [vmem:[%s1 + $0x90] sm:$0xff]
  %v43 = vld [vmem:[%s1 + $0x98] sm:$0xff]
  %v44 = vld [vmem:[%s1 + $0xa0] sm:$0xff]
  %v45 = vld [vmem:[%s1 + $0xa8] sm:$0xff]
  %v46 = vld [vmem:[%s1 + $0xb0] sm:$0xf]
  %v47 = vld [vmem:[%s1 + $0xb4] sm:$0xff]
  %v48 = vld [vmem:[%s1 + $0xbc] sm:$0xff]
  %v49 = vld [vmem:[%s1 + $0xc4] sm:$0xff]
  %v50 = vld [vmem:[%s1 + $0xcc] sm:$0xff]
  %v51 = vld [vmem:[%s1 + $0xd4] sm:$0xf]
  %v52 = vld [vmem:[%s1 + $0xd8] sm:$0xff]
  %v53 = vld [vmem:[%s1 + $0xe0] sm:$0xff]
  %v54 = vld [vmem:[%s1 + $0xe8] sm:$0xff]
  %v55 = vld [vmem:[%s1 + $0xf0] sm:$0xff]
  %v56 = vld [vmem:[%s1 + $0xf8] sm:$0xf]
  %v57 = vld [vmem:[%s1 + $0xfc] sm:$0xff]
  %v58 = vld [vmem:[%s1 + $0x104] sm:$0xff]
  %v59 = vld [vmem:[%s1 + $0x10c] sm:$0xff]
  %v60 = vld [vmem:[%s1 + $0x114] sm:$0xff]
  %v61 = vld [vmem:[%s1 + $0x11c] sm:$0xf]
  %v62 = vld [vmem:[%s1 + $0x120] sm:$0xff]
  %v63 = vld [vmem:[%s1 + $0x128] sm:$0xff]
  %v64 = vld [vmem:[%s1 + $0x130] sm:$0xff]
  %v65 = vld [vmem:[%s1 + $0x138] sm:$0xff]
  %v66 = vld [vmem:[%s1 + $0x140] sm:$0xf]
  %v67 = vld [vmem:[%s1 + $0x144] sm:$0xff]
  %v68 = vld [vmem:[%s1 + $0x14c] sm:$0xff]
  %v69 = vld [vmem:[%s1 + $0x154] sm:$0xff]
  %v70 = vld [vmem:[%s1 + $0x15c] sm:$0xff]
  %v71 = vld [vmem:[%s1 + $0x164] sm:$0xf]
  %v72 = vld [vmem:[%s1 + $0x168] sm:$0xff]
  %v73 = vld [vmem:[%s1 + $0x170] sm:$0xff]
  %v74 = vld [vmem:[%s1 + $0x178] sm:$0xff]
  %v75 = vld [vmem:[%s1 + $0x180] sm:$0xff]
  %v76 = vld [vmem:[%s1 + $0x188] sm:$0xf]
  %v77 = vld [vmem:[%s1 + $0x18c] sm:$0xff]
  %v78 = vld [vmem:[%s1 + $0x194] sm:$0xff]
  %v79 = vld [vmem:[%s1 + $0x19c] sm:$0xff]
  %v80 = vld [vmem:[%s1 + $0x1a4] sm:$0xff]
  %v81 = vld [vmem:[%s1 + $0x1ac] sm:$0xf]
  %v82 = vld [vmem:[%s1 + $0x1b0] sm:$0xff]
  %v83 = vld [vmem:[%s1 + $0x1b8] sm:$0xff]
  %v84 = vld [vmem:[%s1 + $0x1c0] sm:$0xff]
  %v85 = vld [vmem:[%s1 + $0x1c8] sm:$0xff]
  %v86 = vld [vmem:[%s1 + $0x1d0] sm:$0xf]
  %v87 = vld [vmem:[%s1 + $0x1d4] sm:$0xff]
  %v88 = vld [vmem:[%s1 + $0x1dc] sm:$0xff]
  %v89 = vld [vmem:[%s1 + $0x1e4] sm:$0xff]
  %v90 = vld [vmem:[%s1 + $0x1ec] sm:$0xff]
  %v91 = vld [vmem:[%s1 + $0x1f4] sm:$0xf]
  %v92 = vld [vmem:[%s1 + $0x1f8] sm:$0xff]
  %v93 = vld [vmem:[%s1 + $0x200] sm:$0xff]
  %v94 = vld [vmem:[%s1 + $0x208] sm:$0xff]
  %v95 = vld [vmem:[%s1 + $0x210] sm:$0xff]
  %v96 = vld [vmem:[%s1 + $0x218] sm:$0xf]
  %v97 = vld [vmem:[%s1 + $0x21c] sm:$0xff]
  %v98 = vld [vmem:[%s1 + $0x224] sm:$0xff]
  %v99 = vld [vmem:[%s1 + $0x22c] sm:$0xff]
  %v100 = vld [vmem:[%s1 + $0x234] sm:$0xff]
  %v101 = vld [vmem:[%s1 + $0x23c] sm:$0xf]
  %v102 = vld [vmem:[%s1 + $0x240] sm:$0xff]
  %v103 = vld [vmem:[%s1 + $0x248] sm:$0xff]
  %v104 = vld [vmem:[%s1 + $0x250] sm:$0xff]
  %v105 = vld [vmem:[%s1 + $0x258] sm:$0xff]
  %v106 = vld [vmem:[%s1 + $0x260] sm:$0xf]
  %v107 = vld [vmem:[%s1 + $0x264] sm:$0xff]
  %v108 = vld [vmem:[%s1 + $0x26c] sm:$0xff]
  %v109 = vld [vmem:[%s1 + $0x274] sm:$0xff]
  %v110 = vld [vmem:[%s1 + $0x27c] sm:$0xff]
  %v111 = vld [vmem:[%s1 + $0x284] sm:$0xf]
  %v116 = vunpack.c.l.b16 %v18
  %v117 = vunpack.c.h.b16 %v18
  %v118 = vunpack.c.l.b16 %v19
  %v119 = vunpack.c.h.b16 %v19
  %v120 = vunpack.c.l.b16 %v20
  %v121 = vunpack.c.h.b16 %v20
  %v122 = vunpack.c.l.b16 %v21
  %v123 = vunpack.c.h.b16 %v21
  %v124 = vpack.c.b16 %v118, %v116
  %v125 = vpack.c.b16 %v119, %v117
  %v126 = vpack.c.b16 %v122, %v120
  %v127 = vpack.c.b16 %v123, %v121
  %v220 = vunpack.c.l.b16 %v22
  %v221 = vunpack.c.h.b16 %v22
  %v222 = vunpack.c.l.b16 %v23
  %v223 = vunpack.c.h.b16 %v23
  %v224 = vunpack.c.l.b16 %v24
  %v225 = vunpack.c.h.b16 %v24
  %v226 = vunpack.c.l.b16 %v25
  %v227 = vunpack.c.h.b16 %v25
  %v228 = vunpack.c.l.b16 %v26
  %v229 = vunpack.c.l.b16 %v27
  %v230 = vunpack.c.h.b16 %v27
  %v231 = vunpack.c.l.b16 %v28
  %v232 = vunpack.c.h.b16 %v28
  %v233 = vunpack.c.l.b16 %v29
  %v234 = vunpack.c.h.b16 %v29
  %v235 = vunpack.c.l.b16 %v30
  %v236 = vunpack.c.h.b16 %v30
  %v237 = vunpack.c.l.b16 %v31
  %v238 = vunpack.c.l.b16 %v32
  %v239 = vunpack.c.h.b16 %v32
  %v240 = vunpack.c.l.b16 %v33
  %v241 = vunpack.c.h.b16 %v33
  %v242 = vunpack.c.l.b16 %v34
  %v243 = vunpack.c.h.b16 %v34
  %v244 = vunpack.c.l.b16 %v35
  %v245 = vunpack.c.h.b16 %v35
  %v246 = vunpack.c.l.b16 %v36
  %v247 = vunpack.c.l.b16 %v37
  %v248 = vunpack.c.h.b16 %v37
  %v249 = vunpack.c.l.b16 %v38
  %v250 = vunpack.c.h.b16 %v38
  %v251 = vunpack.c.l.b16 %v39
  %v252 = vunpack.c.h.b16 %v39
  %v253 = vunpack.c.l.b16 %v40
  %v254 = vunpack.c.h.b16 %v40
  %v255 = vunpack.c.l.b16 %v41
  %v256 = vunpack.c.l.b16 %v42
  %v257 = vunpack.c.h.b16 %v42
  %v258 = vunpack.c.l.b16 %v43
  %v259 = vunpack.c.h.b16 %v43
  %v260 = vunpack.c.l.b16 %v44
  %v261 = vunpack.c.h.b16 %v44
  %v262 = vunpack.c.l.b16 %v45
  %v263 = vunpack.c.h.b16 %v45
  %v264 = vunpack.c.l.b16 %v46
  %v265 = vunpack.c.l.b16 %v47
  %v266 = vunpack.c.h.b16 %v47
  %v267 = vunpack.c.l.b16 %v48
  %v268 = vunpack.c.h.b16 %v48
  %v269 = vunpack.c.l.b16 %v49
  %v270 = vunpack.c.h.b16 %v49
  %v271 = vunpack.c.l.b16 %v50
  %v272 = vunpack.c.h.b16 %v50
  %v273 = vunpack.c.l.b16 %v51
  %v274 = vunpack.c.l.b16 %v52
  %v275 = vunpack.c.h.b16 %v52
  %v276 = vunpack.c.l.b16 %v53
  %v277 = vunpack.c.h.b16 %v53
  %v278 = vunpack.c.l.b16 %v54
  %v279 = vunpack.c.h.b16 %v54
  %v280 = vunpack.c.l.b16 %v55
  %v281 = vunpack.c.h.b16 %v55
  %v282 = vunpack.c.l.b16 %v56
  %v283 = vunpack.c.l.b16 %v57
  %v284 = vunpack.c.h.b16 %v57
  %v285 = vunpack.c.l.b16 %v58
  %v286 = vunpack.c.h.b16 %v58
  %v287 = vunpack.c.l.b16 %v59
  %v288 = vunpack.c.h.b16 %v59
  %v289 = vunpack.c.l.b16 %v60
  %v290 = vunpack.c.h.b16 %v60
  %v291 = vunpack.c.l.b16 %v61
  %v292 = vunpack.c.l.b16 %v62
  %v293 = vunpack.c.h.b16 %v62
  %v294 = vunpack.c.l.b16 %v63
  %v295 = vunpack.c.h.b16 %v63
  %v296 = vunpack.c.l.b16 %v64
  %v297 = vunpack.c.h.b16 %v64
  %v298 = vunpack.c.l.b16 %v65
  %v299 = vunpack.c.h.b16 %v65
  %v300 = vunpack.c.l.b16 %v66
  %v301 = vunpack.c.l.b16 %v67
  %v302 = vunpack.c.h.b16 %v67
  %v303 = vunpack.c.l.b16 %v68
  %v304 = vunpack.c.h.b16 %v68
  %v305 = vunpack.c.l.b16 %v69
  %v306 = vunpack.c.h.b16 %v69
  %v307 = vunpack.c.l.b16 %v70
  %v308 = vunpack.c.h.b16 %v70
  %v309 = vunpack.c.l.b16 %v71
  %v310 = vunpack.c.l.b16 %v72
  %v311 = vunpack.c.h.b16 %v72
  %v312 = vunpack.c.l.b16 %v73
  %v313 = vunpack.c.h.b16 %v73
  %v314 = vunpack.c.l.b16 %v74
  %v315 = vunpack.c.h.b16 %v74
  %v316 = vunpack.c.l.b16 %v75
  %v317 = vunpack.c.h.b16 %v75
  %v318 = vunpack.c.l.b16 %v76
  %v319 = vunpack.c.l.b16 %v77
  %v320 = vunpack.c.h.b16 %v77
  %v321 = vunpack.c.l.b16 %v78
  %v322 = vunpack.c.h.b16 %v78
  %v323 = vunpack.c.l.b16 %v79
  %v324 = vunpack.c.h.b16 %v79
  %v325 = vunpack.c.l.b16 %v80
  %v326 = vunpack.c.h.b16 %v80
  %v327 = vunpack.c.l.b16 %v81
  %v328 = vunpack.c.l.b16 %v82
  %v329 = vunpack.c.h.b16 %v82
  %v330 = vunpack.c.l.b16 %v83
  %v331 = vunpack.c.h.b16 %v83
  %v332 = vunpack.c.l.b16 %v84
  %v333 = vunpack.c.h.b16 %v84
  %v334 = vunpack.c.l.b16 %v85
  %v335 = vunpack.c.h.b16 %v85
  %v336 = vunpack.c.l.b16 %v86
  %v337 = vunpack.c.l.b16 %v87
  %v338 = vunpack.c.h.b16 %v87
  %v339 = vunpack.c.l.b16 %v88
  %v340 = vunpack.c.h.b16 %v88
  %v341 = vunpack.c.l.b16 %v89
  %v342 = vunpack.c.h.b16 %v89
  %v343 = vunpack.c.l.b16 %v90
  %v344 = vunpack.c.h.b16 %v90
  %v345 = vunpack.c.l.b16 %v91
  %v346 = vunpack.c.l.b16 %v92
  %v347 = vunpack.c.h.b16 %v92
  %v348 = vunpack.c.l.b16 %v93
  %v349 = vunpack.c.h.b16 %v93
  %v350 = vunpack.c.l.b16 %v94
  %v351 = vunpack.c.h.b16 %v94
  %v352 = vunpack.c.l.b16 %v95
  %v353 = vunpack.c.h.b16 %v95
  %v354 = vunpack.c.l.b16 %v96
  %v355 = vunpack.c.l.b16 %v97
  %v356 = vunpack.c.h.b16 %v97
  %v357 = vunpack.c.l.b16 %v98
  %v358 = vunpack.c.h.b16 %v98
  %v359 = vunpack.c.l.b16 %v99
  %v360 = vunpack.c.h.b16 %v99
  %v361 = vunpack.c.l.b16 %v100
  %v362 = vunpack.c.h.b16 %v100
  %v363 = vunpack.c.l.b16 %v101
  %v364 = vunpack.c.l.b16 %v102
  %v365 = vunpack.c.h.b16 %v102
  %v366 = vunpack.c.l.b16 %v103
  %v367 = vunpack.c.h.b16 %v103
  %v368 = vunpack.c.l.b16 %v104
  %v369 = vunpack.c.h.b16 %v104
  %v370 = vunpack.c.l.b16 %v105
  %v371 = vunpack.c.h.b16 %v105
  %v372 = vunpack.c.l.b16 %v106
  %v373 = vunpack.c.l.b16 %v107
  %v374 = vunpack.c.h.b16 %v107
  %v375 = vunpack.c.l.b16 %v108
  %v376 = vunpack.c.h.b16 %v108
  %v377 = vunpack.c.l.b16 %v109
  %v378 = vunpack.c.h.b16 %v109
  %v379 = vunpack.c.l.b16 %v110
  %v380 = vunpack.c.h.b16 %v110
  %v381 = vunpack.c.l.b16 %v111
  %v382 = vpack.c.b16 %v229, %v220
  %v383 = vpack.c.b16 %v230, %v221
  %v384 = vpack.c.b16 %v231, %v222
  %v385 = vpack.c.b16 %v232, %v223
  %v386 = vpack.c.b16 %v233, %v224
  %v387 = vpack.c.b16 %v234, %v225
  %v388 = vpack.c.b16 %v235, %v226
  %v389 = vpack.c.b16 %v236, %v227
  %v390 = vpack.c.b16 %v237, %v228
  %v391 = vpack.c.b16 %v247, %v238
  %v392 = vpack.c.b16 %v248, %v239
  %v393 = vpack.c.b16 %v249, %v240
  %v394 = vpack.c.b16 %v250, %v241
  %v395 = vpack.c.b16 %v251, %v242
  %v396 = vpack.c.b16 %v252, %v243
  %v397 = vpack.c.b16 %v253, %v244
  %v398 = vpack.c.b16 %v254, %v245
  %v399 = vpack.c.b16 %v255, %v246
  %v400 = vpack.c.b16 %v265, %v256
  %v401 = vpack.c.b16 %v266, %v257
  %v402 = vpack.c.b16 %v267, %v258
  %v403 = vpack.c.b16 %v268, %v259
  %v404 = vpack.c.b16 %v269, %v260
  %v405 = vpack.c.b16 %v270, %v261
  %v406 = vpack.c.b16 %v271, %v262
  %v407 = vpack.c.b16 %v272, %v263
  %v408 = vpack.c.b16 %v273, %v264
  %v409 = vpack.c.b16 %v283, %v274
  %v410 = vpack.c.b16 %v284, %v275
  %v411 = vpack.c.b16 %v285, %v276
  %v412 = vpack.c.b16 %v286, %v277
  %v413 = vpack.c.b16 %v287, %v278
  %v414 = vpack.c.b16 %v288, %v279
  %v415 = vpack.c.b16 %v289, %v280
  %v416 = vpack.c.b16 %v290, %v281
  %v417 = vpack.c.b16 %v291, %v282
  %v418 = vpack.c.b16 %v301, %v292
  %v419 = vpack.c.b16 %v302, %v293
  %v420 = vpack.c.b16 %v303, %v294
  %v421 = vpack.c.b16 %v304, %v295
  %v422 = vpack.c.b16 %v305, %v296
  %v423 = vpack.c.b16 %v306, %v297
  %v424 = vpack.c.b16 %v307, %v298
  %v425 = vpack.c.b16 %v308, %v299
  %v426 = vpack.c.b16 %v309, %v300
  %v427 = vpack.c.b16 %v319, %v310
  %v428 = vpack.c.b16 %v320, %v311
  %v429 = vpack.c.b16 %v321, %v312
  %v430 = vpack.c.b16 %v322, %v313
  %v431 = vpack.c.b16 %v323, %v314
  %v432 = vpack.c.b16 %v324, %v315
  %v433 = vpack.c.b16 %v325, %v316
  %v434 = vpack.c.b16 %v326, %v317
  %v435 = vpack.c.b16 %v327, %v318
  %v436 = vpack.c.b16 %v337, %v328
  %v437 = vpack.c.b16 %v338, %v329
  %v438 = vpack.c.b16 %v339, %v330
  %v439 = vpack.c.b16 %v340, %v331
  %v440 = vpack.c.b16 %v341, %v332
  %v441 = vpack.c.b16 %v342, %v333
  %v442 = vpack.c.b16 %v343, %v334
  %v443 = vpack.c.b16 %v344, %v335
  %v444 = vpack.c.b16 %v345, %v336
  %v445 = vpack.c.b16 %v355, %v346
  %v446 = vpack.c.b16 %v356, %v347
  %v447 = vpack.c.b16 %v357, %v348
  %v448 = vpack.c.b16 %v358, %v349
  %v449 = vpack.c.b16 %v359, %v350
  %v450 = vpack.c.b16 %v360, %v351
  %v451 = vpack.c.b16 %v361, %v352
  %v452 = vpack.c.b16 %v362, %v353
  %v453 = vpack.c.b16 %v363, %v354
  %v454 = vpack.c.b16 %v373, %v364
  %v455 = vpack.c.b16 %v374, %v365
  %v456 = vpack.c.b16 %v375, %v366
  %v457 = vpack.c.b16 %v376, %v367
  %v458 = vpack.c.b16 %v377, %v368
  %v459 = vpack.c.b16 %v378, %v369
  %v460 = vpack.c.b16 %v379, %v370
  %v461 = vpack.c.b16 %v380, %v371
  %v462 = vpack.c.b16 %v381, %v372
  %vm544 = vcmask 130048
  %v546 = vsel %vm544, %v125, 0
  %v549 = vsel %vm544, %v127, 0
  %551 = vmatprep.subr.bf16.mxu0 %v383
  %552 = vmatpush1.bf16.msra.mxu0 %v382
  %553 = vmatprep.subr.bf16.mxu0 %v392
  %554 = vmatpush1.bf16.msra.mxu0 %v391
  %555 = vmatprep.subr.bf16.mxu0 %v401
  %556 = vmatpush1.bf16.msra.mxu0 %v400
  %557 = vmatprep.subr.bf16.mxu0 %v410
  %558 = vmatpush1.bf16.msra.mxu0 %v409
  %559 = vmatprep.subr.bf16.mxu0 %v419
  %560 = vmatpush1.bf16.msra.mxu0 %v418
  %561 = vmatprep.subr.bf16.mxu0 %v428
  %562 = vmatpush1.bf16.msra.mxu0 %v427
  %563 = vmatprep.subr.bf16.mxu0 %v437
  %564 = vmatpush1.bf16.msra.mxu0 %v436
  %565 = vmatprep.subr.bf16.mxu0 %v446
  %566 = vmatpush1.bf16.msra.mxu0 %v445
  %567 = vmatprep.subr.bf16.mxu0 %v455
  %568 = vmatpush1.bf16.msra.mxu0 %v454
  %569 = vmatprep.subr.bf16.mxu0 0
  %570 = vmatpush1.bf16.msra.mxu0 0
  %571 = vmatprep.subr.bf16.mxu0 0
  %572 = vmatpush1.bf16.msra.mxu0 0
  %573 = vmatprep.subr.bf16.mxu0 0
  %574 = vmatpush1.bf16.msra.mxu0 0
  %575 = vmatprep.subr.bf16.mxu0 0
  %576 = vmatpush1.bf16.msra.mxu0 0
  %577 = vmatprep.subr.bf16.mxu0 0
  %578 = vmatpush1.bf16.msra.mxu0 0
  %579 = vmatprep.subr.bf16.mxu0 0
  %580 = vmatpush1.bf16.msra.mxu0 0
  %581 = vmatprep.subr.bf16.mxu0 0
  %582 = vmatpush1.bf16.msra.mxu0 0
  %583 = vmatprep.mubr.bf16.mxu0 %v546
  %584 = vmatmul.mubr.bf16.gmra.mrb[0].mxu0 %v124
  %v585 = vpop.f32.mrb[0].mxu0
  %v586 = vadd.f32 0.0, %v585
  %v587 = vpop.f32.mrb[0].mxu0
  %v588 = vadd.f32 0.0, %v587
  %v589 = vpop.f32.mrb[0].mxu0
  %v590 = vadd.f32 0.0, %v589
  %v591 = vpop.f32.mrb[0].mxu0
  %v592 = vadd.f32 0.0, %v591
  %593 = vmatprep.mubr.bf16.mxu0 %v549
  %594 = vmatmul.mubr.bf16.gmra.mrb[0].mxu0 %v126
  %v595 = vpop.f32.mrb[0].mxu0
  %v596 = vadd.f32 0.0, %v595
  %v597 = vpop.f32.mrb[0].mxu0
  %v598 = vadd.f32 0.0, %v597
  %v599 = vpop.f32.mrb[0].mxu0
  %v600 = vadd.f32 0.0, %v599
  %v601 = vpop.f32.mrb[0].mxu0
  %v602 = vadd.f32 0.0, %v601
  %603 = vdwg.mxu0
  %604 = vmatprep.subr.bf16.mxu0 %v385
  %605 = vmatpush1.bf16.msra.mxu0 %v384
  %606 = vmatprep.subr.bf16.mxu0 %v394
  %607 = vmatpush1.bf16.msra.mxu0 %v393
  %608 = vmatprep.subr.bf16.mxu0 %v403
  %609 = vmatpush1.bf16.msra.mxu0 %v402
  %610 = vmatprep.subr.bf16.mxu0 %v412
  %611 = vmatpush1.bf16.msra.mxu0 %v411
  %612 = vmatprep.subr.bf16.mxu0 %v421
  %613 = vmatpush1.bf16.msra.mxu0 %v420
  %614 = vmatprep.subr.bf16.mxu0 %v430
  %615 = vmatpush1.bf16.msra.mxu0 %v429
  %616 = vmatprep.subr.bf16.mxu0 %v439
  %617 = vmatpush1.bf16.msra.mxu0 %v438
  %618 = vmatprep.subr.bf16.mxu0 %v448
  %619 = vmatpush1.bf16.msra.mxu0 %v447
  %620 = vmatprep.subr.bf16.mxu0 %v457
  %621 = vmatpush1.bf16.msra.mxu0 %v456
  %622 = vmatprep.subr.bf16.mxu0 0
  %623 = vmatpush1.bf16.msra.mxu0 0
  %624 = vmatprep.subr.bf16.mxu0 0
  %625 = vmatpush1.bf16.msra.mxu0 0
  %626 = vmatprep.subr.bf16.mxu0 0
  %627 = vmatpush1.bf16.msra.mxu0 0
  %628 = vmatprep.subr.bf16.mxu0 0
  %629 = vmatpush1.bf16.msra.mxu0 0
  %630 = vmatprep.subr.bf16.mxu0 0
  %631 = vmatpush1.bf16.msra.mxu0 0
  %632 = vmatprep.subr.bf16.mxu0 0
  %633 = vmatpush1.bf16.msra.mxu0 0
  %634 = vmatprep.subr.bf16.mxu0 0
  %635 = vmatpush1.bf16.msra.mxu0 0
  %636 = vmatprep.mubr.bf16.mxu0 %v546
  %637 = vmatmul.mubr.bf16.gmra.mrb[0].mxu0 %v124
  %v638 = vpop.f32.mrb[0].mxu0
  %v639 = vadd.f32 0.0, %v638
  %v640 = vpop.f32.mrb[0].mxu0
  %v641 = vadd.f32 0.0, %v640
  %v642 = vpop.f32.mrb[0].mxu0
  %v643 = vadd.f32 0.0, %v642
  %v644 = vpop.f32.mrb[0].mxu0
  %v645 = vadd.f32 0.0, %v644
  %646 = vmatprep.mubr.bf16.mxu0 %v549
  %647 = vmatmul.mubr.bf16.gmra.mrb[0].mxu0 %v126
  %v648 = vpop.f32.mrb[0].mxu0
  %v649 = vadd.f32 0.0, %v648
  %v650 = vpop.f32.mrb[0].mxu0
  %v651 = vadd.f32 0.0, %v650
  %v652 = vpop.f32.mrb[0].mxu0
  %v653 = vadd.f32 0.0, %v652
  %v654 = vpop.f32.mrb[0].mxu0
  %v655 = vadd.f32 0.0, %v654
  %656 = vdwg.mxu0
  %657 = vmatprep.subr.bf16.mxu0 %v387
  %658 = vmatpush1.bf16.msra.mxu0 %v386
  %659 = vmatprep.subr.bf16.mxu0 %v396
  %660 = vmatpush1.bf16.msra.mxu0 %v395
  %661 = vmatprep.subr.bf16.mxu0 %v405
  %662 = vmatpush1.bf16.msra.mxu0 %v404
  %663 = vmatprep.subr.bf16.mxu0 %v414
  %664 = vmatpush1.bf16.msra.mxu0 %v413
  %665 = vmatprep.subr.bf16.mxu0 %v423
  %666 = vmatpush1.bf16.msra.mxu0 %v422
  %667 = vmatprep.subr.bf16.mxu0 %v432
  %668 = vmatpush1.bf16.msra.mxu0 %v431
  %669 = vmatprep.subr.bf16.mxu0 %v441
  %670 = vmatpush1.bf16.msra.mxu0 %v440
  %671 = vmatprep.subr.bf16.mxu0 %v450
  %672 = vmatpush1.bf16.msra.mxu0 %v449
  %673 = vmatprep.subr.bf16.mxu0 %v459
  %674 = vmatpush1.bf16.msra.mxu0 %v458
  %675 = vmatprep.subr.bf16.mxu0 0
  %676 = vmatpush1.bf16.msra.mxu0 0
  %677 = vmatprep.subr.bf16.mxu0 0
  %678 = vmatpush1.bf16.msra.mxu0 0
  %679 = vmatprep.subr.bf16.mxu0 0
  %680 = vmatpush1.bf16.msra.mxu0 0
  %681 = vmatprep.subr.bf16.mxu0 0
  %682 = vmatpush1.bf16.msra.mxu0 0
  %683 = vmatprep.subr.bf16.mxu0 0
  %684 = vmatpush1.bf16.msra.mxu0 0
  %685 = vmatprep.subr.bf16.mxu0 0
  %686 = vmatpush1.bf16.msra.mxu0 0
  %687 = vmatprep.subr.bf16.mxu0 0
  %688 = vmatpush1.bf16.msra.mxu0 0
  %689 = vmatprep.mubr.bf16.mxu0 %v546
  %690 = vmatmul.mubr.bf16.gmra.mrb[0].mxu0 %v124
  %v691 = vpop.f32.mrb[0].mxu0
  %v692 = vadd.f32 0.0, %v691
  %v693 = vpop.f32.mrb[0].mxu0
  %v694 = vadd.f32 0.0, %v693
  %v695 = vpop.f32.mrb[0].mxu0
  %v696 = vadd.f32 0.0, %v695
  %v697 = vpop.f32.mrb[0].mxu0
  %v698 = vadd.f32 0.0, %v697
  %699 = vmatprep.mubr.bf16.mxu0 %v549
  %700 = vmatmul.mubr.bf16.gmra.mrb[0].mxu0 %v126
  %v701 = vpop.f32.mrb[0].mxu0
  %v702 = vadd.f32 0.0, %v701
  %v703 = vpop.f32.mrb[0].mxu0
  %v704 = vadd.f32 0.0, %v703
  %v705 = vpop.f32.mrb[0].mxu0
  %v706 = vadd.f32 0.0, %v705
  %v707 = vpop.f32.mrb[0].mxu0
  %v708 = vadd.f32 0.0, %v707
  %709 = vdwg.mxu0
  %710 = vmatprep.subr.bf16.mxu0 %v389
  %711 = vmatpush1.bf16.msra.mxu0 %v388
  %712 = vmatprep.subr.bf16.mxu0 %v398
  %713 = vmatpush1.bf16.msra.mxu0 %v397
  %714 = vmatprep.subr.bf16.mxu0 %v407
  %715 = vmatpush1.bf16.msra.mxu0 %v406
  %716 = vmatprep.subr.bf16.mxu0 %v416
  %717 = vmatpush1.bf16.msra.mxu0 %v415
  %718 = vmatprep.subr.bf16.mxu0 %v425
  %719 = vmatpush1.bf16.msra.mxu0 %v424
  %720 = vmatprep.subr.bf16.mxu0 %v434
  %721 = vmatpush1.bf16.msra.mxu0 %v433
  %722 = vmatprep.subr.bf16.mxu0 %v443
  %723 = vmatpush1.bf16.msra.mxu0 %v442
  %724 = vmatprep.subr.bf16.mxu0 %v452
  %725 = vmatpush1.bf16.msra.mxu0 %v451
  %726 = vmatprep.subr.bf16.mxu0 %v461
  %727 = vmatpush1.bf16.msra.mxu0 %v460
  %728 = vmatprep.subr.bf16.mxu0 0
  %729 = vmatpush1.bf16.msra.mxu0 0
  %730 = vmatprep.subr.bf16.mxu0 0
  %731 = vmatpush1.bf16.msra.mxu0 0
  %732 = vmatprep.subr.bf16.mxu0 0
  %733 = vmatpush1.bf16.msra.mxu0 0
  %734 = vmatprep.subr.bf16.mxu0 0
  %735 = vmatpush1.bf16.msra.mxu0 0
  %736 = vmatprep.subr.bf16.mxu0 0
  %737 = vmatpush1.bf16.msra.mxu0 0
  %738 = vmatprep.subr.bf16.mxu0 0
  %739 = vmatpush1.bf16.msra.mxu0 0
  %740 = vmatprep.subr.bf16.mxu0 0
  %741 = vmatpush1.bf16.msra.mxu0 0
  %742 = vmatprep.mubr.bf16.mxu0 %v546
  %743 = vmatmul.mubr.bf16.gmra.mrb[0].mxu0 %v124
  %v744 = vpop.f32.mrb[0].mxu0
  %v745 = vadd.f32 0.0, %v744
  %v746 = vpop.f32.mrb[0].mxu0
  %v747 = vadd.f32 0.0, %v746
  %v748 = vpop.f32.mrb[0].mxu0
  %v749 = vadd.f32 0.0, %v748
  %v750 = vpop.f32.mrb[0].mxu0
  %v751 = vadd.f32 0.0, %v750
  %752 = vmatprep.mubr.bf16.mxu0 %v549
  %753 = vmatmul.mubr.bf16.gmra.mrb[0].mxu0 %v126
  %v754 = vpop.f32.mrb[0].mxu0
  %v755 = vadd.f32 0.0, %v754
  %v756 = vpop.f32.mrb[0].mxu0
  %v757 = vadd.f32 0.0, %v756
  %v758 = vpop.f32.mrb[0].mxu0
  %v759 = vadd.f32 0.0, %v758
  %v760 = vpop.f32.mrb[0].mxu0
  %v761 = vadd.f32 0.0, %v760
  %762 = vdwg.mxu0
  %763 = vmatprep.subr.bf16.mxu0 0
  %764 = vmatpush1.bf16.msra.mxu0 %v390
  %765 = vmatprep.subr.bf16.mxu0 0
  %766 = vmatpush1.bf16.msra.mxu0 %v399
  %767 = vmatprep.subr.bf16.mxu0 0
  %768 = vmatpush1.bf16.msra.mxu0 %v408
  %769 = vmatprep.subr.bf16.mxu0 0
  %770 = vmatpush1.bf16.msra.mxu0 %v417
  %771 = vmatprep.subr.bf16.mxu0 0
  %772 = vmatpush1.bf16.msra.mxu0 %v426
  %773 = vmatprep.subr.bf16.mxu0 0
  %774 = vmatpush1.bf16.msra.mxu0 %v435
  %775 = vmatprep.subr.bf16.mxu0 0
  %776 = vmatpush1.bf16.msra.mxu0 %v444
  %777 = vmatprep.subr.bf16.mxu0 0
  %778 = vmatpush1.bf16.msra.mxu0 %v453
  %779 = vmatprep.subr.bf16.mxu0 0
  %780 = vmatpush1.bf16.msra.mxu0 %v462
  %781 = vmatprep.subr.bf16.mxu0 0
  %782 = vmatpush1.bf16.msra.mxu0 0
  %783 = vmatprep.subr.bf16.mxu0 0
  %784 = vmatpush1.bf16.msra.mxu0 0
  %785 = vmatprep.subr.bf16.mxu0 0
  %786 = vmatpush1.bf16.msra.mxu0 0
  %787 = vmatprep.subr.bf16.mxu0 0
  %788 = vmatpush1.bf16.msra.mxu0 0
  %789 = vmatprep.subr.bf16.mxu0 0
  %790 = vmatpush1.bf16.msra.mxu0 0
  %791 = vmatprep.subr.bf16.mxu0 0
  %792 = vmatpush1.bf16.msra.mxu0 0
  %793 = vmatprep.subr.bf16.mxu0 0
  %794 = vmatpush1.bf16.msra.mxu0 0
  %795 = vmatprep.mubr.bf16.mxu0 %v546
  %796 = vmatmul.mubr.bf16.gmra.mrb[0].mxu0 %v124
  %v797 = vpop.f32.mrb[0].mxu0
  %v798 = vadd.f32 0.0, %v797
  %v799 = vpop.f32.mrb[0].mxu0
  %v800 = vpop.f32.mrb[0].mxu0
  %v801 = vadd.f32 0.0, %v800
  %v802 = vpop.f32.mrb[0].mxu0
  %803 = vmatprep.mubr.bf16.mxu0 %v549
  %804 = vmatmul.mubr.bf16.gmra.mrb[0].mxu0 %v126
  %v805 = vpop.f32.mrb[0].mxu0
  %v806 = vadd.f32 0.0, %v805
  %v807 = vpop.f32.mrb[0].mxu0
  %v808 = vpop.f32.mrb[0].mxu0
  %v809 = vadd.f32 0.0, %v808
  %v810 = vpop.f32.mrb[0].mxu0
  %811 = vdwg.mxu0
  %v812 = vadd.f32 %v586, %v588
  %v813 = vadd.f32 %v812, %v639
  %v814 = vadd.f32 %v813, %v641
  %v815 = vadd.f32 %v814, %v692
  %v816 = vadd.f32 %v815, %v694
  %v817 = vadd.f32 %v816, %v745
  %v818 = vadd.f32 %v817, %v747
  %v819 = vadd.f32 %v818, %v798
  %820 = vadd.xlane.f32.xlu0 %v819
  %v821 = vpop.xlane.xlu0 %820
  %v822 = vadd.f32 %v590, %v592
  %v823 = vadd.f32 %v822, %v643
  %v824 = vadd.f32 %v823, %v645
  %v825 = vadd.f32 %v824, %v696
  %v826 = vadd.f32 %v825, %v698
  %v827 = vadd.f32 %v826, %v749
  %v828 = vadd.f32 %v827, %v751
  %v829 = vadd.f32 %v828, %v801
  %830 = vadd.xlane.f32.xlu0 %v829
  %v831 = vpop.xlane.xlu0 %830
  %v832 = vadd.f32 %v596, %v598
  %v833 = vadd.f32 %v832, %v649
  %v834 = vadd.f32 %v833, %v651
  %v835 = vadd.f32 %v834, %v702
  %v836 = vadd.f32 %v835, %v704
  %v837 = vadd.f32 %v836, %v755
  %v838 = vadd.f32 %v837, %v757
  %v839 = vadd.f32 %v838, %v806
  %840 = vadd.xlane.f32.xlu0 %v839
  %v841 = vpop.xlane.xlu0 %840
  %v842 = vadd.f32 %v600, %v602
  %v843 = vadd.f32 %v842, %v653
  %v844 = vadd.f32 %v843, %v655
  %v845 = vadd.f32 %v844, %v706
  %v846 = vadd.f32 %v845, %v708
  %v847 = vadd.f32 %v846, %v759
  %v848 = vadd.f32 %v847, %v761
  %v849 = vadd.f32 %v848, %v809
  %850 = vadd.xlane.f32.xlu0 %v849
  %v851 = vpop.xlane.xlu0 %850
  %v852 = vadd.f32 %v821, %v831
  %v853 = vadd.f32 %v852, %v841
  %v854 = vadd.f32 %v853, %v851
  %v855 = vrcp.pop 4608.0
  %v856 = vmul.f32 %v854, %v855
  %v857 = vsub.f32 %v586, %v856
  %v858 = vsub.f32 %v588, %v856
  %v859 = vsub.f32 %v639, %v856
  %v860 = vsub.f32 %v641, %v856
  %v861 = vsub.f32 %v692, %v856
  %v862 = vsub.f32 %v694, %v856
  %v863 = vsub.f32 %v745, %v856
  %v864 = vsub.f32 %v747, %v856
  %v865 = vsub.f32 %v798, %v856
  %v866 = vsub.f32 %v590, %v856
  %v867 = vsub.f32 %v592, %v856
  %v868 = vsub.f32 %v643, %v856
  %v869 = vsub.f32 %v645, %v856
  %v870 = vsub.f32 %v696, %v856
  %v871 = vsub.f32 %v698, %v856
  %v872 = vsub.f32 %v749, %v856
  %v873 = vsub.f32 %v751, %v856
  %v874 = vsub.f32 %v801, %v856
  %v875 = vsub.f32 %v596, %v856
  %v876 = vsub.f32 %v598, %v856
  %v877 = vsub.f32 %v649, %v856
  %v878 = vsub.f32 %v651, %v856
  %v879 = vsub.f32 %v702, %v856
  %v880 = vsub.f32 %v704, %v856
  %v881 = vsub.f32 %v755, %v856
  %v882 = vsub.f32 %v757, %v856
  %v883 = vsub.f32 %v806, %v856
  %v884 = vsub.f32 %v600, %v856
  %v885 = vsub.f32 %v602, %v856
  %v886 = vsub.f32 %v653, %v856
  %v887 = vsub.f32 %v655, %v856
  %v888 = vsub.f32 %v706, %v856
  %v889 = vsub.f32 %v708, %v856
  %v890 = vsub.f32 %v759, %v856
  %v891 = vsub.f32 %v761, %v856
  %v892 = vsub.f32 %v809, %v856
  %v893 = vmul.f32 %v857, %v857
  %v894 = vmul.f32 %v858, %v858
  %v895 = vmul.f32 %v859, %v859
  %v896 = vmul.f32 %v860, %v860
  %v897 = vmul.f32 %v861, %v861
  %v898 = vmul.f32 %v862, %v862
  %v899 = vmul.f32 %v863, %v863
  %v900 = vmul.f32 %v864, %v864
  %v901 = vmul.f32 %v865, %v865
  %v902 = vmul.f32 %v866, %v866
  %v903 = vmul.f32 %v867, %v867
  %v904 = vmul.f32 %v868, %v868
  %v905 = vmul.f32 %v869, %v869
  %v906 = vmul.f32 %v870, %v870
  %v907 = vmul.f32 %v871, %v871
  %v908 = vmul.f32 %v872, %v872
  %v909 = vmul.f32 %v873, %v873
  %v910 = vmul.f32 %v874, %v874
  %v911 = vmul.f32 %v875, %v875
  %v912 = vmul.f32 %v876, %v876
  %v913 = vmul.f32 %v877, %v877
  %v914 = vmul.f32 %v878, %v878
  %v915 = vmul.f32 %v879, %v879
  %v916 = vmul.f32 %v880, %v880
  %v917 = vmul.f32 %v881, %v881
  %v918 = vmul.f32 %v882, %v882
  %v919 = vmul.f32 %v883, %v883
  %v920 = vmul.f32 %v884, %v884
  %v921 = vmul.f32 %v885, %v885
  %v922 = vmul.f32 %v886, %v886
  %v923 = vmul.f32 %v887, %v887
  %v924 = vmul.f32 %v888, %v888
  %v925 = vmul.f32 %v889, %v889
  %v926 = vmul.f32 %v890, %v890
  %v927 = vmul.f32 %v891, %v891
  %v928 = vmul.f32 %v892, %v892
  %v929 = vadd.f32 %v893, %v894
  %v930 = vadd.f32 %v929, %v895
  %v931 = vadd.f32 %v930, %v896
  %v932 = vadd.f32 %v931, %v897
  %v933 = vadd.f32 %v932, %v898
  %v934 = vadd.f32 %v933, %v899
  %v935 = vadd.f32 %v934, %v900
  %v936 = vadd.f32 %v935, %v901
  %937 = vadd.xlane.f32.xlu0 %v936
  %v938 = vpop.xlane.xlu0 %937
  %v939 = vadd.f32 %v902, %v903
  %v940 = vadd.f32 %v939, %v904
  %v941 = vadd.f32 %v940, %v905
  %v942 = vadd.f32 %v941, %v906
  %v943 = vadd.f32 %v942, %v907
  %v944 = vadd.f32 %v943, %v908
  %v945 = vadd.f32 %v944, %v909
  %v946 = vadd.f32 %v945, %v910
  %947 = vadd.xlane.f32.xlu0 %v946
  %v948 = vpop.xlane.xlu0 %947
  %v949 = vadd.f32 %v911, %v912
  %v950 = vadd.f32 %v949, %v913
  %v951 = vadd.f32 %v950, %v914
  %v952 = vadd.f32 %v951, %v915
  %v953 = vadd.f32 %v952, %v916
  %v954 = vadd.f32 %v953, %v917
  %v955 = vadd.f32 %v954, %v918
  %v956 = vadd.f32 %v955, %v919
  %957 = vadd.xlane.f32.xlu0 %v956
  %v958 = vpop.xlane.xlu0 %957
  %v959 = vadd.f32 %v920, %v921
  %v960 = vadd.f32 %v959, %v922
  %v961 = vadd.f32 %v960, %v923
  %v962 = vadd.f32 %v961, %v924
  %v963 = vadd.f32 %v962, %v925
  %v964 = vadd.f32 %v963, %v926
  %v965 = vadd.f32 %v964, %v927
  %v966 = vadd.f32 %v965, %v928
  %967 = vadd.xlane.f32.xlu0 %v966
  %v968 = vpop.xlane.xlu0 %967
  %v969 = vadd.f32 %v938, %v948
  %v970 = vadd.f32 %v969, %v958
  %v971 = vadd.f32 %v970, %v968
  %v972 = vmul.f32 %v971, %v855
  %v973 = vld [vmem:[%s2] sm:$0xff]
  %v974 = vadd.f32 %v972, 1e-05
  %v975 = vrsqrt.pop %v974
  %v976 = vmul.f32 %v973, %v975
  %v977 = vld [vmem:[%s3] sm:$0xff]
  %v978 = vmul.f32 %v856, %v976
  %v979 = vsub.f32 %v977, %v978
  %981 = vset.pattern.permute.xlu0 0
  %982 = vperm.xlu0 %981, %v976
  %v983 = vpop.permute.xlu0 %982
  %v985 = vmul.f32 %v586, %v983
  %v986 = vmul.f32 %v588, %v983
  %v987 = vmul.f32 %v639, %v983
  %v988 = vmul.f32 %v641, %v983
  %v989 = vmul.f32 %v692, %v983
  %v990 = vmul.f32 %v694, %v983
  %v991 = vmul.f32 %v745, %v983
  %v992 = vmul.f32 %v747, %v983
  %v993 = vmul.f32 %v798, %v983
  %v994 = vmul.f32 %v590, %v983
  %v995 = vmul.f32 %v592, %v983
  %v996 = vmul.f32 %v643, %v983
  %v997 = vmul.f32 %v645, %v983
  %v998 = vmul.f32 %v696, %v983
  %v999 = vmul.f32 %v698, %v983
  %v1000 = vmul.f32 %v749, %v983
  %v1001 = vmul.f32 %v751, %v983
  %v1002 = vmul.f32 %v801, %v983
  %v1003 = vmul.f32 %v596, %v983
  %v1004 = vmul.f32 %v598, %v983
  %v1005 = vmul.f32 %v649, %v983
  %v1006 = vmul.f32 %v651, %v983
  %v1007 = vmul.f32 %v702, %v983
  %v1008 = vmul.f32 %v704, %v983
  %v1009 = vmul.f32 %v755, %v983
  %v1010 = vmul.f32 %v757, %v983
  %v1011 = vmul.f32 %v806, %v983
  %v1012 = vmul.f32 %v600, %v983
  %v1013 = vmul.f32 %v602, %v983
  %v1014 = vmul.f32 %v653, %v983
  %v1015 = vmul.f32 %v655, %v983
  %v1016 = vmul.f32 %v706, %v983
  %v1017 = vmul.f32 %v708, %v983
  %v1018 = vmul.f32 %v759, %v983
  %v1019 = vmul.f32 %v761, %v983
  %v1020 = vmul.f32 %v809, %v983
  %1022 = vset.pattern.permute.xlu0 0
  %1023 = vperm.xlu0 %1022, %v979
  %v1024 = vpop.permute.xlu0 %1023
  %v1026 = vadd.f32 %v985, %v1024
  %v1027 = vadd.f32 %v986, %v1024
  %v1028 = vadd.f32 %v987, %v1024
  %v1029 = vadd.f32 %v988, %v1024
  %v1030 = vadd.f32 %v989, %v1024
  %v1031 = vadd.f32 %v990, %v1024
  %v1032 = vadd.f32 %v991, %v1024
  %v1033 = vadd.f32 %v992, %v1024
  %v1034 = vadd.f32 %v993, %v1024
  %v1035 = vadd.f32 %v994, %v1024
  %v1036 = vadd.f32 %v995, %v1024
  %v1037 = vadd.f32 %v996, %v1024
  %v1038 = vadd.f32 %v997, %v1024
  %v1039 = vadd.f32 %v998, %v1024
  %v1040 = vadd.f32 %v999, %v1024
  %v1041 = vadd.f32 %v1000, %v1024
  %v1042 = vadd.f32 %v1001, %v1024
  %v1043 = vadd.f32 %v1002, %v1024
  %v1044 = vadd.f32 %v1003, %v1024
  %v1045 = vadd.f32 %v1004, %v1024
  %v1046 = vadd.f32 %v1005, %v1024
  %v1047 = vadd.f32 %v1006, %v1024
  %v1048 = vadd.f32 %v1007, %v1024
  %v1049 = vadd.f32 %v1008, %v1024
  %v1050 = vadd.f32 %v1009, %v1024
  %v1051 = vadd.f32 %v1010, %v1024
  %v1052 = vadd.f32 %v1011, %v1024
  %v1053 = vadd.f32 %v1012, %v1024
  %v1054 = vadd.f32 %v1013, %v1024
  %v1055 = vadd.f32 %v1014, %v1024
  %v1056 = vadd.f32 %v1015, %v1024
  %v1057 = vadd.f32 %v1016, %v1024
  %v1058 = vadd.f32 %v1017, %v1024
  %v1059 = vadd.f32 %v1018, %v1024
  %v1060 = vadd.f32 %v1019, %v1024
  %v1061 = vadd.f32 %v1020, %v1024
  %v1062 = vmax.f32 %v1026, 0.0
  %v1063 = vmax.f32 %v1027, 0.0
  %v1064 = vmax.f32 %v1028, 0.0
  %v1065 = vmax.f32 %v1029, 0.0
  %v1066 = vmax.f32 %v1030, 0.0
  %v1067 = vmax.f32 %v1031, 0.0
  %v1068 = vmax.f32 %v1032, 0.0
  %v1069 = vmax.f32 %v1033, 0.0
  %v1070 = vmax.f32 %v1034, 0.0
  %v1071 = vmax.f32 %v1035, 0.0
  %v1072 = vmax.f32 %v1036, 0.0
  %v1073 = vmax.f32 %v1037, 0.0
  %v1074 = vmax.f32 %v1038, 0.0
  %v1075 = vmax.f32 %v1039, 0.0
  %v1076 = vmax.f32 %v1040, 0.0
  %v1077 = vmax.f32 %v1041, 0.0
  %v1078 = vmax.f32 %v1042, 0.0
  %v1079 = vmax.f32 %v1043, 0.0
  %v1080 = vmax.f32 %v1044, 0.0
  %v1081 = vmax.f32 %v1045, 0.0
  %v1082 = vmax.f32 %v1046, 0.0
  %v1083 = vmax.f32 %v1047, 0.0
  %v1084 = vmax.f32 %v1048, 0.0
  %v1085 = vmax.f32 %v1049, 0.0
  %v1086 = vmax.f32 %v1050, 0.0
  %v1087 = vmax.f32 %v1051, 0.0
  %v1088 = vmax.f32 %v1052, 0.0
  %v1089 = vmax.f32 %v1053, 0.0
  %v1090 = vmax.f32 %v1054, 0.0
  %v1091 = vmax.f32 %v1055, 0.0
  %v1092 = vmax.f32 %v1056, 0.0
  %v1093 = vmax.f32 %v1057, 0.0
  %v1094 = vmax.f32 %v1058, 0.0
  %v1095 = vmax.f32 %v1059, 0.0
  %v1096 = vmax.f32 %v1060, 0.0
  %v1097 = vmax.f32 %v1061, 0.0
  %v1098 = vpack.c.bf16 %v1071, %v1062
  %v1099 = vpack.c.bf16 %v1072, %v1063
  %v1100 = vpack.c.bf16 %v1073, %v1064
  %v1101 = vpack.c.bf16 %v1074, %v1065
  %v1102 = vpack.c.bf16 %v1075, %v1066
  %v1103 = vpack.c.bf16 %v1076, %v1067
  %v1104 = vpack.c.bf16 %v1077, %v1068
  %v1105 = vpack.c.bf16 %v1078, %v1069
  %v1106 = vpack.c.bf16 %v1079, %v1070
  %v1107 = vpack.c.bf16 %v1089, %v1080
  %v1108 = vpack.c.bf16 %v1090, %v1081
  %v1109 = vpack.c.bf16 %v1091, %v1082
  %v1110 = vpack.c.bf16 %v1092, %v1083
  %v1111 = vpack.c.bf16 %v1093, %v1084
  %v1112 = vpack.c.bf16 %v1094, %v1085
  %v1113 = vpack.c.bf16 %v1095, %v1086
  %v1114 = vpack.c.bf16 %v1096, %v1087
  %v1115 = vpack.c.bf16 %v1097, %v1088
  %v1134 = vunpack.c.l.b16 %v1098
  %v1135 = vunpack.c.l.b16 %v1099
  %v1136 = vunpack.c.l.b16 %v1100
  %v1137 = vunpack.c.l.b16 %v1101
  %v1138 = vunpack.c.l.b16 %v1102
  %v1139 = vunpack.c.l.b16 %v1103
  %v1140 = vunpack.c.l.b16 %v1104
  %v1141 = vunpack.c.l.b16 %v1105
  %v1142 = vunpack.c.l.b16 %v1106
  %v1143 = vunpack.c.h.b16 %v1098
  %v1144 = vunpack.c.h.b16 %v1099
  %v1145 = vunpack.c.h.b16 %v1100
  %v1146 = vunpack.c.h.b16 %v1101
  %v1147 = vunpack.c.h.b16 %v1102
  %v1148 = vunpack.c.h.b16 %v1103
  %v1149 = vunpack.c.h.b16 %v1104
  %v1150 = vunpack.c.h.b16 %v1105
  %v1151 = vunpack.c.h.b16 %v1106
  %v1152 = vunpack.c.l.b16 %v1107
  %v1153 = vunpack.c.l.b16 %v1108
  %v1154 = vunpack.c.l.b16 %v1109
  %v1155 = vunpack.c.l.b16 %v1110
  %v1156 = vunpack.c.l.b16 %v1111
  %v1157 = vunpack.c.l.b16 %v1112
  %v1158 = vunpack.c.l.b16 %v1113
  %v1159 = vunpack.c.l.b16 %v1114
  %v1160 = vunpack.c.l.b16 %v1115
  %v1161 = vunpack.c.h.b16 %v1107
  %v1162 = vunpack.c.h.b16 %v1108
  %v1163 = vunpack.c.h.b16 %v1109
  %v1164 = vunpack.c.h.b16 %v1110
  %v1165 = vunpack.c.h.b16 %v1111
  %v1166 = vunpack.c.h.b16 %v1112
  %v1167 = vunpack.c.h.b16 %v1113
  %v1168 = vunpack.c.h.b16 %v1114
  %v1169 = vunpack.c.h.b16 %v1115
  %v1170 = vpack.c.b16 %v1135, %v1134
  %v1171 = vpack.c.b16 %v1137, %v1136
  %v1172 = vpack.c.b16 %v1139, %v1138
  %v1173 = vpack.c.b16 %v1141, %v1140
  %v1174 = vpack.c.b16 %v1142, %v1142
  %v1175 = vpack.c.b16 %v1144, %v1143
  %v1176 = vpack.c.b16 %v1146, %v1145
  %v1177 = vpack.c.b16 %v1148, %v1147
  %v1178 = vpack.c.b16 %v1150, %v1149
  %v1179 = vpack.c.b16 %v1151, %v1151
  %v1180 = vpack.c.b16 %v1153, %v1152
  %v1181 = vpack.c.b16 %v1155, %v1154
  %v1182 = vpack.c.b16 %v1157, %v1156
  %v1183 = vpack.c.b16 %v1159, %v1158
  %v1184 = vpack.c.b16 %v1160, %v1160
  %v1185 = vpack.c.b16 %v1162, %v1161
  %v1186 = vpack.c.b16 %v1164, %v1163
  %v1187 = vpack.c.b16 %v1166, %v1165
  %v1188 = vpack.c.b16 %v1168, %v1167
  %v1189 = vpack.c.b16 %v1169, %v1169
  %1210 = vst [vmem:[%s4] sm:$0xff] %v1170
  %1211 = vst [vmem:[%s4 + $0x8] sm:$0xff] %v1171
  %1212 = vst [vmem:[%s4 + $0x10] sm:$0xff] %v1172
  %1213 = vst [vmem:[%s4 + $0x18] sm:$0xff] %v1173
  %1214 = vst [vmem:[%s4 + $0x20] sm:$0xf] %v1174
  %1215 = vst [vmem:[%s4 + $0x24] sm:$0xff] %v1175
  %1216 = vst [vmem:[%s4 + $0x2c] sm:$0xff] %v1176
  %1217 = vst [vmem:[%s4 + $0x34] sm:$0xff] %v1177
  %1218 = vst [vmem:[%s4 + $0x3c] sm:$0xff] %v1178
  %1219 = vst [vmem:[%s4 + $0x44] sm:$0xf] %v1179
  %1220 = vst [vmem:[%s4 + $0x48] sm:$0xff] %v1180
  %1221 = vst [vmem:[%s4 + $0x50] sm:$0xff] %v1181
  %1222 = vst [vmem:[%s4 + $0x58] sm:$0xff] %v1182
  %1223 = vst [vmem:[%s4 + $0x60] sm:$0xff] %v1183
  %1224 = vst [vmem:[%s4 + $0x68] sm:$0xf] %v1184
  %1225 = vst [vmem:[%s4 + $0x6c] sm:$0xff] %v1185
  %1226 = vst [vmem:[%s4 + $0x74] sm:$0xff] %v1186
  %1227 = vst [vmem:[%s4 + $0x7c] sm:$0xff] %v1187
  %1228 = vst [vmem:[%s4 + $0x84] sm:$0xff] %v1188
  %1229 = vst [vmem:[%s4 + $0x8c] sm:$0xf] %v1189
  // Predicated region
  $region18: #{generator_i_forward.6} parent=0 // pred_check
    _
  $region19: #{generator_i_forward.6} parent=0 // pred_check_branch
    %1231 = sbr.rel (0) target = $region21
  $region20: #{generator_i_forward.6} parent=0 // pred_region
    _
  $region21: #{generator_i_forward.6} parent=0 // pred_fallthru
    _
  // Predicated region
  $region22: #{generator_i_forward.6} parent=0 // pred_check
    _
  $region23: #{generator_i_forward.6} parent=0 // pred_check_branch
    %1233 = sbr.rel (0) target = $region25
  $region24: #{generator_i_forward.6} parent=0 // pred_region
    _
  $region25: #{generator_i_forward.6} parent=0 // pred_fallthru
    _

// kernel: generator_i_forward.7
$region0: #{generator_i_forward.7}
  #allocation0 [shape = 'u32[]', space=smem, size = 0x4, offset = 0x4, fixed_abs, tag = 'smem constant byte address 0x4 - core index']
  #allocation1 [shape = 'u32[144,128]{1,0:T(1,128)}', space=vmem, size = 0x12000, scoped, tag = 'internal scratch']
  %s0 = inlined_call_operand.vmem [shape: bf16[12,72], index: 0, kind: input, shape index: {}]
  %s1 = inlined_call_operand.vmem [shape: bf16[72,4608], index: 1, kind: input, shape index: {}]
  %s2 = inlined_call_operand.vmem [shape: f32[12,4608], index: 2, kind: output, shape index: {}]
  %s3 = sld [smem:[#allocation0]]
  $region18: #{generator_i_forward.7} parent=0
    _
  %s5 = ssub.s32 1, %s3
  %s6 = scalar_select 0, %s5, %s3
  // Predicated region
  $region2: #{generator_i_forward.7} parent=0 // pred_check
    _
  $region3: #{generator_i_forward.7} parent=0 // pred_check_branch
    %8 = sbr.rel (0) target = $region5
  $region4: #{generator_i_forward.7} parent=0 // pred_region
    _
  $region5: #{generator_i_forward.7} parent=0 // pred_fallthru
    _
  // Predicated region
  $region6: #{generator_i_forward.7} parent=0 // pred_check
    _
  $region7: #{generator_i_forward.7} parent=0 // pred_check_branch
    %10 = sbr.rel (0) target = $region9
  $region8: #{generator_i_forward.7} parent=0 // pred_region
    _
  $region9: #{generator_i_forward.7} parent=0 // pred_fallthru
    _
  %v12 = vld [vmem:[%s0] sm:$0xf]
  %v13 = vld [vmem:[%s0 + $0x4] sm:$0x3]
  %v14 = vld [vmem:[%s1] sm:$0xff]
  %v15 = vld [vmem:[%s1 + $0x8] sm:$0xff]
  %v16 = vld [vmem:[%s1 + $0x10] sm:$0xff]
  %v17 = vld [vmem:[%s1 + $0x18] sm:$0xff]
  %v18 = vld [vmem:[%s1 + $0x20] sm:$0xff]
  %v19 = vld [vmem:[%s1 + $0x28] sm:$0xff]
  %v20 = vld [vmem:[%s1 + $0x30] sm:$0xff]
  %v21 = vld [vmem:[%s1 + $0x38] sm:$0xff]
  %v22 = vld [vmem:[%s1 + $0x40] sm:$0xff]
  %v23 = vld [vmem:[%s1 + $0x48] sm:$0xff]
  %v24 = vld [vmem:[%s1 + $0x50] sm:$0xff]
  %v25 = vld [vmem:[%s1 + $0x58] sm:$0xff]
  %v26 = vld [vmem:[%s1 + $0x60] sm:$0xff]
  %v27 = vld [vmem:[%s1 + $0x68] sm:$0xff]
  %v28 = vld [vmem:[%s1 + $0x70] sm:$0xff]
  %v29 = vld [vmem:[%s1 + $0x78] sm:$0xff]
  %v30 = vld [vmem:[%s1 + $0x80] sm:$0xff]
  %v31 = vld [vmem:[%s1 + $0x88] sm:$0xff]
  %v32 = vld [vmem:[%s1 + $0x90] sm:$0xff]
  %v33 = vld [vmem:[%s1 + $0x98] sm:$0xff]
  %v34 = vld [vmem:[%s1 + $0xa0] sm:$0xff]
  %v35 = vld [vmem:[%s1 + $0xa8] sm:$0xff]
  %v36 = vld [vmem:[%s1 + $0xb0] sm:$0xff]
  %v37 = vld [vmem:[%s1 + $0xb8] sm:$0xff]
  %v38 = vld [vmem:[%s1 + $0xc0] sm:$0xff]
  %v39 = vld [vmem:[%s1 + $0xc8] sm:$0xff]
  %v40 = vld [vmem:[%s1 + $0xd0] sm:$0xff]
  %v41 = vld [vmem:[%s1 + $0xd8] sm:$0xff]
  %v42 = vld [vmem:[%s1 + $0xe0] sm:$0xff]
  %v43 = vld [vmem:[%s1 + $0xe8] sm:$0xff]
  %v44 = vld [vmem:[%s1 + $0xf0] sm:$0xff]
  %v45 = vld [vmem:[%s1 + $0xf8] sm:$0xff]
  %v46 = vld [vmem:[%s1 + $0x100] sm:$0xff]
  %v47 = vld [vmem:[%s1 + $0x108] sm:$0xff]
  %v48 = vld [vmem:[%s1 + $0x110] sm:$0xff]
  %v49 = vld [vmem:[%s1 + $0x118] sm:$0xff]
  %v50 = vld [vmem:[%s1 + $0x120] sm:$0xff]
  %v51 = vld [vmem:[%s1 + $0x128] sm:$0xff]
  %v52 = vld [vmem:[%s1 + $0x130] sm:$0xff]
  %v53 = vld [vmem:[%s1 + $0x138] sm:$0xff]
  %v54 = vld [vmem:[%s1 + $0x140] sm:$0xff]
  %v55 = vld [vmem:[%s1 + $0x148] sm:$0xff]
  %v56 = vld [vmem:[%s1 + $0x150] sm:$0xff]
  %v57 = vld [vmem:[%s1 + $0x158] sm:$0xff]
  %v58 = vld [vmem:[%s1 + $0x160] sm:$0xff]
  %v59 = vld [vmem:[%s1 + $0x168] sm:$0xff]
  %v60 = vld [vmem:[%s1 + $0x170] sm:$0xff]
  %v61 = vld [vmem:[%s1 + $0x178] sm:$0xff]
  %v62 = vld [vmem:[%s1 + $0x180] sm:$0xff]
  %v63 = vld [vmem:[%s1 + $0x188] sm:$0xff]
  %v64 = vld [vmem:[%s1 + $0x190] sm:$0xff]
  %v65 = vld [vmem:[%s1 + $0x198] sm:$0xff]
  %v66 = vld [vmem:[%s1 + $0x1a0] sm:$0xff]
  %v67 = vld [vmem:[%s1 + $0x1a8] sm:$0xff]
  %v68 = vld [vmem:[%s1 + $0x1b0] sm:$0xff]
  %v69 = vld [vmem:[%s1 + $0x1b8] sm:$0xff]
  %v70 = vld [vmem:[%s1 + $0x1c0] sm:$0xff]
  %v71 = vld [vmem:[%s1 + $0x1c8] sm:$0xff]
  %v72 = vld [vmem:[%s1 + $0x1d0] sm:$0xff]
  %v73 = vld [vmem:[%s1 + $0x1d8] sm:$0xff]
  %v74 = vld [vmem:[%s1 + $0x1e0] sm:$0xff]
  %v75 = vld [vmem:[%s1 + $0x1e8] sm:$0xff]
  %v76 = vld [vmem:[%s1 + $0x1f0] sm:$0xff]
  %v77 = vld [vmem:[%s1 + $0x1f8] sm:$0xff]
  %v78 = vld [vmem:[%s1 + $0x200] sm:$0xff]
  %v79 = vld [vmem:[%s1 + $0x208] sm:$0xff]
  %v80 = vld [vmem:[%s1 + $0x210] sm:$0xff]
  %v81 = vld [vmem:[%s1 + $0x218] sm:$0xff]
  %v82 = vld [vmem:[%s1 + $0x220] sm:$0xff]
  %v83 = vld [vmem:[%s1 + $0x228] sm:$0xff]
  %v84 = vld [vmem:[%s1 + $0x230] sm:$0xff]
  %v85 = vld [vmem:[%s1 + $0x238] sm:$0xff]
  %v86 = vld [vmem:[%s1 + $0x240] sm:$0xff]
  %v87 = vld [vmem:[%s1 + $0x248] sm:$0xff]
  %v88 = vld [vmem:[%s1 + $0x250] sm:$0xff]
  %v89 = vld [vmem:[%s1 + $0x258] sm:$0xff]
  %v90 = vld [vmem:[%s1 + $0x260] sm:$0xff]
  %v91 = vld [vmem:[%s1 + $0x268] sm:$0xff]
  %v92 = vld [vmem:[%s1 + $0x270] sm:$0xff]
  %v93 = vld [vmem:[%s1 + $0x278] sm:$0xff]
  %v94 = vld [vmem:[%s1 + $0x280] sm:$0xff]
  %v95 = vld [vmem:[%s1 + $0x288] sm:$0xff]
  %v96 = vld [vmem:[%s1 + $0x290] sm:$0xff]
  %v97 = vld [vmem:[%s1 + $0x298] sm:$0xff]
  %v98 = vld [vmem:[%s1 + $0x2a0] sm:$0xff]
  %v99 = vld [vmem:[%s1 + $0x2a8] sm:$0xff]
  %v100 = vld [vmem:[%s1 + $0x2b0] sm:$0xff]
  %v101 = vld [vmem:[%s1 + $0x2b8] sm:$0xff]
  %v102 = vld [vmem:[%s1 + $0x2c0] sm:$0xff]
  %v103 = vld [vmem:[%s1 + $0x2c8] sm:$0xff]
  %v104 = vld [vmem:[%s1 + $0x2d0] sm:$0xff]
  %v105 = vld [vmem:[%s1 + $0x2d8] sm:$0xff]
  %v106 = vld [vmem:[%s1 + $0x2e0] sm:$0xff]
  %v107 = vld [vmem:[%s1 + $0x2e8] sm:$0xff]
  %v108 = vld [vmem:[%s1 + $0x2f0] sm:$0xff]
  %v109 = vld [vmem:[%s1 + $0x2f8] sm:$0xff]
  %v110 = vld [vmem:[%s1 + $0x300] sm:$0xff]
  %v111 = vld [vmem:[%s1 + $0x308] sm:$0xff]
  %v112 = vld [vmem:[%s1 + $0x310] sm:$0xff]
  %v113 = vld [vmem:[%s1 + $0x318] sm:$0xff]
  %v114 = vld [vmem:[%s1 + $0x320] sm:$0xff]
  %v115 = vld [vmem:[%s1 + $0x328] sm:$0xff]
  %v116 = vld [vmem:[%s1 + $0x330] sm:$0xff]
  %v117 = vld [vmem:[%s1 + $0x338] sm:$0xff]
  %v118 = vld [vmem:[%s1 + $0x340] sm:$0xff]
  %v119 = vld [vmem:[%s1 + $0x348] sm:$0xff]
  %v120 = vld [vmem:[%s1 + $0x350] sm:$0xff]
  %v121 = vld [vmem:[%s1 + $0x358] sm:$0xff]
  %v122 = vld [vmem:[%s1 + $0x360] sm:$0xff]
  %v123 = vld [vmem:[%s1 + $0x368] sm:$0xff]
  %v124 = vld [vmem:[%s1 + $0x370] sm:$0xff]
  %v125 = vld [vmem:[%s1 + $0x378] sm:$0xff]
  %v126 = vld [vmem:[%s1 + $0x380] sm:$0xff]
  %v127 = vld [vmem:[%s1 + $0x388] sm:$0xff]
  %v128 = vld [vmem:[%s1 + $0x390] sm:$0xff]
  %v129 = vld [vmem:[%s1 + $0x398] sm:$0xff]
  %v130 = vld [vmem:[%s1 + $0x3a0] sm:$0xff]
  %v131 = vld [vmem:[%s1 + $0x3a8] sm:$0xff]
  %v132 = vld [vmem:[%s1 + $0x3b0] sm:$0xff]
  %v133 = vld [vmem:[%s1 + $0x3b8] sm:$0xff]
  %v134 = vld [vmem:[%s1 + $0x3c0] sm:$0xff]
  %v135 = vld [vmem:[%s1 + $0x3c8] sm:$0xff]
  %v136 = vld [vmem:[%s1 + $0x3d0] sm:$0xff]
  %v137 = vld [vmem:[%s1 + $0x3d8] sm:$0xff]
  %v138 = vld [vmem:[%s1 + $0x3e0] sm:$0xff]
  %v139 = vld [vmem:[%s1 + $0x3e8] sm:$0xff]
  %v140 = vld [vmem:[%s1 + $0x3f0] sm:$0xff]
  %v141 = vld [vmem:[%s1 + $0x3f8] sm:$0xff]
  %v142 = vld [vmem:[%s1 + $0x400] sm:$0xff]
  %v143 = vld [vmem:[%s1 + $0x408] sm:$0xff]
  %v144 = vld [vmem:[%s1 + $0x410] sm:$0xff]
  %v145 = vld [vmem:[%s1 + $0x418] sm:$0xff]
  %v146 = vld [vmem:[%s1 + $0x420] sm:$0xff]
  %v147 = vld [vmem:[%s1 + $0x428] sm:$0xff]
  %v148 = vld [vmem:[%s1 + $0x430] sm:$0xff]
  %v149 = vld [vmem:[%s1 + $0x438] sm:$0xff]
  %v150 = vld [vmem:[%s1 + $0x440] sm:$0xff]
  %v151 = vld [vmem:[%s1 + $0x448] sm:$0xff]
  %v152 = vld [vmem:[%s1 + $0x450] sm:$0xff]
  %v153 = vld [vmem:[%s1 + $0x458] sm:$0xff]
  %v154 = vld [vmem:[%s1 + $0x460] sm:$0xff]
  %v155 = vld [vmem:[%s1 + $0x468] sm:$0xff]
  %v156 = vld [vmem:[%s1 + $0x470] sm:$0xff]
  %v157 = vld [vmem:[%s1 + $0x478] sm:$0xff]
  %v158 = vld [vmem:[%s1 + $0x480] sm:$0xff]
  %v159 = vld [vmem:[%s1 + $0x488] sm:$0xff]
  %v160 = vld [vmem:[%s1 + $0x490] sm:$0xff]
  %v161 = vld [vmem:[%s1 + $0x498] sm:$0xff]
  %v162 = vld [vmem:[%s1 + $0x4a0] sm:$0xff]
  %v163 = vld [vmem:[%s1 + $0x4a8] sm:$0xff]
  %v164 = vld [vmem:[%s1 + $0x4b0] sm:$0xff]
  %v165 = vld [vmem:[%s1 + $0x4b8] sm:$0xff]
  %v166 = vld [vmem:[%s1 + $0x4c0] sm:$0xff]
  %v167 = vld [vmem:[%s1 + $0x4c8] sm:$0xff]
  %v168 = vld [vmem:[%s1 + $0x4d0] sm:$0xff]
  %v169 = vld [vmem:[%s1 + $0x4d8] sm:$0xff]
  %v170 = vld [vmem:[%s1 + $0x4e0] sm:$0xff]
  %v171 = vld [vmem:[%s1 + $0x4e8] sm:$0xff]
  %v172 = vld [vmem:[%s1 + $0x4f0] sm:$0xff]
  %v173 = vld [vmem:[%s1 + $0x4f8] sm:$0xff]
  %v174 = vld [vmem:[%s1 + $0x500] sm:$0xff]
  %v175 = vld [vmem:[%s1 + $0x508] sm:$0xff]
  %v178 = vunpack.c.l.b16 %v12
  %v179 = vunpack.c.l.b16 %v13
  %v180 = vpack.c.b16 %v179, %v178
  %v343 = vunpack.c.l.b16 %v14
  %v344 = vunpack.c.h.b16 %v14
  %v345 = vunpack.c.l.b16 %v15
  %v346 = vunpack.c.h.b16 %v15
  %v347 = vunpack.c.l.b16 %v16
  %v348 = vunpack.c.h.b16 %v16
  %v349 = vunpack.c.l.b16 %v17
  %v350 = vunpack.c.h.b16 %v17
  %v351 = vunpack.c.l.b16 %v18
  %v352 = vunpack.c.h.b16 %v18
  %v353 = vunpack.c.l.b16 %v19
  %v354 = vunpack.c.h.b16 %v19
  %v355 = vunpack.c.l.b16 %v20
  %v356 = vunpack.c.h.b16 %v20
  %v357 = vunpack.c.l.b16 %v21
  %v358 = vunpack.c.h.b16 %v21
  %v359 = vunpack.c.l.b16 %v22
  %v360 = vunpack.c.h.b16 %v22
  %v361 = vunpack.c.l.b16 %v23
  %v362 = vunpack.c.h.b16 %v23
  %v363 = vunpack.c.l.b16 %v24
  %v364 = vunpack.c.h.b16 %v24
  %v365 = vunpack.c.l.b16 %v25
  %v366 = vunpack.c.h.b16 %v25
  %v367 = vunpack.c.l.b16 %v26
  %v368 = vunpack.c.h.b16 %v26
  %v369 = vunpack.c.l.b16 %v27
  %v370 = vunpack.c.h.b16 %v27
  %v371 = vunpack.c.l.b16 %v28
  %v372 = vunpack.c.h.b16 %v28
  %v373 = vunpack.c.l.b16 %v29
  %v374 = vunpack.c.h.b16 %v29
  %v375 = vunpack.c.l.b16 %v30
  %v376 = vunpack.c.h.b16 %v30
  %v377 = vunpack.c.l.b16 %v31
  %v378 = vunpack.c.h.b16 %v31
  %v379 = vunpack.c.l.b16 %v32
  %v380 = vunpack.c.h.b16 %v32
  %v381 = vunpack.c.l.b16 %v33
  %v382 = vunpack.c.h.b16 %v33
  %v383 = vunpack.c.l.b16 %v34
  %v384 = vunpack.c.h.b16 %v34
  %v385 = vunpack.c.l.b16 %v35
  %v386 = vunpack.c.h.b16 %v35
  %v387 = vunpack.c.l.b16 %v36
  %v388 = vunpack.c.h.b16 %v36
  %v389 = vunpack.c.l.b16 %v37
  %v390 = vunpack.c.h.b16 %v37
  %v391 = vunpack.c.l.b16 %v38
  %v392 = vunpack.c.h.b16 %v38
  %v393 = vunpack.c.l.b16 %v39
  %v394 = vunpack.c.h.b16 %v39
  %v395 = vunpack.c.l.b16 %v40
  %v396 = vunpack.c.h.b16 %v40
  %v397 = vunpack.c.l.b16 %v41
  %v398 = vunpack.c.h.b16 %v41
  %v399 = vunpack.c.l.b16 %v42
  %v400 = vunpack.c.h.b16 %v42
  %v401 = vunpack.c.l.b16 %v43
  %v402 = vunpack.c.h.b16 %v43
  %v403 = vunpack.c.l.b16 %v44
  %v404 = vunpack.c.h.b16 %v44
  %v405 = vunpack.c.l.b16 %v45
  %v406 = vunpack.c.h.b16 %v45
  %v407 = vunpack.c.l.b16 %v46
  %v408 = vunpack.c.h.b16 %v46
  %v409 = vunpack.c.l.b16 %v47
  %v410 = vunpack.c.h.b16 %v47
  %v411 = vunpack.c.l.b16 %v48
  %v412 = vunpack.c.h.b16 %v48
  %v413 = vunpack.c.l.b16 %v49
  %v414 = vunpack.c.h.b16 %v49
  %v415 = vunpack.c.l.b16 %v50
  %v416 = vunpack.c.h.b16 %v50
  %v417 = vunpack.c.l.b16 %v51
  %v418 = vunpack.c.h.b16 %v51
  %v419 = vunpack.c.l.b16 %v52
  %v420 = vunpack.c.h.b16 %v52
  %v421 = vunpack.c.l.b16 %v53
  %v422 = vunpack.c.h.b16 %v53
  %v423 = vunpack.c.l.b16 %v54
  %v424 = vunpack.c.h.b16 %v54
  %v425 = vunpack.c.l.b16 %v55
  %v426 = vunpack.c.h.b16 %v55
  %v427 = vunpack.c.l.b16 %v56
  %v428 = vunpack.c.h.b16 %v56
  %v429 = vunpack.c.l.b16 %v57
  %v430 = vunpack.c.h.b16 %v57
  %v431 = vunpack.c.l.b16 %v58
  %v432 = vunpack.c.h.b16 %v58
  %v433 = vunpack.c.l.b16 %v59
  %v434 = vunpack.c.h.b16 %v59
  %v435 = vunpack.c.l.b16 %v60
  %v436 = vunpack.c.h.b16 %v60
  %v437 = vunpack.c.l.b16 %v61
  %v438 = vunpack.c.h.b16 %v61
  %v439 = vunpack.c.l.b16 %v62
  %v440 = vunpack.c.h.b16 %v62
  %v441 = vunpack.c.l.b16 %v63
  %v442 = vunpack.c.h.b16 %v63
  %v443 = vunpack.c.l.b16 %v64
  %v444 = vunpack.c.h.b16 %v64
  %v445 = vunpack.c.l.b16 %v65
  %v446 = vunpack.c.h.b16 %v65
  %v447 = vunpack.c.l.b16 %v66
  %v448 = vunpack.c.h.b16 %v66
  %v449 = vunpack.c.l.b16 %v67
  %v450 = vunpack.c.h.b16 %v67
  %v451 = vunpack.c.l.b16 %v68
  %v452 = vunpack.c.h.b16 %v68
  %v453 = vunpack.c.l.b16 %v69
  %v454 = vunpack.c.h.b16 %v69
  %v455 = vunpack.c.l.b16 %v70
  %v456 = vunpack.c.h.b16 %v70
  %v457 = vunpack.c.l.b16 %v71
  %v458 = vunpack.c.h.b16 %v71
  %v459 = vunpack.c.l.b16 %v72
  %v460 = vunpack.c.h.b16 %v72
  %v461 = vunpack.c.l.b16 %v73
  %v462 = vunpack.c.h.b16 %v73
  %v463 = vunpack.c.l.b16 %v74
  %v464 = vunpack.c.h.b16 %v74
  %v465 = vunpack.c.l.b16 %v75
  %v466 = vunpack.c.h.b16 %v75
  %v467 = vunpack.c.l.b16 %v76
  %v468 = vunpack.c.h.b16 %v76
  %v469 = vunpack.c.l.b16 %v77
  %v470 = vunpack.c.h.b16 %v77
  %v471 = vunpack.c.l.b16 %v78
  %v472 = vunpack.c.h.b16 %v78
  %v473 = vunpack.c.l.b16 %v79
  %v474 = vunpack.c.h.b16 %v79
  %v475 = vunpack.c.l.b16 %v80
  %v476 = vunpack.c.h.b16 %v80
  %v477 = vunpack.c.l.b16 %v81
  %v478 = vunpack.c.h.b16 %v81
  %v479 = vunpack.c.l.b16 %v82
  %v480 = vunpack.c.h.b16 %v82
  %v481 = vunpack.c.l.b16 %v83
  %v482 = vunpack.c.h.b16 %v83
  %v483 = vunpack.c.l.b16 %v84
  %v484 = vunpack.c.h.b16 %v84
  %v485 = vunpack.c.l.b16 %v85
  %v486 = vunpack.c.h.b16 %v85
  %v487 = vunpack.c.l.b16 %v86
  %v488 = vunpack.c.h.b16 %v86
  %v489 = vunpack.c.l.b16 %v87
  %v490 = vunpack.c.h.b16 %v87
  %v491 = vunpack.c.l.b16 %v88
  %v492 = vunpack.c.h.b16 %v88
  %v493 = vunpack.c.l.b16 %v89
  %v494 = vunpack.c.h.b16 %v89
  %v495 = vunpack.c.l.b16 %v90
  %v496 = vunpack.c.h.b16 %v90
  %v497 = vunpack.c.l.b16 %v91
  %v498 = vunpack.c.h.b16 %v91
  %v499 = vunpack.c.l.b16 %v92
  %v500 = vunpack.c.h.b16 %v92
  %v501 = vunpack.c.l.b16 %v93
  %v502 = vunpack.c.h.b16 %v93
  %v503 = vunpack.c.l.b16 %v94
  %v504 = vunpack.c.h.b16 %v94
  %v505 = vunpack.c.l.b16 %v95
  %v506 = vunpack.c.h.b16 %v95
  %v507 = vunpack.c.l.b16 %v96
  %v508 = vunpack.c.h.b16 %v96
  %v509 = vunpack.c.l.b16 %v97
  %v510 = vunpack.c.h.b16 %v97
  %v511 = vunpack.c.l.b16 %v98
  %v512 = vunpack.c.h.b16 %v98
  %v513 = vunpack.c.l.b16 %v99
  %v514 = vunpack.c.h.b16 %v99
  %v515 = vunpack.c.l.b16 %v100
  %v516 = vunpack.c.h.b16 %v100
  %v517 = vunpack.c.l.b16 %v101
  %v518 = vunpack.c.h.b16 %v101
  %v519 = vunpack.c.l.b16 %v102
  %v520 = vunpack.c.h.b16 %v102
  %v521 = vunpack.c.l.b16 %v103
  %v522 = vunpack.c.h.b16 %v103
  %v523 = vunpack.c.l.b16 %v104
  %v524 = vunpack.c.h.b16 %v104
  %v525 = vunpack.c.l.b16 %v105
  %v526 = vunpack.c.h.b16 %v105
  %v527 = vunpack.c.l.b16 %v106
  %v528 = vunpack.c.h.b16 %v106
  %v529 = vunpack.c.l.b16 %v107
  %v530 = vunpack.c.h.b16 %v107
  %v531 = vunpack.c.l.b16 %v108
  %v532 = vunpack.c.h.b16 %v108
  %v533 = vunpack.c.l.b16 %v109
  %v534 = vunpack.c.h.b16 %v109
  %v535 = vunpack.c.l.b16 %v110
  %v536 = vunpack.c.h.b16 %v110
  %v537 = vunpack.c.l.b16 %v111
  %v538 = vunpack.c.h.b16 %v111
  %v539 = vunpack.c.l.b16 %v112
  %v540 = vunpack.c.h.b16 %v112
  %v541 = vunpack.c.l.b16 %v113
  %v542 = vunpack.c.h.b16 %v113
  %v543 = vunpack.c.l.b16 %v114
  %v544 = vunpack.c.h.b16 %v114
  %v545 = vunpack.c.l.b16 %v115
  %v546 = vunpack.c.h.b16 %v115
  %v547 = vunpack.c.l.b16 %v116
  %v548 = vunpack.c.h.b16 %v116
  %v549 = vunpack.c.l.b16 %v117
  %v550 = vunpack.c.h.b16 %v117
  %v551 = vunpack.c.l.b16 %v118
  %v552 = vunpack.c.h.b16 %v118
  %v553 = vunpack.c.l.b16 %v119
  %v554 = vunpack.c.h.b16 %v119
  %v555 = vunpack.c.l.b16 %v120
  %v556 = vunpack.c.h.b16 %v120
  %v557 = vunpack.c.l.b16 %v121
  %v558 = vunpack.c.h.b16 %v121
  %v559 = vunpack.c.l.b16 %v122
  %v560 = vunpack.c.h.b16 %v122
  %v561 = vunpack.c.l.b16 %v123
  %v562 = vunpack.c.h.b16 %v123
  %v563 = vunpack.c.l.b16 %v124
  %v564 = vunpack.c.h.b16 %v124
  %v565 = vunpack.c.l.b16 %v125
  %v566 = vunpack.c.h.b16 %v125
  %v567 = vunpack.c.l.b16 %v126
  %v568 = vunpack.c.h.b16 %v126
  %v569 = vunpack.c.l.b16 %v127
  %v570 = vunpack.c.h.b16 %v127
  %v571 = vunpack.c.l.b16 %v128
  %v572 = vunpack.c.h.b16 %v128
  %v573 = vunpack.c.l.b16 %v129
  %v574 = vunpack.c.h.b16 %v129
  %v575 = vunpack.c.l.b16 %v130
  %v576 = vunpack.c.h.b16 %v130
  %v577 = vunpack.c.l.b16 %v131
  %v578 = vunpack.c.h.b16 %v131
  %v579 = vunpack.c.l.b16 %v132
  %v580 = vunpack.c.h.b16 %v132
  %v581 = vunpack.c.l.b16 %v133
  %v582 = vunpack.c.h.b16 %v133
  %v583 = vunpack.c.l.b16 %v134
  %v584 = vunpack.c.h.b16 %v134
  %v585 = vunpack.c.l.b16 %v135
  %v586 = vunpack.c.h.b16 %v135
  %v587 = vunpack.c.l.b16 %v136
  %v588 = vunpack.c.h.b16 %v136
  %v589 = vunpack.c.l.b16 %v137
  %v590 = vunpack.c.h.b16 %v137
  %v591 = vunpack.c.l.b16 %v138
  %v592 = vunpack.c.h.b16 %v138
  %v593 = vunpack.c.l.b16 %v139
  %v594 = vunpack.c.h.b16 %v139
  %v595 = vunpack.c.l.b16 %v140
  %v596 = vunpack.c.h.b16 %v140
  %v597 = vunpack.c.l.b16 %v141
  %v598 = vunpack.c.h.b16 %v141
  %v599 = vunpack.c.l.b16 %v142
  %v600 = vunpack.c.h.b16 %v142
  %v601 = vunpack.c.l.b16 %v143
  %v602 = vunpack.c.h.b16 %v143
  %v603 = vunpack.c.l.b16 %v144
  %v604 = vunpack.c.h.b16 %v144
  %v605 = vunpack.c.l.b16 %v145
  %v606 = vunpack.c.h.b16 %v145
  %v607 = vunpack.c.l.b16 %v146
  %v608 = vunpack.c.h.b16 %v146
  %v609 = vunpack.c.l.b16 %v147
  %v610 = vunpack.c.h.b16 %v147
  %v611 = vunpack.c.l.b16 %v148
  %v612 = vunpack.c.h.b16 %v148
  %v613 = vunpack.c.l.b16 %v149
  %v614 = vunpack.c.h.b16 %v149
  %v615 = vunpack.c.l.b16 %v150
  %v616 = vunpack.c.h.b16 %v150
  %v617 = vunpack.c.l.b16 %v151
  %v618 = vunpack.c.h.b16 %v151
  %v619 = vunpack.c.l.b16 %v152
  %v620 = vunpack.c.h.b16 %v152
  %v621 = vunpack.c.l.b16 %v153
  %v622 = vunpack.c.h.b16 %v153
  %v623 = vunpack.c.l.b16 %v154
  %v624 = vunpack.c.h.b16 %v154
  %v625 = vunpack.c.l.b16 %v155
  %v626 = vunpack.c.h.b16 %v155
  %v627 = vunpack.c.l.b16 %v156
  %v628 = vunpack.c.h.b16 %v156
  %v629 = vunpack.c.l.b16 %v157
  %v630 = vunpack.c.h.b16 %v157
  %v631 = vunpack.c.l.b16 %v158
  %v632 = vunpack.c.h.b16 %v158
  %v633 = vunpack.c.l.b16 %v159
  %v634 = vunpack.c.h.b16 %v159
  %v635 = vunpack.c.l.b16 %v160
  %v636 = vunpack.c.h.b16 %v160
  %v637 = vunpack.c.l.b16 %v161
  %v638 = vunpack.c.h.b16 %v161
  %v639 = vunpack.c.l.b16 %v162
  %v640 = vunpack.c.h.b16 %v162
  %v641 = vunpack.c.l.b16 %v163
  %v642 = vunpack.c.h.b16 %v163
  %v643 = vunpack.c.l.b16 %v164
  %v644 = vunpack.c.h.b16 %v164
  %v645 = vunpack.c.l.b16 %v165
  %v646 = vunpack.c.h.b16 %v165
  %v647 = vunpack.c.l.b16 %v166
  %v648 = vunpack.c.h.b16 %v166
  %v649 = vunpack.c.l.b16 %v167
  %v650 = vunpack.c.h.b16 %v167
  %v651 = vunpack.c.l.b16 %v168
  %v652 = vunpack.c.h.b16 %v168
  %v653 = vunpack.c.l.b16 %v169
  %v654 = vunpack.c.h.b16 %v169
  %v655 = vunpack.c.l.b16 %v170
  %v656 = vunpack.c.h.b16 %v170
  %v657 = vunpack.c.l.b16 %v171
  %v658 = vunpack.c.h.b16 %v171
  %v659 = vunpack.c.l.b16 %v172
  %v660 = vunpack.c.h.b16 %v172
  %v661 = vunpack.c.l.b16 %v173
  %v662 = vunpack.c.h.b16 %v173
  %v663 = vunpack.c.l.b16 %v174
  %v664 = vunpack.c.h.b16 %v174
  %v665 = vunpack.c.l.b16 %v175
  %v666 = vunpack.c.h.b16 %v175
  %v667 = vpack.c.b16 %v379, %v343
  %v668 = vpack.c.b16 %v380, %v344
  %v669 = vpack.c.b16 %v381, %v345
  %v670 = vpack.c.b16 %v382, %v346
  %v671 = vpack.c.b16 %v383, %v347
  %v672 = vpack.c.b16 %v384, %v348
  %v673 = vpack.c.b16 %v385, %v349
  %v674 = vpack.c.b16 %v386, %v350
  %v675 = vpack.c.b16 %v387, %v351
  %v676 = vpack.c.b16 %v388, %v352
  %v677 = vpack.c.b16 %v389, %v353
  %v678 = vpack.c.b16 %v390, %v354
  %v679 = vpack.c.b16 %v391, %v355
  %v680 = vpack.c.b16 %v392, %v356
  %v681 = vpack.c.b16 %v393, %v357
  %v682 = vpack.c.b16 %v394, %v358
  %v683 = vpack.c.b16 %v395, %v359
  %v684 = vpack.c.b16 %v396, %v360
  %v685 = vpack.c.b16 %v397, %v361
  %v686 = vpack.c.b16 %v398, %v362
  %v687 = vpack.c.b16 %v399, %v363
  %v688 = vpack.c.b16 %v400, %v364
  %v689 = vpack.c.b16 %v401, %v365
  %v690 = vpack.c.b16 %v402, %v366
  %v691 = vpack.c.b16 %v403, %v367
  %v692 = vpack.c.b16 %v404, %v368
  %v693 = vpack.c.b16 %v405, %v369
  %v694 = vpack.c.b16 %v406, %v370
  %v695 = vpack.c.b16 %v407, %v371
  %v696 = vpack.c.b16 %v408, %v372
  %v697 = vpack.c.b16 %v409, %v373
  %v698 = vpack.c.b16 %v410, %v374
  %v699 = vpack.c.b16 %v411, %v375
  %v700 = vpack.c.b16 %v412, %v376
  %v701 = vpack.c.b16 %v413, %v377
  %v702 = vpack.c.b16 %v414, %v378
  %v703 = vpack.c.b16 %v451, %v415
  %v704 = vpack.c.b16 %v452, %v416
  %v705 = vpack.c.b16 %v453, %v417
  %v706 = vpack.c.b16 %v454, %v418
  %v707 = vpack.c.b16 %v455, %v419
  %v708 = vpack.c.b16 %v456, %v420
  %v709 = vpack.c.b16 %v457, %v421
  %v710 = vpack.c.b16 %v458, %v422
  %v711 = vpack.c.b16 %v459, %v423
  %v712 = vpack.c.b16 %v460, %v424
  %v713 = vpack.c.b16 %v461, %v425
  %v714 = vpack.c.b16 %v462, %v426
  %v715 = vpack.c.b16 %v463, %v427
  %v716 = vpack.c.b16 %v464, %v428
  %v717 = vpack.c.b16 %v465, %v429
  %v718 = vpack.c.b16 %v466, %v430
  %v719 = vpack.c.b16 %v467, %v431
  %v720 = vpack.c.b16 %v468, %v432
  %v721 = vpack.c.b16 %v469, %v433
  %v722 = vpack.c.b16 %v470, %v434
  %v723 = vpack.c.b16 %v471, %v435
  %v724 = vpack.c.b16 %v472, %v436
  %v725 = vpack.c.b16 %v473, %v437
  %v726 = vpack.c.b16 %v474, %v438
  %v727 = vpack.c.b16 %v475, %v439
  %v728 = vpack.c.b16 %v476, %v440
  %v729 = vpack.c.b16 %v477, %v441
  %v730 = vpack.c.b16 %v478, %v442
  %v731 = vpack.c.b16 %v479, %v443
  %v732 = vpack.c.b16 %v480, %v444
  %v733 = vpack.c.b16 %v481, %v445
  %v734 = vpack.c.b16 %v482, %v446
  %v735 = vpack.c.b16 %v483, %v447
  %v736 = vpack.c.b16 %v484, %v448
  %v737 = vpack.c.b16 %v485, %v449
  %v738 = vpack.c.b16 %v486, %v450
  %v739 = vpack.c.b16 %v523, %v487
  %v740 = vpack.c.b16 %v524, %v488
  %v741 = vpack.c.b16 %v525, %v489
  %v742 = vpack.c.b16 %v526, %v490
  %v743 = vpack.c.b16 %v527, %v491
  %v744 = vpack.c.b16 %v528, %v492
  %v745 = vpack.c.b16 %v529, %v493
  %v746 = vpack.c.b16 %v530, %v494
  %v747 = vpack.c.b16 %v531, %v495
  %v748 = vpack.c.b16 %v532, %v496
  %v749 = vpack.c.b16 %v533, %v497
  %v750 = vpack.c.b16 %v534, %v498
  %v751 = vpack.c.b16 %v535, %v499
  %v752 = vpack.c.b16 %v536, %v500
  %v753 = vpack.c.b16 %v537, %v501
  %v754 = vpack.c.b16 %v538, %v502
  %v755 = vpack.c.b16 %v539, %v503
  %v756 = vpack.c.b16 %v540, %v504
  %v757 = vpack.c.b16 %v541, %v505
  %v758 = vpack.c.b16 %v542, %v506
  %v759 = vpack.c.b16 %v543, %v507
  %v760 = vpack.c.b16 %v544, %v508
  %v761 = vpack.c.b16 %v545, %v509
  %v762 = vpack.c.b16 %v546, %v510
  %v763 = vpack.c.b16 %v547, %v511
  %v764 = vpack.c.b16 %v548, %v512
  %v765 = vpack.c.b16 %v549, %v513
  %v766 = vpack.c.b16 %v550, %v514
  %v767 = vpack.c.b16 %v551, %v515
  %v768 = vpack.c.b16 %v552, %v516
  %v769 = vpack.c.b16 %v553, %v517
  %v770 = vpack.c.b16 %v554, %v518
  %v771 = vpack.c.b16 %v555, %v519
  %v772 = vpack.c.b16 %v556, %v520
  %v773 = vpack.c.b16 %v557, %v521
  %v774 = vpack.c.b16 %v558, %v522
  %v775 = vpack.c.b16 %v595, %v559
  %v776 = vpack.c.b16 %v596, %v560
  %v777 = vpack.c.b16 %v597, %v561
  %v778 = vpack.c.b16 %v598, %v562
  %v779 = vpack.c.b16 %v599, %v563
  %v780 = vpack.c.b16 %v600, %v564
  %v781 = vpack.c.b16 %v601, %v565
  %v782 = vpack.c.b16 %v602, %v566
  %v783 = vpack.c.b16 %v603, %v567
  %v784 = vpack.c.b16 %v604, %v568
  %v785 = vpack.c.b16 %v605, %v569
  %v786 = vpack.c.b16 %v606, %v570
  %v787 = vpack.c.b16 %v607, %v571
  %v788 = vpack.c.b16 %v608, %v572
  %v789 = vpack.c.b16 %v609, %v573
  %v790 = vpack.c.b16 %v610, %v574
  %v791 = vpack.c.b16 %v611, %v575
  %v792 = vpack.c.b16 %v612, %v576
  %v793 = vpack.c.b16 %v613, %v577
  %v794 = vpack.c.b16 %v614, %v578
  %v795 = vpack.c.b16 %v615, %v579
  %v796 = vpack.c.b16 %v616, %v580
  %v797 = vpack.c.b16 %v617, %v581
  %v798 = vpack.c.b16 %v618, %v582
  %v799 = vpack.c.b16 %v619, %v583
  %v800 = vpack.c.b16 %v620, %v584
  %v801 = vpack.c.b16 %v621, %v585
  %v802 = vpack.c.b16 %v622, %v586
  %v803 = vpack.c.b16 %v623, %v587
  %v804 = vpack.c.b16 %v624, %v588
  %v805 = vpack.c.b16 %v625, %v589
  %v806 = vpack.c.b16 %v626, %v590
  %v807 = vpack.c.b16 %v627, %v591
  %v808 = vpack.c.b16 %v628, %v592
  %v809 = vpack.c.b16 %v629, %v593
  %v810 = vpack.c.b16 %v630, %v594
  %v811 = vpack.c.b16 %v631, %v631
  %v812 = vpack.c.b16 %v632, %v632
  %v813 = vpack.c.b16 %v633, %v633
  %v814 = vpack.c.b16 %v634, %v634
  %v815 = vpack.c.b16 %v635, %v635
  %v816 = vpack.c.b16 %v636, %v636
  %v817 = vpack.c.b16 %v637, %v637
  %v818 = vpack.c.b16 %v638, %v638
  %v819 = vpack.c.b16 %v639, %v639
  %v820 = vpack.c.b16 %v640, %v640
  %v821 = vpack.c.b16 %v641, %v641
  %v822 = vpack.c.b16 %v642, %v642
  %v823 = vpack.c.b16 %v643, %v643
  %v824 = vpack.c.b16 %v644, %v644
  %v825 = vpack.c.b16 %v645, %v645
  %v826 = vpack.c.b16 %v646, %v646
  %v827 = vpack.c.b16 %v647, %v647
  %v828 = vpack.c.b16 %v648, %v648
  %v829 = vpack.c.b16 %v649, %v649
  %v830 = vpack.c.b16 %v650, %v650
  %v831 = vpack.c.b16 %v651, %v651
  %v832 = vpack.c.b16 %v652, %v652
  %v833 = vpack.c.b16 %v653, %v653
  %v834 = vpack.c.b16 %v654, %v654
  %v835 = vpack.c.b16 %v655, %v655
  %v836 = vpack.c.b16 %v656, %v656
  %v837 = vpack.c.b16 %v657, %v657
  %v838 = vpack.c.b16 %v658, %v658
  %v839 = vpack.c.b16 %v659, %v659
  %v840 = vpack.c.b16 %v660, %v660
  %v841 = vpack.c.b16 %v661, %v661
  %v842 = vpack.c.b16 %v662, %v662
  %v843 = vpack.c.b16 %v663, %v663
  %v844 = vpack.c.b16 %v664, %v664
  %v845 = vpack.c.b16 %v665, %v665
  %v846 = vpack.c.b16 %v666, %v666
  %vm991 = vcmask 588800
  %v993 = vsel %vm991, %v180, 0
  %vm995 = vcmask 1043456
  %v997 = vsel %vm995, %v811, 0
  %v1000 = vsel %vm995, %v812, 0
  %v1003 = vsel %vm995, %v813, 0
  %v1006 = vsel %vm995, %v814, 0
  %v1009 = vsel %vm995, %v815, 0
  %v1012 = vsel %vm995, %v816, 0
  %v1015 = vsel %vm995, %v817, 0
  %v1018 = vsel %vm995, %v818, 0
  %v1021 = vsel %vm995, %v819, 0
  %v1024 = vsel %vm995, %v820, 0
  %v1027 = vsel %vm995, %v821, 0
  %v1030 = vsel %vm995, %v822, 0
  %v1033 = vsel %vm995, %v823, 0
  %v1036 = vsel %vm995, %v824, 0
  %v1039 = vsel %vm995, %v825, 0
  %v1042 = vsel %vm995, %v826, 0
  %v1045 = vsel %vm995, %v827, 0
  %v1048 = vsel %vm995, %v828, 0
  %v1051 = vsel %vm995, %v829, 0
  %v1054 = vsel %vm995, %v830, 0
  %v1057 = vsel %vm995, %v831, 0
  %v1060 = vsel %vm995, %v832, 0
  %v1063 = vsel %vm995, %v833, 0
  %v1066 = vsel %vm995, %v834, 0
  %v1069 = vsel %vm995, %v835, 0
  %v1072 = vsel %vm995, %v836, 0
  %v1075 = vsel %vm995, %v837, 0
  %v1078 = vsel %vm995, %v838, 0
  %v1081 = vsel %vm995, %v839, 0
  %v1084 = vsel %vm995, %v840, 0
  %v1087 = vsel %vm995, %v841, 0
  %v1090 = vsel %vm995, %v842, 0
  %v1093 = vsel %vm995, %v843, 0
  %v1096 = vsel %vm995, %v844, 0
  %v1099 = vsel %vm995, %v845, 0
  %v1102 = vsel %vm995, %v846, 0
  %1104 = vmatprep.subr.bf16.mxu0 %v668
  %1105 = vmatpush1.bf16.msra.mxu0 %v667
  %1106 = vmatprep.subr.bf16.mxu0 %v704
  %1107 = vmatpush1.bf16.msra.mxu0 %v703
  %1108 = vmatprep.subr.bf16.mxu0 %v740
  %1109 = vmatpush1.bf16.msra.mxu0 %v739
  %1110 = vmatprep.subr.bf16.mxu0 %v776
  %1111 = vmatpush1.bf16.msra.mxu0 %v775
  %1112 = vmatprep.subr.bf16.mxu0 %v1000
  %1113 = vmatpush1.bf16.msra.mxu0 %v997
  %1114 = vmatprep.subr.bf16.mxu0 0
  %1115 = vmatpush1.bf16.msra.mxu0 0
  %1116 = vmatprep.subr.bf16.mxu0 0
  %1117 = vmatpush1.bf16.msra.mxu0 0
  %1118 = vmatprep.subr.bf16.mxu0 0
  %1119 = vmatpush1.bf16.msra.mxu0 0
  %1120 = vmatprep.subr.bf16.mxu0 0
  %1121 = vmatpush1.bf16.msra.mxu0 0
  %1122 = vmatprep.subr.bf16.mxu0 0
  %1123 = vmatpush1.bf16.msra.mxu0 0
  %1124 = vmatprep.subr.bf16.mxu0 0
  %1125 = vmatpush1.bf16.msra.mxu0 0
  %1126 = vmatprep.subr.bf16.mxu0 0
  %1127 = vmatpush1.bf16.msra.mxu0 0
  %1128 = vmatprep.subr.bf16.mxu0 0
  %1129 = vmatpush1.bf16.msra.mxu0 0
  %1130 = vmatprep.subr.bf16.mxu0 0
  %1131 = vmatpush1.bf16.msra.mxu0 0
  %1132 = vmatprep.subr.bf16.mxu0 0
  %1133 = vmatpush1.bf16.msra.mxu0 0
  %1134 = vmatprep.subr.bf16.mxu0 0
  %1135 = vmatpush1.bf16.msra.mxu0 0
  %1136 = vmatprep.mubr.bf16.mxu0 0
  %1137 = vmatmul.mubr.bf16.gmra.mrb[0].mxu0 %v993
  %v1138 = vpop.f32.mrb[0].mxu0
  %v1139 = vadd.f32 0.0, %v1138
  %v1140 = vpop.f32.mrb[0].mxu0
  %v1141 = vadd.f32 0.0, %v1140
  %v1142 = vpop.f32.mrb[0].mxu0
  %v1143 = vadd.f32 0.0, %v1142
  %v1144 = vpop.f32.mrb[0].mxu0
  %v1145 = vadd.f32 0.0, %v1144
  %1146 = vdwg.mxu0
  %1147 = vmatprep.subr.bf16.mxu0 %v670
  %1148 = vmatpush1.bf16.msra.mxu0 %v669
  %1149 = vmatprep.subr.bf16.mxu0 %v706
  %1150 = vmatpush1.bf16.msra.mxu0 %v705
  %1151 = vmatprep.subr.bf16.mxu0 %v742
  %1152 = vmatpush1.bf16.msra.mxu0 %v741
  %1153 = vmatprep.subr.bf16.mxu0 %v778
  %1154 = vmatpush1.bf16.msra.mxu0 %v777
  %1155 = vmatprep.subr.bf16.mxu0 %v1006
  %1156 = vmatpush1.bf16.msra.mxu0 %v1003
  %1157 = vmatprep.subr.bf16.mxu0 0
  %1158 = vmatpush1.bf16.msra.mxu0 0
  %1159 = vmatprep.subr.bf16.mxu0 0
  %1160 = vmatpush1.bf16.msra.mxu0 0
  %1161 = vmatprep.subr.bf16.mxu0 0
  %1162 = vmatpush1.bf16.msra.mxu0 0
  %1163 = vmatprep.subr.bf16.mxu0 0
  %1164 = vmatpush1.bf16.msra.mxu0 0
  %1165 = vmatprep.subr.bf16.mxu0 0
  %1166 = vmatpush1.bf16.msra.mxu0 0
  %1167 = vmatprep.subr.bf16.mxu0 0
  %1168 = vmatpush1.bf16.msra.mxu0 0
  %1169 = vmatprep.subr.bf16.mxu0 0
  %1170 = vmatpush1.bf16.msra.mxu0 0
  %1171 = vmatprep.subr.bf16.mxu0 0
  %1172 = vmatpush1.bf16.msra.mxu0 0
  %1173 = vmatprep.subr.bf16.mxu0 0
  %1174 = vmatpush1.bf16.msra.mxu0 0
  %1175 = vmatprep.subr.bf16.mxu0 0
  %1176 = vmatpush1.bf16.msra.mxu0 0
  %1177 = vmatprep.subr.bf16.mxu0 0
  %1178 = vmatpush1.bf16.msra.mxu0 0
  %1179 = vmatprep.mubr.bf16.mxu0 0
  %1180 = vmatmul.mubr.bf16.gmra.mrb[0].mxu0 %v993
  %v1181 = vpop.f32.mrb[0].mxu0
  %v1182 = vadd.f32 0.0, %v1181
  %v1183 = vpop.f32.mrb[0].mxu0
  %v1184 = vadd.f32 0.0, %v1183
  %v1185 = vpop.f32.mrb[0].mxu0
  %v1186 = vadd.f32 0.0, %v1185
  %v1187 = vpop.f32.mrb[0].mxu0
  %v1188 = vadd.f32 0.0, %v1187
  %1189 = vdwg.mxu0
  %1190 = vmatprep.subr.bf16.mxu0 %v672
  %1191 = vmatpush1.bf16.msra.mxu0 %v671
  %1192 = vmatprep.subr.bf16.mxu0 %v708
  %1193 = vmatpush1.bf16.msra.mxu0 %v707
  %1194 = vmatprep.subr.bf16.mxu0 %v744
  %1195 = vmatpush1.bf16.msra.mxu0 %v743
  %1196 = vmatprep.subr.bf16.mxu0 %v780
  %1197 = vmatpush1.bf16.msra.mxu0 %v779
  %1198 = vmatprep.subr.bf16.mxu0 %v1012
  %1199 = vmatpush1.bf16.msra.mxu0 %v1009
  %1200 = vmatprep.subr.bf16.mxu0 0
  %1201 = vmatpush1.bf16.msra.mxu0 0
  %1202 = vmatprep.subr.bf16.mxu0 0
  %1203 = vmatpush1.bf16.msra.mxu0 0
  %1204 = vmatprep.subr.bf16.mxu0 0
  %1205 = vmatpush1.bf16.msra.mxu0 0
  %1206 = vmatprep.subr.bf16.mxu0 0
  %1207 = vmatpush1.bf16.msra.mxu0 0
  %1208 = vmatprep.subr.bf16.mxu0 0
  %1209 = vmatpush1.bf16.msra.mxu0 0
  %1210 = vmatprep.subr.bf16.mxu0 0
  %1211 = vmatpush1.bf16.msra.mxu0 0
  %1212 = vmatprep.subr.bf16.mxu0 0
  %1213 = vmatpush1.bf16.msra.mxu0 0
  %1214 = vmatprep.subr.bf16.mxu0 0
  %1215 = vmatpush1.bf16.msra.mxu0 0
  %1216 = vmatprep.subr.bf16.mxu0 0
  %1217 = vmatpush1.bf16.msra.mxu0 0
  %1218 = vmatprep.subr.bf16.mxu0 0
  %1219 = vmatpush1.bf16.msra.mxu0 0
  %1220 = vmatprep.subr.bf16.mxu0 0
  %1221 = vmatpush1.bf16.msra.mxu0 0
  %1222 = vmatprep.mubr.bf16.mxu0 0
  %1223 = vmatmul.mubr.bf16.gmra.mrb[0].mxu0 %v993
  %v1224 = vpop.f32.mrb[0].mxu0
  %v1225 = vadd.f32 0.0, %v1224
  %v1226 = vpop.f32.mrb[0].mxu0
  %v1227 = vadd.f32 0.0, %v1226
  %v1228 = vpop.f32.mrb[0].mxu0
  %v1229 = vadd.f32 0.0, %v1228
  %v1230 = vpop.f32.mrb[0].mxu0
  %v1231 = vadd.f32 0.0, %v1230
  %1232 = vdwg.mxu0
  %1233 = vmatprep.subr.bf16.mxu0 %v674
  %1234 = vmatpush1.bf16.msra.mxu0 %v673
  %1235 = vmatprep.subr.bf16.mxu0 %v710
  %1236 = vmatpush1.bf16.msra.mxu0 %v709
  %1237 = vmatprep.subr.bf16.mxu0 %v746
  %1238 = vmatpush1.bf16.msra.mxu0 %v745
  %1239 = vmatprep.subr.bf16.mxu0 %v782
  %1240 = vmatpush1.bf16.msra.mxu0 %v781
  %1241 = vmatprep.subr.bf16.mxu0 %v1018
  %1242 = vmatpush1.bf16.msra.mxu0 %v1015
  %1243 = vmatprep.subr.bf16.mxu0 0
  %1244 = vmatpush1.bf16.msra.mxu0 0
  %1245 = vmatprep.subr.bf16.mxu0 0
  %1246 = vmatpush1.bf16.msra.mxu0 0
  %1247 = vmatprep.subr.bf16.mxu0 0
  %1248 = vmatpush1.bf16.msra.mxu0 0
  %1249 = vmatprep.subr.bf16.mxu0 0
  %1250 = vmatpush1.bf16.msra.mxu0 0
  %1251 = vmatprep.subr.bf16.mxu0 0
  %1252 = vmatpush1.bf16.msra.mxu0 0
  %1253 = vmatprep.subr.bf16.mxu0 0
  %1254 = vmatpush1.bf16.msra.mxu0 0
  %1255 = vmatprep.subr.bf16.mxu0 0
  %1256 = vmatpush1.bf16.msra.mxu0 0
  %1257 = vmatprep.subr.bf16.mxu0 0
  %1258 = vmatpush1.bf16.msra.mxu0 0
  %1259 = vmatprep.subr.bf16.mxu0 0
  %1260 = vmatpush1.bf16.msra.mxu0 0
  %1261 = vmatprep.subr.bf16.mxu0 0
  %1262 = vmatpush1.bf16.msra.mxu0 0
  %1263 = vmatprep.subr.bf16.mxu0 0
  %1264 = vmatpush1.bf16.msra.mxu0 0
  %1265 = vmatprep.mubr.bf16.mxu0 0
  %1266 = vmatmul.mubr.bf16.gmra.mrb[0].mxu0 %v993
  %v1267 = vpop.f32.mrb[0].mxu0
  %v1268 = vadd.f32 0.0, %v1267
  %v1269 = vpop.f32.mrb[0].mxu0
  %v1270 = vadd.f32 0.0, %v1269
  %v1271 = vpop.f32.mrb[0].mxu0
  %v1272 = vadd.f32 0.0, %v1271
  %v1273 = vpop.f32.mrb[0].mxu0
  %v1274 = vadd.f32 0.0, %v1273
  %1275 = vdwg.mxu0
  %1276 = vmatprep.subr.bf16.mxu0 %v676
  %1277 = vmatpush1.bf16.msra.mxu0 %v675
  %1278 = vmatprep.subr.bf16.mxu0 %v712
  %1279 = vmatpush1.bf16.msra.mxu0 %v711
  %1280 = vmatprep.subr.bf16.mxu0 %v748
  %1281 = vmatpush1.bf16.msra.mxu0 %v747
  %1282 = vmatprep.subr.bf16.mxu0 %v784
  %1283 = vmatpush1.bf16.msra.mxu0 %v783
  %1284 = vmatprep.subr.bf16.mxu0 %v1024
  %1285 = vmatpush1.bf16.msra.mxu0 %v1021
  %1286 = vmatprep.subr.bf16.mxu0 0
  %1287 = vmatpush1.bf16.msra.mxu0 0
  %1288 = vmatprep.subr.bf16.mxu0 0
  %1289 = vmatpush1.bf16.msra.mxu0 0
  %1290 = vmatprep.subr.bf16.mxu0 0
  %1291 = vmatpush1.bf16.msra.mxu0 0
  %1292 = vmatprep.subr.bf16.mxu0 0
  %1293 = vmatpush1.bf16.msra.mxu0 0
  %1294 = vmatprep.subr.bf16.mxu0 0
  %1295 = vmatpush1.bf16.msra.mxu0 0
  %1296 = vmatprep.subr.bf16.mxu0 0
  %1297 = vmatpush1.bf16.msra.mxu0 0
  %1298 = vmatprep.subr.bf16.mxu0 0
  %1299 = vmatpush1.bf16.msra.mxu0 0
  %1300 = vmatprep.subr.bf16.mxu0 0
  %1301 = vmatpush1.bf16.msra.mxu0 0
  %1302 = vmatprep.subr.bf16.mxu0 0
  %1303 = vmatpush1.bf16.msra.mxu0 0
  %1304 = vmatprep.subr.bf16.mxu0 0
  %1305 = vmatpush1.bf16.msra.mxu0 0
  %1306 = vmatprep.subr.bf16.mxu0 0
  %1307 = vmatpush1.bf16.msra.mxu0 0
  %1308 = vmatprep.mubr.bf16.mxu0 0
  %1309 = vmatmul.mubr.bf16.gmra.mrb[0].mxu0 %v993
  %v1310 = vpop.f32.mrb[0].mxu0
  %v1311 = vadd.f32 0.0, %v1310
  %v1312 = vpop.f32.mrb[0].mxu0
  %v1313 = vadd.f32 0.0, %v1312
  %v1314 = vpop.f32.mrb[0].mxu0
  %v1315 = vadd.f32 0.0, %v1314
  %v1316 = vpop.f32.mrb[0].mxu0
  %v1317 = vadd.f32 0.0, %v1316
  %1318 = vdwg.mxu0
  %1319 = vmatprep.subr.bf16.mxu0 %v678
  %1320 = vmatpush1.bf16.msra.mxu0 %v677
  %1321 = vmatprep.subr.bf16.mxu0 %v714
  %1322 = vmatpush1.bf16.msra.mxu0 %v713
  %1323 = vmatprep.subr.bf16.mxu0 %v750
  %1324 = vmatpush1.bf16.msra.mxu0 %v749
  %1325 = vmatprep.subr.bf16.mxu0 %v786
  %1326 = vmatpush1.bf16.msra.mxu0 %v785
  %1327 = vmatprep.subr.bf16.mxu0 %v1030
  %1328 = vmatpush1.bf16.msra.mxu0 %v1027
  %1329 = vmatprep.subr.bf16.mxu0 0
  %1330 = vmatpush1.bf16.msra.mxu0 0
  %1331 = vmatprep.subr.bf16.mxu0 0
  %1332 = vmatpush1.bf16.msra.mxu0 0
  %1333 = vmatprep.subr.bf16.mxu0 0
  %1334 = vmatpush1.bf16.msra.mxu0 0
  %1335 = vmatprep.subr.bf16.mxu0 0
  %1336 = vmatpush1.bf16.msra.mxu0 0
  %1337 = vmatprep.subr.bf16.mxu0 0
  %1338 = vmatpush1.bf16.msra.mxu0 0
  %1339 = vmatprep.subr.bf16.mxu0 0
  %1340 = vmatpush1.bf16.msra.mxu0 0
  %1341 = vmatprep.subr.bf16.mxu0 0
  %1342 = vmatpush1.bf16.msra.mxu0 0
  %1343 = vmatprep.subr.bf16.mxu0 0
  %1344 = vmatpush1.bf16.msra.mxu0 0
  %1345 = vmatprep.subr.bf16.mxu0 0
  %1346 = vmatpush1.bf16.msra.mxu0 0
  %1347 = vmatprep.subr.bf16.mxu0 0
  %1348 = vmatpush1.bf16.msra.mxu0 0
  %1349 = vmatprep.subr.bf16.mxu0 0
  %1350 = vmatpush1.bf16.msra.mxu0 0
  %1351 = vmatprep.mubr.bf16.mxu0 0
  %1352 = vmatmul.mubr.bf16.gmra.mrb[0].mxu0 %v993
  %v1353 = vpop.f32.mrb[0].mxu0
  %v1354 = vadd.f32 0.0, %v1353
  %v1355 = vpop.f32.mrb[0].mxu0
  %v1356 = vadd.f32 0.0, %v1355
  %v1357 = vpop.f32.mrb[0].mxu0
  %v1358 = vadd.f32 0.0, %v1357
  %v1359 = vpop.f32.mrb[0].mxu0
  %v1360 = vadd.f32 0.0, %v1359
  %1361 = vdwg.mxu0
  %1362 = vmatprep.subr.bf16.mxu0 %v680
  %1363 = vmatpush1.bf16.msra.mxu0 %v679
  %1364 = vmatprep.subr.bf16.mxu0 %v716
  %1365 = vmatpush1.bf16.msra.mxu0 %v715
  %1366 = vmatprep.subr.bf16.mxu0 %v752
  %1367 = vmatpush1.bf16.msra.mxu0 %v751
  %1368 = vmatprep.subr.bf16.mxu0 %v788
  %1369 = vmatpush1.bf16.msra.mxu0 %v787
  %1370 = vmatprep.subr.bf16.mxu0 %v1036
  %1371 = vmatpush1.bf16.msra.mxu0 %v1033
  %1372 = vmatprep.subr.bf16.mxu0 0
  %1373 = vmatpush1.bf16.msra.mxu0 0
  %1374 = vmatprep.subr.bf16.mxu0 0
  %1375 = vmatpush1.bf16.msra.mxu0 0
  %1376 = vmatprep.subr.bf16.mxu0 0
  %1377 = vmatpush1.bf16.msra.mxu0 0
  %1378 = vmatprep.subr.bf16.mxu0 0
  %1379 = vmatpush1.bf16.msra.mxu0 0
  %1380 = vmatprep.subr.bf16.mxu0 0
  %1381 = vmatpush1.bf16.msra.mxu0 0
  %1382 = vmatprep.subr.bf16.mxu0 0
  %1383 = vmatpush1.bf16.msra.mxu0 0
  %1384 = vmatprep.subr.bf16.mxu0 0
  %1385 = vmatpush1.bf16.msra.mxu0 0
  %1386 = vmatprep.subr.bf16.mxu0 0
  %1387 = vmatpush1.bf16.msra.mxu0 0
  %1388 = vmatprep.subr.bf16.mxu0 0
  %1389 = vmatpush1.bf16.msra.mxu0 0
  %1390 = vmatprep.subr.bf16.mxu0 0
  %1391 = vmatpush1.bf16.msra.mxu0 0
  %1392 = vmatprep.subr.bf16.mxu0 0
  %1393 = vmatpush1.bf16.msra.mxu0 0
  %1394 = vmatprep.mubr.bf16.mxu0 0
  %1395 = vmatmul.mubr.bf16.gmra.mrb[0].mxu0 %v993
  %v1396 = vpop.f32.mrb[0].mxu0
  %v1397 = vadd.f32 0.0, %v1396
  %v1398 = vpop.f32.mrb[0].mxu0
  %v1399 = vadd.f32 0.0, %v1398
  %v1400 = vpop.f32.mrb[0].mxu0
  %v1401 = vadd.f32 0.0, %v1400
  %v1402 = vpop.f32.mrb[0].mxu0
  %v1403 = vadd.f32 0.0, %v1402
  %1404 = vdwg.mxu0
  %1405 = vmatprep.subr.bf16.mxu0 %v682
  %1406 = vmatpush1.bf16.msra.mxu0 %v681
  %1407 = vmatprep.subr.bf16.mxu0 %v718
  %1408 = vmatpush1.bf16.msra.mxu0 %v717
  %1409 = vmatprep.subr.bf16.mxu0 %v754
  %1410 = vmatpush1.bf16.msra.mxu0 %v753
  %1411 = vmatprep.subr.bf16.mxu0 %v790
  %1412 = vmatpush1.bf16.msra.mxu0 %v789
  %1413 = vmatprep.subr.bf16.mxu0 %v1042
  %1414 = vmatpush1.bf16.msra.mxu0 %v1039
  %1415 = vmatprep.subr.bf16.mxu0 0
  %1416 = vmatpush1.bf16.msra.mxu0 0
  %1417 = vmatprep.subr.bf16.mxu0 0
  %1418 = vmatpush1.bf16.msra.mxu0 0
  %1419 = vmatprep.subr.bf16.mxu0 0
  %1420 = vmatpush1.bf16.msra.mxu0 0
  %1421 = vmatprep.subr.bf16.mxu0 0
  %1422 = vmatpush1.bf16.msra.mxu0 0
  %1423 = vmatprep.subr.bf16.mxu0 0
  %1424 = vmatpush1.bf16.msra.mxu0 0
  %1425 = vmatprep.subr.bf16.mxu0 0
  %1426 = vmatpush1.bf16.msra.mxu0 0
  %1427 = vmatprep.subr.bf16.mxu0 0
  %1428 = vmatpush1.bf16.msra.mxu0 0
  %1429 = vmatprep.subr.bf16.mxu0 0
  %1430 = vmatpush1.bf16.msra.mxu0 0
  %1431 = vmatprep.subr.bf16.mxu0 0
  %1432 = vmatpush1.bf16.msra.mxu0 0
  %1433 = vmatprep.subr.bf16.mxu0 0
  %1434 = vmatpush1.bf16.msra.mxu0 0
  %1435 = vmatprep.subr.bf16.mxu0 0
  %1436 = vmatpush1.bf16.msra.mxu0 0
  %1437 = vmatprep.mubr.bf16.mxu0 0
  %1438 = vmatmul.mubr.bf16.gmra.mrb[0].mxu0 %v993
  %v1439 = vpop.f32.mrb[0].mxu0
  %v1440 = vadd.f32 0.0, %v1439
  %v1441 = vpop.f32.mrb[0].mxu0
  %v1442 = vadd.f32 0.0, %v1441
  %v1443 = vpop.f32.mrb[0].mxu0
  %v1444 = vadd.f32 0.0, %v1443
  %v1445 = vpop.f32.mrb[0].mxu0
  %v1446 = vadd.f32 0.0, %v1445
  %1447 = vdwg.mxu0
  %1448 = vmatprep.subr.bf16.mxu0 %v684
  %1449 = vmatpush1.bf16.msra.mxu0 %v683
  %1450 = vmatprep.subr.bf16.mxu0 %v720
  %1451 = vmatpush1.bf16.msra.mxu0 %v719
  %1452 = vmatprep.subr.bf16.mxu0 %v756
  %1453 = vmatpush1.bf16.msra.mxu0 %v755
  %1454 = vmatprep.subr.bf16.mxu0 %v792
  %1455 = vmatpush1.bf16.msra.mxu0 %v791
  %1456 = vmatprep.subr.bf16.mxu0 %v1048
  %1457 = vmatpush1.bf16.msra.mxu0 %v1045
  %1458 = vmatprep.subr.bf16.mxu0 0
  %1459 = vmatpush1.bf16.msra.mxu0 0
  %1460 = vmatprep.subr.bf16.mxu0 0
  %1461 = vmatpush1.bf16.msra.mxu0 0
  %1462 = vmatprep.subr.bf16.mxu0 0
  %1463 = vmatpush1.bf16.msra.mxu0 0
  %1464 = vmatprep.subr.bf16.mxu0 0
  %1465 = vmatpush1.bf16.msra.mxu0 0
  %1466 = vmatprep.subr.bf16.mxu0 0
  %1467 = vmatpush1.bf16.msra.mxu0 0
  %1468 = vmatprep.subr.bf16.mxu0 0
  %1469 = vmatpush1.bf16.msra.mxu0 0
  %1470 = vmatprep.subr.bf16.mxu0 0
  %1471 = vmatpush1.bf16.msra.mxu0 0
  %1472 = vmatprep.subr.bf16.mxu0 0
  %1473 = vmatpush1.bf16.msra.mxu0 0
  %1474 = vmatprep.subr.bf16.mxu0 0
  %1475 = vmatpush1.bf16.msra.mxu0 0
  %1476 = vmatprep.subr.bf16.mxu0 0
  %1477 = vmatpush1.bf16.msra.mxu0 0
  %1478 = vmatprep.subr.bf16.mxu0 0
  %1479 = vmatpush1.bf16.msra.mxu0 0
  %1480 = vmatprep.mubr.bf16.mxu0 0
  %1481 = vmatmul.mubr.bf16.gmra.mrb[0].mxu0 %v993
  %v1482 = vpop.f32.mrb[0].mxu0
  %v1483 = vadd.f32 0.0, %v1482
  %v1484 = vpop.f32.mrb[0].mxu0
  %v1485 = vadd.f32 0.0, %v1484
  %v1486 = vpop.f32.mrb[0].mxu0
  %v1487 = vadd.f32 0.0, %v1486
  %v1488 = vpop.f32.mrb[0].mxu0
  %v1489 = vadd.f32 0.0, %v1488
  %1490 = vdwg.mxu0
  %1491 = vmatprep.subr.bf16.mxu0 %v686
  %1492 = vmatpush1.bf16.msra.mxu0 %v685
  %1493 = vmatprep.subr.bf16.mxu0 %v722
  %1494 = vmatpush1.bf16.msra.mxu0 %v721
  %1495 = vmatprep.subr.bf16.mxu0 %v758
  %1496 = vmatpush1.bf16.msra.mxu0 %v757
  %1497 = vmatprep.subr.bf16.mxu0 %v794
  %1498 = vmatpush1.bf16.msra.mxu0 %v793
  %1499 = vmatprep.subr.bf16.mxu0 %v1054
  %1500 = vmatpush1.bf16.msra.mxu0 %v1051
  %1501 = vmatprep.subr.bf16.mxu0 0
  %1502 = vmatpush1.bf16.msra.mxu0 0
  %1503 = vmatprep.subr.bf16.mxu0 0
  %1504 = vmatpush1.bf16.msra.mxu0 0
  %1505 = vmatprep.subr.bf16.mxu0 0
  %1506 = vmatpush1.bf16.msra.mxu0 0
  %1507 = vmatprep.subr.bf16.mxu0 0
  %1508 = vmatpush1.bf16.msra.mxu0 0
  %1509 = vmatprep.subr.bf16.mxu0 0
  %1510 = vmatpush1.bf16.msra.mxu0 0
  %1511 = vmatprep.subr.bf16.mxu0 0
  %1512 = vmatpush1.bf16.msra.mxu0 0
  %1513 = vmatprep.subr.bf16.mxu0 0
  %1514 = vmatpush1.bf16.msra.mxu0 0
  %1515 = vmatprep.subr.bf16.mxu0 0
  %1516 = vmatpush1.bf16.msra.mxu0 0
  %1517 = vmatprep.subr.bf16.mxu0 0
  %1518 = vmatpush1.bf16.msra.mxu0 0
  %1519 = vmatprep.subr.bf16.mxu0 0
  %1520 = vmatpush1.bf16.msra.mxu0 0
  %1521 = vmatprep.subr.bf16.mxu0 0
  %1522 = vmatpush1.bf16.msra.mxu0 0
  %1523 = vmatprep.mubr.bf16.mxu0 0
  %1524 = vmatmul.mubr.bf16.gmra.mrb[0].mxu0 %v993
  %v1525 = vpop.f32.mrb[0].mxu0
  %v1526 = vadd.f32 0.0, %v1525
  %v1527 = vpop.f32.mrb[0].mxu0
  %v1528 = vadd.f32 0.0, %v1527
  %v1529 = vpop.f32.mrb[0].mxu0
  %v1530 = vadd.f32 0.0, %v1529
  %v1531 = vpop.f32.mrb[0].mxu0
  %v1532 = vadd.f32 0.0, %v1531
  %1533 = vdwg.mxu0
  %1534 = vmatprep.subr.bf16.mxu0 %v688
  %1535 = vmatpush1.bf16.msra.mxu0 %v687
  %1536 = vmatprep.subr.bf16.mxu0 %v724
  %1537 = vmatpush1.bf16.msra.mxu0 %v723
  %1538 = vmatprep.subr.bf16.mxu0 %v760
  %1539 = vmatpush1.bf16.msra.mxu0 %v759
  %1540 = vmatprep.subr.bf16.mxu0 %v796
  %1541 = vmatpush1.bf16.msra.mxu0 %v795
  %1542 = vmatprep.subr.bf16.mxu0 %v1060
  %1543 = vmatpush1.bf16.msra.mxu0 %v1057
  %1544 = vmatprep.subr.bf16.mxu0 0
  %1545 = vmatpush1.bf16.msra.mxu0 0
  %1546 = vmatprep.subr.bf16.mxu0 0
  %1547 = vmatpush1.bf16.msra.mxu0 0
  %1548 = vmatprep.subr.bf16.mxu0 0
  %1549 = vmatpush1.bf16.msra.mxu0 0
  %1550 = vmatprep.subr.bf16.mxu0 0
  %1551 = vmatpush1.bf16.msra.mxu0 0
  %1552 = vmatprep.subr.bf16.mxu0 0
  %1553 = vmatpush1.bf16.msra.mxu0 0
  %1554 = vmatprep.subr.bf16.mxu0 0
  %1555 = vmatpush1.bf16.msra.mxu0 0
  %1556 = vmatprep.subr.bf16.mxu0 0
  %1557 = vmatpush1.bf16.msra.mxu0 0
  %1558 = vmatprep.subr.bf16.mxu0 0
  %1559 = vmatpush1.bf16.msra.mxu0 0
  %1560 = vmatprep.subr.bf16.mxu0 0
  %1561 = vmatpush1.bf16.msra.mxu0 0
  %1562 = vmatprep.subr.bf16.mxu0 0
  %1563 = vmatpush1.bf16.msra.mxu0 0
  %1564 = vmatprep.subr.bf16.mxu0 0
  %1565 = vmatpush1.bf16.msra.mxu0 0
  %1566 = vmatprep.mubr.bf16.mxu0 0
  %1567 = vmatmul.mubr.bf16.gmra.mrb[0].mxu0 %v993
  %v1568 = vpop.f32.mrb[0].mxu0
  %v1569 = vadd.f32 0.0, %v1568
  %v1570 = vpop.f32.mrb[0].mxu0
  %v1571 = vadd.f32 0.0, %v1570
  %v1572 = vpop.f32.mrb[0].mxu0
  %v1573 = vadd.f32 0.0, %v1572
  %v1574 = vpop.f32.mrb[0].mxu0
  %v1575 = vadd.f32 0.0, %v1574
  %1576 = vdwg.mxu0
  %1577 = vmatprep.subr.bf16.mxu0 %v690
  %1578 = vmatpush1.bf16.msra.mxu0 %v689
  %1579 = vmatprep.subr.bf16.mxu0 %v726
  %1580 = vmatpush1.bf16.msra.mxu0 %v725
  %1581 = vmatprep.subr.bf16.mxu0 %v762
  %1582 = vmatpush1.bf16.msra.mxu0 %v761
  %1583 = vmatprep.subr.bf16.mxu0 %v798
  %1584 = vmatpush1.bf16.msra.mxu0 %v797
  %1585 = vmatprep.subr.bf16.mxu0 %v1066
  %1586 = vmatpush1.bf16.msra.mxu0 %v1063
  %1587 = vmatprep.subr.bf16.mxu0 0
  %1588 = vmatpush1.bf16.msra.mxu0 0
  %1589 = vmatprep.subr.bf16.mxu0 0
  %1590 = vmatpush1.bf16.msra.mxu0 0
  %1591 = vmatprep.subr.bf16.mxu0 0
  %1592 = vmatpush1.bf16.msra.mxu0 0
  %1593 = vmatprep.subr.bf16.mxu0 0
  %1594 = vmatpush1.bf16.msra.mxu0 0
  %1595 = vmatprep.subr.bf16.mxu0 0
  %1596 = vmatpush1.bf16.msra.mxu0 0
  %1597 = vmatprep.subr.bf16.mxu0 0
  %1598 = vmatpush1.bf16.msra.mxu0 0
  %1599 = vmatprep.subr.bf16.mxu0 0
  %1600 = vmatpush1.bf16.msra.mxu0 0
  %1601 = vmatprep.subr.bf16.mxu0 0
  %1602 = vmatpush1.bf16.msra.mxu0 0
  %1603 = vmatprep.subr.bf16.mxu0 0
  %1604 = vmatpush1.bf16.msra.mxu0 0
  %1605 = vmatprep.subr.bf16.mxu0 0
  %1606 = vmatpush1.bf16.msra.mxu0 0
  %1607 = vmatprep.subr.bf16.mxu0 0
  %1608 = vmatpush1.bf16.msra.mxu0 0
  %1609 = vmatprep.mubr.bf16.mxu0 0
  %1610 = vmatmul.mubr.bf16.gmra.mrb[0].mxu0 %v993
  %v1611 = vpop.f32.mrb[0].mxu0
  %v1612 = vadd.f32 0.0, %v1611
  %v1613 = vpop.f32.mrb[0].mxu0
  %v1614 = vadd.f32 0.0, %v1613
  %v1615 = vpop.f32.mrb[0].mxu0
  %v1616 = vadd.f32 0.0, %v1615
  %v1617 = vpop.f32.mrb[0].mxu0
  %v1618 = vadd.f32 0.0, %v1617
  %1619 = vdwg.mxu0
  %1620 = vmatprep.subr.bf16.mxu0 %v692
  %1621 = vmatpush1.bf16.msra.mxu0 %v691
  %1622 = vmatprep.subr.bf16.mxu0 %v728
  %1623 = vmatpush1.bf16.msra.mxu0 %v727
  %1624 = vmatprep.subr.bf16.mxu0 %v764
  %1625 = vmatpush1.bf16.msra.mxu0 %v763
  %1626 = vmatprep.subr.bf16.mxu0 %v800
  %1627 = vmatpush1.bf16.msra.mxu0 %v799
  %1628 = vmatprep.subr.bf16.mxu0 %v1072
  %1629 = vmatpush1.bf16.msra.mxu0 %v1069
  %1630 = vmatprep.subr.bf16.mxu0 0
  %1631 = vmatpush1.bf16.msra.mxu0 0
  %1632 = vmatprep.subr.bf16.mxu0 0
  %1633 = vmatpush1.bf16.msra.mxu0 0
  %1634 = vmatprep.subr.bf16.mxu0 0
  %1635 = vmatpush1.bf16.msra.mxu0 0
  %1636 = vmatprep.subr.bf16.mxu0 0
  %1637 = vmatpush1.bf16.msra.mxu0 0
  %1638 = vmatprep.subr.bf16.mxu0 0
  %1639 = vmatpush1.bf16.msra.mxu0 0
  %1640 = vmatprep.subr.bf16.mxu0 0
  %1641 = vmatpush1.bf16.msra.mxu0 0
  %1642 = vmatprep.subr.bf16.mxu0 0
  %1643 = vmatpush1.bf16.msra.mxu0 0
  %1644 = vmatprep.subr.bf16.mxu0 0
  %1645 = vmatpush1.bf16.msra.mxu0 0
  %1646 = vmatprep.subr.bf16.mxu0 0
  %1647 = vmatpush1.bf16.msra.mxu0 0
  %1648 = vmatprep.subr.bf16.mxu0 0
  %1649 = vmatpush1.bf16.msra.mxu0 0
  %1650 = vmatprep.subr.bf16.mxu0 0
  %1651 = vmatpush1.bf16.msra.mxu0 0
  %1652 = vmatprep.mubr.bf16.mxu0 0
  %1653 = vmatmul.mubr.bf16.gmra.mrb[0].mxu0 %v993
  %v1654 = vpop.f32.mrb[0].mxu0
  %v1655 = vadd.f32 0.0, %v1654
  %v1656 = vpop.f32.mrb[0].mxu0
  %v1657 = vadd.f32 0.0, %v1656
  %v1658 = vpop.f32.mrb[0].mxu0
  %v1659 = vadd.f32 0.0, %v1658
  %v1660 = vpop.f32.mrb[0].mxu0
  %v1661 = vadd.f32 0.0, %v1660
  %1662 = vdwg.mxu0
  %1663 = vmatprep.subr.bf16.mxu0 %v694
  %1664 = vmatpush1.bf16.msra.mxu0 %v693
  %1665 = vmatprep.subr.bf16.mxu0 %v730
  %1666 = vmatpush1.bf16.msra.mxu0 %v729
  %1667 = vmatprep.subr.bf16.mxu0 %v766
  %1668 = vmatpush1.bf16.msra.mxu0 %v765
  %1669 = vmatprep.subr.bf16.mxu0 %v802
  %1670 = vmatpush1.bf16.msra.mxu0 %v801
  %1671 = vmatprep.subr.bf16.mxu0 %v1078
  %1672 = vmatpush1.bf16.msra.mxu0 %v1075
  %1673 = vmatprep.subr.bf16.mxu0 0
  %1674 = vmatpush1.bf16.msra.mxu0 0
  %1675 = vmatprep.subr.bf16.mxu0 0
  %1676 = vmatpush1.bf16.msra.mxu0 0
  %1677 = vmatprep.subr.bf16.mxu0 0
  %1678 = vmatpush1.bf16.msra.mxu0 0
  %1679 = vmatprep.subr.bf16.mxu0 0
  %1680 = vmatpush1.bf16.msra.mxu0 0
  %1681 = vmatprep.subr.bf16.mxu0 0
  %1682 = vmatpush1.bf16.msra.mxu0 0
  %1683 = vmatprep.subr.bf16.mxu0 0
  %1684 = vmatpush1.bf16.msra.mxu0 0
  %1685 = vmatprep.subr.bf16.mxu0 0
  %1686 = vmatpush1.bf16.msra.mxu0 0
  %1687 = vmatprep.subr.bf16.mxu0 0
  %1688 = vmatpush1.bf16.msra.mxu0 0
  %1689 = vmatprep.subr.bf16.mxu0 0
  %1690 = vmatpush1.bf16.msra.mxu0 0
  %1691 = vmatprep.subr.bf16.mxu0 0
  %1692 = vmatpush1.bf16.msra.mxu0 0
  %1693 = vmatprep.subr.bf16.mxu0 0
  %1694 = vmatpush1.bf16.msra.mxu0 0
  %1695 = vmatprep.mubr.bf16.mxu0 0
  %1696 = vmatmul.mubr.bf16.gmra.mrb[0].mxu0 %v993
  %v1697 = vpop.f32.mrb[0].mxu0
  %v1698 = vadd.f32 0.0, %v1697
  %v1699 = vpop.f32.mrb[0].mxu0
  %v1700 = vadd.f32 0.0, %v1699
  %v1701 = vpop.f32.mrb[0].mxu0
  %v1702 = vadd.f32 0.0, %v1701
  %v1703 = vpop.f32.mrb[0].mxu0
  %v1704 = vadd.f32 0.0, %v1703
  %1705 = vdwg.mxu0
  %1706 = vmatprep.subr.bf16.mxu0 %v696
  %1707 = vmatpush1.bf16.msra.mxu0 %v695
  %1708 = vmatprep.subr.bf16.mxu0 %v732
  %1709 = vmatpush1.bf16.msra.mxu0 %v731
  %1710 = vmatprep.subr.bf16.mxu0 %v768
  %1711 = vmatpush1.bf16.msra.mxu0 %v767
  %1712 = vmatprep.subr.bf16.mxu0 %v804
  %1713 = vmatpush1.bf16.msra.mxu0 %v803
  %1714 = vmatprep.subr.bf16.mxu0 %v1084
  %1715 = vmatpush1.bf16.msra.mxu0 %v1081
  %1716 = vmatprep.subr.bf16.mxu0 0
  %1717 = vmatpush1.bf16.msra.mxu0 0
  %1718 = vmatprep.subr.bf16.mxu0 0
  %1719 = vmatpush1.bf16.msra.mxu0 0
  %1720 = vmatprep.subr.bf16.mxu0 0
  %1721 = vmatpush1.bf16.msra.mxu0 0
  %1722 = vmatprep.subr.bf16.mxu0 0
  %1723 = vmatpush1.bf16.msra.mxu0 0
  %1724 = vmatprep.subr.bf16.mxu0 0
  %1725 = vmatpush1.bf16.msra.mxu0 0
  %1726 = vmatprep.subr.bf16.mxu0 0
  %1727 = vmatpush1.bf16.msra.mxu0 0
  %1728 = vmatprep.subr.bf16.mxu0 0
  %1729 = vmatpush1.bf16.msra.mxu0 0
  %1730 = vmatprep.subr.bf16.mxu0 0
  %1731 = vmatpush1.bf16.msra.mxu0 0
  %1732 = vmatprep.subr.bf16.mxu0 0
  %1733 = vmatpush1.bf16.msra.mxu0 0
  %1734 = vmatprep.subr.bf16.mxu0 0
  %1735 = vmatpush1.bf16.msra.mxu0 0
  %1736 = vmatprep.subr.bf16.mxu0 0
  %1737 = vmatpush1.bf16.msra.mxu0 0
  %1738 = vmatprep.mubr.bf16.mxu0 0
  %1739 = vmatmul.mubr.bf16.gmra.mrb[0].mxu0 %v993
  %v1740 = vpop.f32.mrb[0].mxu0
  %v1741 = vadd.f32 0.0, %v1740
  %v1742 = vpop.f32.mrb[0].mxu0
  %v1743 = vadd.f32 0.0, %v1742
  %v1744 = vpop.f32.mrb[0].mxu0
  %v1745 = vadd.f32 0.0, %v1744
  %v1746 = vpop.f32.mrb[0].mxu0
  %v1747 = vadd.f32 0.0, %v1746
  %1748 = vdwg.mxu0
  %1749 = vmatprep.subr.bf16.mxu0 %v698
  %1750 = vmatpush1.bf16.msra.mxu0 %v697
  %1751 = vmatprep.subr.bf16.mxu0 %v734
  %1752 = vmatpush1.bf16.msra.mxu0 %v733
  %1753 = vmatprep.subr.bf16.mxu0 %v770
  %1754 = vmatpush1.bf16.msra.mxu0 %v769
  %1755 = vmatprep.subr.bf16.mxu0 %v806
  %1756 = vmatpush1.bf16.msra.mxu0 %v805
  %1757 = vmatprep.subr.bf16.mxu0 %v1090
  %1758 = vmatpush1.bf16.msra.mxu0 %v1087
  %1759 = vmatprep.subr.bf16.mxu0 0
  %1760 = vmatpush1.bf16.msra.mxu0 0
  %1761 = vmatprep.subr.bf16.mxu0 0
  %1762 = vmatpush1.bf16.msra.mxu0 0
  %1763 = vmatprep.subr.bf16.mxu0 0
  %1764 = vmatpush1.bf16.msra.mxu0 0
  %1765 = vmatprep.subr.bf16.mxu0 0
  %1766 = vmatpush1.bf16.msra.mxu0 0
  %1767 = vmatprep.subr.bf16.mxu0 0
  %1768 = vmatpush1.bf16.msra.mxu0 0
  %1769 = vmatprep.subr.bf16.mxu0 0
  %1770 = vmatpush1.bf16.msra.mxu0 0
  %1771 = vmatprep.subr.bf16.mxu0 0
  %1772 = vmatpush1.bf16.msra.mxu0 0
  %1773 = vmatprep.subr.bf16.mxu0 0
  %1774 = vmatpush1.bf16.msra.mxu0 0
  %1775 = vmatprep.subr.bf16.mxu0 0
  %1776 = vmatpush1.bf16.msra.mxu0 0
  %1777 = vmatprep.subr.bf16.mxu0 0
  %1778 = vmatpush1.bf16.msra.mxu0 0
  %1779 = vmatprep.subr.bf16.mxu0 0
  %1780 = vmatpush1.bf16.msra.mxu0 0
  %1781 = vmatprep.mubr.bf16.mxu0 0
  %1782 = vmatmul.mubr.bf16.gmra.mrb[0].mxu0 %v993
  %v1783 = vpop.f32.mrb[0].mxu0
  %v1784 = vadd.f32 0.0, %v1783
  %v1785 = vpop.f32.mrb[0].mxu0
  %v1786 = vadd.f32 0.0, %v1785
  %v1787 = vpop.f32.mrb[0].mxu0
  %v1788 = vadd.f32 0.0, %v1787
  %v1789 = vpop.f32.mrb[0].mxu0
  %v1790 = vadd.f32 0.0, %v1789
  %1791 = vdwg.mxu0
  %1792 = vmatprep.subr.bf16.mxu0 %v700
  %1793 = vmatpush1.bf16.msra.mxu0 %v699
  %1794 = vmatprep.subr.bf16.mxu0 %v736
  %1795 = vmatpush1.bf16.msra.mxu0 %v735
  %1796 = vmatprep.subr.bf16.mxu0 %v772
  %1797 = vmatpush1.bf16.msra.mxu0 %v771
  %1798 = vmatprep.subr.bf16.mxu0 %v808
  %1799 = vmatpush1.bf16.msra.mxu0 %v807
  %1800 = vmatprep.subr.bf16.mxu0 %v1096
  %1801 = vmatpush1.bf16.msra.mxu0 %v1093
  %1802 = vmatprep.subr.bf16.mxu0 0
  %1803 = vmatpush1.bf16.msra.mxu0 0
  %1804 = vmatprep.subr.bf16.mxu0 0
  %1805 = vmatpush1.bf16.msra.mxu0 0
  %1806 = vmatprep.subr.bf16.mxu0 0
  %1807 = vmatpush1.bf16.msra.mxu0 0
  %1808 = vmatprep.subr.bf16.mxu0 0
  %1809 = vmatpush1.bf16.msra.mxu0 0
  %1810 = vmatprep.subr.bf16.mxu0 0
  %1811 = vmatpush1.bf16.msra.mxu0 0
  %1812 = vmatprep.subr.bf16.mxu0 0
  %1813 = vmatpush1.bf16.msra.mxu0 0
  %1814 = vmatprep.subr.bf16.mxu0 0
  %1815 = vmatpush1.bf16.msra.mxu0 0
  %1816 = vmatprep.subr.bf16.mxu0 0
  %1817 = vmatpush1.bf16.msra.mxu0 0
  %1818 = vmatprep.subr.bf16.mxu0 0
  %1819 = vmatpush1.bf16.msra.mxu0 0
  %1820 = vmatprep.subr.bf16.mxu0 0
  %1821 = vmatpush1.bf16.msra.mxu0 0
  %1822 = vmatprep.subr.bf16.mxu0 0
  %1823 = vmatpush1.bf16.msra.mxu0 0
  %1824 = vmatprep.mubr.bf16.mxu0 0
  %1825 = vmatmul.mubr.bf16.gmra.mrb[0].mxu0 %v993
  %v1826 = vpop.f32.mrb[0].mxu0
  %v1827 = vadd.f32 0.0, %v1826
  %v1828 = vpop.f32.mrb[0].mxu0
  %v1829 = vadd.f32 0.0, %v1828
  %v1830 = vpop.f32.mrb[0].mxu0
  %v1831 = vadd.f32 0.0, %v1830
  %v1832 = vpop.f32.mrb[0].mxu0
  %v1833 = vadd.f32 0.0, %v1832
  %1834 = vdwg.mxu0
  %1835 = vmatprep.subr.bf16.mxu0 %v702
  %1836 = vmatpush1.bf16.msra.mxu0 %v701
  %1837 = vmatprep.subr.bf16.mxu0 %v738
  %1838 = vmatpush1.bf16.msra.mxu0 %v737
  %1839 = vmatprep.subr.bf16.mxu0 %v774
  %1840 = vmatpush1.bf16.msra.mxu0 %v773
  %1841 = vmatprep.subr.bf16.mxu0 %v810
  %1842 = vmatpush1.bf16.msra.mxu0 %v809
  %1843 = vmatprep.subr.bf16.mxu0 %v1102
  %1844 = vmatpush1.bf16.msra.mxu0 %v1099
  %1845 = vmatprep.subr.bf16.mxu0 0
  %1846 = vmatpush1.bf16.msra.mxu0 0
  %1847 = vmatprep.subr.bf16.mxu0 0
  %1848 = vmatpush1.bf16.msra.mxu0 0
  %1849 = vmatprep.subr.bf16.mxu0 0
  %1850 = vmatpush1.bf16.msra.mxu0 0
  %1851 = vmatprep.subr.bf16.mxu0 0
  %1852 = vmatpush1.bf16.msra.mxu0 0
  %1853 = vmatprep.subr.bf16.mxu0 0
  %1854 = vmatpush1.bf16.msra.mxu0 0
  %1855 = vmatprep.subr.bf16.mxu0 0
  %1856 = vmatpush1.bf16.msra.mxu0 0
  %1857 = vmatprep.subr.bf16.mxu0 0
  %1858 = vmatpush1.bf16.msra.mxu0 0
  %1859 = vmatprep.subr.bf16.mxu0 0
  %1860 = vmatpush1.bf16.msra.mxu0 0
  %1861 = vmatprep.subr.bf16.mxu0 0
  %1862 = vmatpush1.bf16.msra.mxu0 0
  %1863 = vmatprep.subr.bf16.mxu0 0
  %1864 = vmatpush1.bf16.msra.mxu0 0
  %1865 = vmatprep.subr.bf16.mxu0 0
  %1866 = vmatpush1.bf16.msra.mxu0 0
  %1867 = vmatprep.mubr.bf16.mxu0 0
  %1868 = vmatmul.mubr.bf16.gmra.mrb[0].mxu0 %v993
  %v1869 = vpop.f32.mrb[0].mxu0
  %v1870 = vadd.f32 0.0, %v1869
  %v1871 = vpop.f32.mrb[0].mxu0
  %v1872 = vadd.f32 0.0, %v1871
  %v1873 = vpop.f32.mrb[0].mxu0
  %v1874 = vadd.f32 0.0, %v1873
  %v1875 = vpop.f32.mrb[0].mxu0
  %v1876 = vadd.f32 0.0, %v1875
  %1877 = vdwg.mxu0
  %v1878 = vtanh.pop %v1139
  %v1879 = vtanh.pop %v1141
  %v1880 = vtanh.pop %v1182
  %v1881 = vtanh.pop %v1184
  %v1882 = vtanh.pop %v1225
  %v1883 = vtanh.pop %v1227
  %v1884 = vtanh.pop %v1268
  %v1885 = vtanh.pop %v1270
  %v1886 = vtanh.pop %v1311
  %v1887 = vtanh.pop %v1313
  %v1888 = vtanh.pop %v1354
  %v1889 = vtanh.pop %v1356
  %v1890 = vtanh.pop %v1397
  %v1891 = vtanh.pop %v1399
  %v1892 = vtanh.pop %v1440
  %v1893 = vtanh.pop %v1442
  %v1894 = vtanh.pop %v1483
  %v1895 = vtanh.pop %v1485
  %v1896 = vtanh.pop %v1526
  %v1897 = vtanh.pop %v1528
  %v1898 = vtanh.pop %v1569
  %v1899 = vtanh.pop %v1571
  %v1900 = vtanh.pop %v1612
  %v1901 = vtanh.pop %v1614
  %v1902 = vtanh.pop %v1655
  %v1903 = vtanh.pop %v1657
  %v1904 = vtanh.pop %v1698
  %v1905 = vtanh.pop %v1700
  %v1906 = vtanh.pop %v1741
  %v1907 = vtanh.pop %v1743
  %v1908 = vtanh.pop %v1784
  %v1909 = vtanh.pop %v1786
  %v1910 = vtanh.pop %v1827
  %v1911 = vtanh.pop %v1829
  %v1912 = vtanh.pop %v1870
  %v1913 = vtanh.pop %v1872
  %v1914 = vtanh.pop %v1143
  %v1915 = vtanh.pop %v1145
  %v1916 = vtanh.pop %v1186
  %v1917 = vtanh.pop %v1188
  %v1918 = vtanh.pop %v1229
  %v1919 = vtanh.pop %v1231
  %v1920 = vtanh.pop %v1272
  %v1921 = vtanh.pop %v1274
  %v1922 = vtanh.pop %v1315
  %v1923 = vtanh.pop %v1317
  %v1924 = vtanh.pop %v1358
  %v1925 = vtanh.pop %v1360
  %v1926 = vtanh.pop %v1401
  %v1927 = vtanh.pop %v1403
  %v1928 = vtanh.pop %v1444
  %v1929 = vtanh.pop %v1446
  %v1930 = vtanh.pop %v1487
  %v1931 = vtanh.pop %v1489
  %v1932 = vtanh.pop %v1530
  %v1933 = vtanh.pop %v1532
  %v1934 = vtanh.pop %v1573
  %v1935 = vtanh.pop %v1575
  %v1936 = vtanh.pop %v1616
  %v1937 = vtanh.pop %v1618
  %v1938 = vtanh.pop %v1659
  %v1939 = vtanh.pop %v1661
  %v1940 = vtanh.pop %v1702
  %v1941 = vtanh.pop %v1704
  %v1942 = vtanh.pop %v1745
  %v1943 = vtanh.pop %v1747
  %v1944 = vtanh.pop %v1788
  %v1945 = vtanh.pop %v1790
  %v1946 = vtanh.pop %v1831
  %v1947 = vtanh.pop %v1833
  %v1948 = vtanh.pop %v1874
  %v1949 = vtanh.pop %v1876
  %1950 = vst [vmem:[%s2] sm:$0xff] %v1878
  %1951 = vst [vmem:[%s2 + $0x8] sm:$0xff] %v1879
  %1952 = vst [vmem:[%s2 + $0x10] sm:$0xff] %v1880
  %1953 = vst [vmem:[%s2 + $0x18] sm:$0xff] %v1881
  %1954 = vst [vmem:[%s2 + $0x20] sm:$0xff] %v1882
  %1955 = vst [vmem:[%s2 + $0x28] sm:$0xff] %v1883
  %1956 = vst [vmem:[%s2 + $0x30] sm:$0xff] %v1884
  %1957 = vst [vmem:[%s2 + $0x38] sm:$0xff] %v1885
  %1958 = vst [vmem:[%s2 + $0x40] sm:$0xff] %v1886
  %1959 = vst [vmem:[%s2 + $0x48] sm:$0xff] %v1887
  %1960 = vst [vmem:[%s2 + $0x50] sm:$0xff] %v1888
  %1961 = vst [vmem:[%s2 + $0x58] sm:$0xff] %v1889
  %1962 = vst [vmem:[%s2 + $0x60] sm:$0xff] %v1890
  %1963 = vst [vmem:[%s2 + $0x68] sm:$0xff] %v1891
  %1964 = vst [vmem:[%s2 + $0x70] sm:$0xff] %v1892
  %1965 = vst [vmem:[%s2 + $0x78] sm:$0xff] %v1893
  %1966 = vst [vmem:[%s2 + $0x80] sm:$0xff] %v1894
  %1967 = vst [vmem:[%s2 + $0x88] sm:$0xff] %v1895
  %1968 = vst [vmem:[%s2 + $0x90] sm:$0xff] %v1896
  %1969 = vst [vmem:[%s2 + $0x98] sm:$0xff] %v1897
  %1970 = vst [vmem:[%s2 + $0xa0] sm:$0xff] %v1898
  %1971 = vst [vmem:[%s2 + $0xa8] sm:$0xff] %v1899
  %1972 = vst [vmem:[%s2 + $0xb0] sm:$0xff] %v1900
  %1973 = vst [vmem:[%s2 + $0xb8] sm:$0xff] %v1901
  %1974 = vst [vmem:[%s2 + $0xc0] sm:$0xff] %v1902
  %1975 = vst [vmem:[%s2 + $0xc8] sm:$0xff] %v1903
  %1976 = vst [vmem:[%s2 + $0xd0] sm:$0xff] %v1904
  %1977 = vst [vmem:[%s2 + $0xd8] sm:$0xff] %v1905
  %1978 = vst [vmem:[%s2 + $0xe0] sm:$0xff] %v1906
  %1979 = vst [vmem:[%s2 + $0xe8] sm:$0xff] %v1907
  %1980 = vst [vmem:[%s2 + $0xf0] sm:$0xff] %v1908
  %1981 = vst [vmem:[%s2 + $0xf8] sm:$0xff] %v1909
  %1982 = vst [vmem:[%s2 + $0x100] sm:$0xff] %v1910
  %1983 = vst [vmem:[%s2 + $0x108] sm:$0xff] %v1911
  %1984 = vst [vmem:[%s2 + $0x110] sm:$0xff] %v1912
  %1985 = vst [vmem:[%s2 + $0x118] sm:$0xff] %v1913
  %1986 = vst [vmem:[%s2 + $0x120] sm:$0xf] %v1914
  %1987 = vst [vmem:[%s2 + $0x128] sm:$0xf] %v1915
  %1988 = vst [vmem:[%s2 + $0x130] sm:$0xf] %v1916
  %1989 = vst [vmem:[%s2 + $0x138] sm:$0xf] %v1917
  %1990 = vst [vmem:[%s2 + $0x140] sm:$0xf] %v1918
  %1991 = vst [vmem:[%s2 + $0x148] sm:$0xf] %v1919
  %1992 = vst [vmem:[%s2 + $0x150] sm:$0xf] %v1920
  %1993 = vst [vmem:[%s2 + $0x158] sm:$0xf] %v1921
  %1994 = vst [vmem:[%s2 + $0x160] sm:$0xf] %v1922
  %1995 = vst [vmem:[%s2 + $0x168] sm:$0xf] %v1923
  %1996 = vst [vmem:[%s2 + $0x170] sm:$0xf] %v1924
  %1997 = vst [vmem:[%s2 + $0x178] sm:$0xf] %v1925
  %1998 = vst [vmem:[%s2 + $0x180] sm:$0xf] %v1926
  %1999 = vst [vmem:[%s2 + $0x188] sm:$0xf] %v1927
  %2000 = vst [vmem:[%s2 + $0x190] sm:$0xf] %v1928
  %2001 = vst [vmem:[%s2 + $0x198] sm:$0xf] %v1929
  %2002 = vst [vmem:[%s2 + $0x1a0] sm:$0xf] %v1930
  %2003 = vst [vmem:[%s2 + $0x1a8] sm:$0xf] %v1931
  %2004 = vst [vmem:[%s2 + $0x1b0] sm:$0xf] %v1932
  %2005 = vst [vmem:[%s2 + $0x1b8] sm:$0xf] %v1933
  %2006 = vst [vmem:[%s2 + $0x1c0] sm:$0xf] %v1934
  %2007 = vst [vmem:[%s2 + $0x1c8] sm:$0xf] %v1935
  %2008 = vst [vmem:[%s2 + $0x1d0] sm:$0xf] %v1936
  %2009 = vst [vmem:[%s2 + $0x1d8] sm:$0xf] %v1937
  %2010 = vst [vmem:[%s2 + $0x1e0] sm:$0xf] %v1938
  %2011 = vst [vmem:[%s2 + $0x1e8] sm:$0xf] %v1939
  %2012 = vst [vmem:[%s2 + $0x1f0] sm:$0xf] %v1940
  %2013 = vst [vmem:[%s2 + $0x1f8] sm:$0xf] %v1941
  %2014 = vst [vmem:[%s2 + $0x200] sm:$0xf] %v1942
  %2015 = vst [vmem:[%s2 + $0x208] sm:$0xf] %v1943
  %2016 = vst [vmem:[%s2 + $0x210] sm:$0xf] %v1944
  %2017 = vst [vmem:[%s2 + $0x218] sm:$0xf] %v1945
  %2018 = vst [vmem:[%s2 + $0x220] sm:$0xf] %v1946
  %2019 = vst [vmem:[%s2 + $0x228] sm:$0xf] %v1947
  %2020 = vst [vmem:[%s2 + $0x230] sm:$0xf] %v1948
  %2021 = vst [vmem:[%s2 + $0x238] sm:$0xf] %v1949
  // Predicated region
  $region10: #{generator_i_forward.7} parent=0 // pred_check
    _
  $region11: #{generator_i_forward.7} parent=0 // pred_check_branch
    %2023 = sbr.rel (0) target = $region13
  $region12: #{generator_i_forward.7} parent=0 // pred_region
    _
  $region13: #{generator_i_forward.7} parent=0 // pred_fallthru
    _
  // Predicated region
  $region14: #{generator_i_forward.7} parent=0 // pred_check
    _
  $region15: #{generator_i_forward.7} parent=0 // pred_check_branch
    %2025 = sbr.rel (0) target = $region17
  $region16: #{generator_i_forward.7} parent=0 // pred_region
    _
  $region17: #{generator_i_forward.7} parent=0 // pred_fallthru
    _

</llo_original>
